<compile_context>
chip_gen: v7x
topology: tpu7x:2x2x1
jax: 0.10.0
libtpu: 0.0.40
codegen_flags: <defaults>
</compile_context>

<pallas_src>
import math

import jax
import jax.numpy as jnp
from jax.experimental import pallas as pl
from jax.experimental.pallas import tpu as pltpu  # noqa: F401  (TPU backend)

# ---------------- config (small, consistent with the module) ----------------
B = 2            # batch
S = 8            # sequence length
D = 32           # cfg.dim (hidden)
H = 4            # attention heads
DH = D // H      # head dim
FFN = 64         # intermediate size
L = 2            # encoder layers (TinyBERT "4L" shrunk for the demo)
VOCAB = 100
N_LABELS = 2
LN_EPS = 1e-12
LANE_PAD = 128   # lane-dense width for the final logits store


# ----------------------------- fused Pallas kernel ----------------------------
def _fused_forward_kernel(
    x_ref, maskb_ref,
    emb_g_ref, emb_b_ref,
    wqkv_ref, bqkv_ref, wo_ref, bo_ref, ln1g_ref, ln1b_ref,
    w1_ref, b1_ref, w2_ref, b2_ref, ln2g_ref, ln2b_ref,
    fcw_ref, fcb_ref, clsw_ref, clsb_ref,
    out_ref,
):
    """Whole Classifier forward for one mini-batch, entirely VMEM-resident."""

    def ln(v, g, b):
        mu = jnp.mean(v, axis=-1, keepdims=True)
        var = jnp.mean((v - mu) ** 2, axis=-1, keepdims=True)
        return (v - mu) * jax.lax.rsqrt(var + LN_EPS) * g + b

    x = x_ref[...]                       # [B*S, D]  token+pos+type embedding sum
    mask_bias = maskb_ref[...]           # [B, S]    additive mask bias (precomputed)
    x = ln(x, emb_g_ref[...], emb_b_ref[...])

    scale = 1.0 / math.sqrt(DH)
    for l in range(L):                   # static unroll (L is tiny)
        # ---- self-attention: fused QKV projection; heads via static slices ----
        qkv = jnp.dot(x, wqkv_ref[l], preferred_element_type=jnp.float32) + bqkv_ref[l]
        ctx_rows = []
        for b in range(B):
            rows = slice(b * S, (b + 1) * S)
            mb = mask_bias[b:b + 1, :]                                # [1, S]
            head_ctx = []
            for h in range(H):
                q = qkv[rows, h * DH:(h + 1) * DH]                    # [S, DH]
                k = qkv[rows, D + h * DH:D + (h + 1) * DH]            # [S, DH]
                v = qkv[rows, 2 * D + h * DH:2 * D + (h + 1) * DH]    # [S, DH]
                s = jnp.dot(q, k.T, preferred_element_type=jnp.float32) * scale + mb
                s = s - jnp.max(s, axis=-1, keepdims=True)
                p = jnp.exp(s)
                p = p * pl.reciprocal(jnp.sum(p, axis=-1, keepdims=True), approx=True)
                head_ctx.append(jnp.dot(p, v, preferred_element_type=jnp.float32))
            ctx_rows.append(jnp.concatenate(head_ctx, axis=1))        # [S, D]
        ctx = jnp.concatenate(ctx_rows, axis=0)                       # [B*S, D]

        attn_out = jnp.dot(ctx, wo_ref[l], preferred_element_type=jnp.float32) + bo_ref[l]
        x = ln(x + attn_out, ln1g_ref[l], ln1b_ref[l])                # residual fused into LN

        # ---- feed-forward ----
        ff = jnp.dot(x, w1_ref[l], preferred_element_type=jnp.float32) + b1_ref[l]
        # TODO(synk): BERT checkpoints use exact (erf) GELU; tanh approximation kept here.
        ff = jax.nn.gelu(ff, approximate=True)
        ff = jnp.dot(ff, w2_ref[l], preferred_element_type=jnp.float32) + b2_ref[l]
        x = ln(x + ff, ln2g_ref[l], ln2b_ref[l])

    # ---- pooled head: tanh(fc(.)) -> dropout (identity in eval) -> classifier ----
    # Computed for all B*S rows (cheaper than a ragged slice; CLS rows are picked in glue).
    pooled = jnp.tanh(jnp.dot(x, fcw_ref[...], preferred_element_type=jnp.float32)
                      + fcb_ref[...])
    logits = jnp.dot(pooled, clsw_ref[...], preferred_element_type=jnp.float32) + clsb_ref[...]
    out_ref[...] = logits.astype(out_ref.dtype)          # [B*S, 128] lane-dense store


# ------------------------------ parameters (glue) ------------------------------
def init_params(key):
    keys = iter(jax.random.split(key, 64))

    def w(shape, scale=0.02):
        return (scale * jax.random.normal(next(keys), shape)).astype(jnp.float32)

    cls_w = w((D, N_LABELS))
    p = {
        "word_emb": w((VOCAB, D)),
        "pos_emb": w((S, D)),
        "type_emb": w((2, D)),
        "emb_ln_g": jnp.ones((1, D), jnp.float32),
        "emb_ln_b": jnp.zeros((1, D), jnp.float32),
        # stacked per-layer weights (leading dim = L)
        "wqkv": w((L, D, 3 * D)),                 # columns: [Q(by head) | K | V]
        "bqkv": jnp.zeros((L, 1, 3 * D), jnp.float32),
        "wo": w((L, D, D)),
        "bo": jnp.zeros((L, 1, D), jnp.float32),
        "ln1_g": jnp.ones((L, 1, D), jnp.float32),
        "ln1_b": jnp.zeros((L, 1, D), jnp.float32),
        "w1": w((L, D, FFN)),
        "b1": jnp.zeros((L, 1, FFN), jnp.float32),
        "w2": w((L, FFN, D)),
        "b2": jnp.zeros((L, 1, D), jnp.float32),
        "ln2_g": jnp.ones((L, 1, D), jnp.float32),
        "ln2_b": jnp.zeros((L, 1, D), jnp.float32),
        # head (Classifier.fc / Classifier.classifier); classifier weight padded
        # to 128 lanes so the final store is lane-dense (extra columns are zero).
        "fc_w": w((D, D)),
        "fc_b": jnp.zeros((1, D), jnp.float32),
        "cls_w_pad": jnp.pad(cls_w, ((0, 0), (0, LANE_PAD - N_LABELS))),
        "cls_b_pad": jnp.zeros((1, LANE_PAD), jnp.float32),
        # NOTE: Classifier.self.bias is declared in the module but unused in forward().
    }
    return p


# ------------------------------ forward (glue) ---------------------------------
def classifier_forward(params, input_ids, segment_ids, input_mask, evaluate=True):
    # Embedding gathers stay in JAX glue (tiny tables); everything else is one kernel.
    tok = params["word_emb"][input_ids]                    # [B, S, D]
    pos = params["pos_emb"][None, :, :]                    # [1, S, D]
    typ = params["type_emb"][segment_ids]                  # [B, S, D]
    x_emb = (tok + pos + typ).reshape(B * S, D)

    # Additive BERT-style extended attention mask, precomputed once per forward.
    mask_bias = (1.0 - input_mask.astype(jnp.float32)) * (-1e4)   # [B, S]

    out = pl.pallas_call(
        _fused_forward_kernel,
        out_shape=jax.ShapeDtypeStruct((B * S, LANE_PAD), jnp.float32),
    )(x_emb, mask_bias,
      params["emb_ln_g"], params["emb_ln_b"],
      params["wqkv"], params["bqkv"], params["wo"], params["bo"],
      params["ln1_g"], params["ln1_b"],
      params["w1"], params["b1"], params["w2"], params["b2"],
      params["ln2_g"], params["ln2_b"],
      params["fc_w"], params["fc_b"], params["cls_w_pad"], params["cls_b_pad"])

    # CLS-token (position 0) logits, unpadded.
    logits = out.reshape(B, S, LANE_PAD)[:, 0, :N_LABELS]
    return logits


# --------------------------- pure-JAX reference (check) ------------------------
def _reference_forward(params, input_ids, segment_ids, input_mask):
    tok = params["word_emb"][input_ids]
    pos = params["pos_emb"][None, :, :]
    typ = params["type_emb"][segment_ids]
    x = (tok + pos + typ).reshape(B * S, D)
    mask_bias = (1.0 - input_mask.astype(jnp.float32)) * (-1e4)

    def ln(v, g, b):
        mu = jnp.mean(v, -1, keepdims=True)
        var = jnp.mean((v - mu) ** 2, -1, keepdims=True)
        return (v - mu) * jax.lax.rsqrt(var + LN_EPS) * g + b

    x = ln(x, params["emb_ln_g"], params["emb_ln_b"])
    scale = 1.0 / math.sqrt(DH)
    for l in range(L):
        qkv = x @ params["wqkv"][l] + params["bqkv"][l]
        ctx_rows = []
        for b in range(B):
            rows = slice(b * S, (b + 1) * S)
            mb = mask_bias[b:b + 1, :]
            heads = []
            for h in range(H):
                q = qkv[rows, h * DH:(h + 1) * DH]
                k = qkv[rows, D + h * DH:D + (h + 1) * DH]
                v = qkv[rows, 2 * D + h * DH:2 * D + (h + 1) * DH]
                s = q @ k.T * scale + mb
                heads.append(jax.nn.softmax(s, axis=-1) @ v)
            ctx_rows.append(jnp.concatenate(heads, axis=1))
        ctx = jnp.concatenate(ctx_rows, axis=0)
        x = ln(x + ctx @ params["wo"][l] + params["bo"][l],
               params["ln1_g"][l], params["ln1_b"][l])
        ff = jax.nn.gelu(x @ params["w1"][l] + params["b1"][l], approximate=True)
        x = ln(x + ff @ params["w2"][l] + params["b2"][l],
               params["ln2_g"][l], params["ln2_b"][l])
    pooled = jnp.tanh(x @ params["fc_w"] + params["fc_b"])
    logits = pooled @ params["cls_w_pad"] + params["cls_b_pad"]
    return logits.reshape(B, S, LANE_PAD)[:, 0, :N_LABELS]


# ---------------------------------- main --------------------------------------
if __name__ == "__main__":
    key = jax.random.PRNGKey(0)
    k_ids, k_params = jax.random.split(key)

    input_ids = jax.random.randint(k_ids, (B, S), 0, VOCAB, dtype=jnp.int32)
    segment_ids = jnp.zeros((B, S), jnp.int32)
    input_mask = jnp.ones((B, S), jnp.float32)

    params = init_params(k_params)
    logits = classifier_forward(params, input_ids, segment_ids, input_mask, evaluate=True)
    jax.block_until_ready(logits)

    assert logits.shape == (B, N_LABELS) and logits.dtype == jnp.float32
    assert bool(jnp.all(jnp.isfinite(logits)))

    with jax.default_matmul_precision("highest"):
        ref = _reference_forward(params, input_ids, segment_ids, input_mask)
    assert float(jnp.max(jnp.abs(logits - ref))) < 1e-2

    print("KERNEL_OK")
</pallas_src>

<mosaic_0001>
module attributes {stable_mosaic.version = 11 : i64} {
  func.func @_fused_forward_kernel(%arg0: memref<16x32xf32, #tpu.memory_space<vmem>>, %arg1: memref<2x8xf32, #tpu.memory_space<vmem>>, %arg2: memref<1x32xf32, #tpu.memory_space<vmem>>, %arg3: memref<1x32xf32, #tpu.memory_space<vmem>>, %arg4: memref<2x32x96xf32, #tpu.memory_space<vmem>>, %arg5: memref<2x1x96xf32, #tpu.memory_space<vmem>>, %arg6: memref<2x32x32xf32, #tpu.memory_space<vmem>>, %arg7: memref<2x1x32xf32, #tpu.memory_space<vmem>>, %arg8: memref<2x1x32xf32, #tpu.memory_space<vmem>>, %arg9: memref<2x1x32xf32, #tpu.memory_space<vmem>>, %arg10: memref<2x32x64xf32, #tpu.memory_space<vmem>>, %arg11: memref<2x1x64xf32, #tpu.memory_space<vmem>>, %arg12: memref<2x64x32xf32, #tpu.memory_space<vmem>>, %arg13: memref<2x1x32xf32, #tpu.memory_space<vmem>>, %arg14: memref<2x1x32xf32, #tpu.memory_space<vmem>>, %arg15: memref<2x1x32xf32, #tpu.memory_space<vmem>>, %arg16: memref<32x32xf32, #tpu.memory_space<vmem>>, %arg17: memref<1x32xf32, #tpu.memory_space<vmem>>, %arg18: memref<32x128xf32, #tpu.memory_space<vmem>>, %arg19: memref<1x128xf32, #tpu.memory_space<vmem>>, %arg20: memref<16x128xf32, #tpu.memory_space<vmem>>) attributes {dimension_semantics = [], scalar_prefetch = 0 : i64, scratch_operands = 0 : i64, tpu.core_type = #tpu.core_type<tc>} {
    %c0 = arith.constant 0 : index
    %c0_0 = arith.constant 0 : index
    %0 = vector.load %arg0[%c0, %c0_0] : memref<16x32xf32, #tpu.memory_space<vmem>>, vector<16x32xf32>
    %c0_1 = arith.constant 0 : index
    %c0_2 = arith.constant 0 : index
    %1 = vector.load %arg1[%c0_1, %c0_2] : memref<2x8xf32, #tpu.memory_space<vmem>>, vector<2x8xf32>
    %c0_3 = arith.constant 0 : index
    %c0_4 = arith.constant 0 : index
    %2 = vector.load %arg2[%c0_3, %c0_4] : memref<1x32xf32, #tpu.memory_space<vmem>>, vector<1x32xf32>
    %c0_5 = arith.constant 0 : index
    %c0_6 = arith.constant 0 : index
    %3 = vector.load %arg3[%c0_5, %c0_6] : memref<1x32xf32, #tpu.memory_space<vmem>>, vector<1x32xf32>
    %cst = arith.constant dense<0.000000e+00> : vector<16xf32>
    %4 = vector.multi_reduction <add>, %0, %cst [1] : vector<16x32xf32> to vector<16xf32>
    %5 = vector.shape_cast %4 : vector<16xf32> to vector<16x1xf32>
    %cst_7 = arith.constant 3.200000e+01 : f32
    %6 = vector.broadcast %cst_7 : f32 to vector<16x1xf32>
    %7 = arith.divf %5, %6 : vector<16x1xf32>
    %8 = vector.broadcast %7 : vector<16x1xf32> to vector<16x32xf32>
    %9 = arith.subf %0, %8 : vector<16x32xf32>
    %10 = arith.mulf %9, %9 : vector<16x32xf32>
    %cst_8 = arith.constant dense<0.000000e+00> : vector<16xf32>
    %11 = vector.multi_reduction <add>, %10, %cst_8 [1] : vector<16x32xf32> to vector<16xf32>
    %12 = vector.shape_cast %11 : vector<16xf32> to vector<16x1xf32>
    %cst_9 = arith.constant 3.200000e+01 : f32
    %13 = vector.broadcast %cst_9 : f32 to vector<16x1xf32>
    %14 = arith.divf %12, %13 : vector<16x1xf32>
    %15 = vector.broadcast %7 : vector<16x1xf32> to vector<16x32xf32>
    %16 = arith.subf %0, %15 : vector<16x32xf32>
    %cst_10 = arith.constant 9.99999996E-13 : f32
    %17 = vector.broadcast %cst_10 : f32 to vector<16x1xf32>
    %18 = arith.addf %14, %17 : vector<16x1xf32>
    %19 = math.rsqrt %18 : vector<16x1xf32>
    %20 = vector.broadcast %19 : vector<16x1xf32> to vector<16x32xf32>
    %21 = arith.mulf %16, %20 : vector<16x32xf32>
    %22 = vector.broadcast %2 : vector<1x32xf32> to vector<16x32xf32>
    %23 = arith.mulf %21, %22 : vector<16x32xf32>
    %24 = vector.broadcast %3 : vector<1x32xf32> to vector<16x32xf32>
    %25 = arith.addf %23, %24 : vector<16x32xf32>
    %c0_11 = arith.constant 0 : index
    %c0_12 = arith.constant 0 : index
    %c0_13 = arith.constant 0 : index
    %26 = vector.load %arg4[%c0_11, %c0_12, %c0_13] : memref<2x32x96xf32, #tpu.memory_space<vmem>>, vector<1x32x96xf32>
    %27 = vector.shape_cast %26 : vector<1x32x96xf32> to vector<32x96xf32>
    %cst_14 = arith.constant dense<0.000000e+00> : vector<16x96xf32>
    %28 = tpu.matmul %25, %27, %cst_14 {dimension_numbers = #tpu.dot_dimension_numbers<[1], [0], [0], [1], [0, 0, 1, 1], [], []>} : vector<16x32xf32>, vector<32x96xf32>, vector<16x96xf32> -> vector<16x96xf32>
    %c0_15 = arith.constant 0 : index
    %c0_16 = arith.constant 0 : index
    %c0_17 = arith.constant 0 : index
    %29 = vector.load %arg5[%c0_15, %c0_16, %c0_17] : memref<2x1x96xf32, #tpu.memory_space<vmem>>, vector<1x1x96xf32>
    %30 = vector.shape_cast %29 : vector<1x1x96xf32> to vector<1x96xf32>
    %31 = vector.broadcast %30 : vector<1x96xf32> to vector<16x96xf32>
    %32 = arith.addf %28, %31 : vector<16x96xf32>
    %33 = vector.extract_strided_slice %1 {offsets = [0, 0], sizes = [1, 8], strides = [1, 1]} : vector<2x8xf32> to vector<1x8xf32>
    %34 = vector.extract_strided_slice %32 {offsets = [0, 0], sizes = [8, 8], strides = [1, 1]} : vector<16x96xf32> to vector<8x8xf32>
    %35 = vector.extract_strided_slice %32 {offsets = [0, 32], sizes = [8, 8], strides = [1, 1]} : vector<16x96xf32> to vector<8x8xf32>
    %36 = vector.extract_strided_slice %32 {offsets = [0, 64], sizes = [8, 8], strides = [1, 1]} : vector<16x96xf32> to vector<8x8xf32>
    %37 = tpu.transpose %35, [1, 0] : vector<8x8xf32> -> vector<8x8xf32>
    %cst_18 = arith.constant dense<0.000000e+00> : vector<8x8xf32>
    %38 = tpu.matmul %34, %37, %cst_18 {dimension_numbers = #tpu.dot_dimension_numbers<[1], [0], [0], [1], [0, 0, 1, 1], [], []>} : vector<8x8xf32>, vector<8x8xf32>, vector<8x8xf32> -> vector<8x8xf32>
    %cst_19 = arith.constant 0.353553385 : f32
    %39 = vector.broadcast %cst_19 : f32 to vector<8x8xf32>
    %40 = arith.mulf %38, %39 : vector<8x8xf32>
    %41 = vector.broadcast %33 : vector<1x8xf32> to vector<8x8xf32>
    %42 = arith.addf %40, %41 : vector<8x8xf32>
    %cst_20 = arith.constant dense<0xFF800000> : vector<8xf32>
    %43 = vector.multi_reduction <maximumf>, %42, %cst_20 [1] : vector<8x8xf32> to vector<8xf32>
    %44 = vector.shape_cast %43 : vector<8xf32> to vector<8x1xf32>
    %45 = vector.broadcast %44 : vector<8x1xf32> to vector<8x8xf32>
    %46 = arith.subf %42, %45 : vector<8x8xf32>
    %47 = math.exp %46 : vector<8x8xf32>
    %cst_21 = arith.constant dense<0.000000e+00> : vector<8xf32>
    %48 = vector.multi_reduction <add>, %47, %cst_21 [1] : vector<8x8xf32> to vector<8xf32>
    %49 = vector.shape_cast %48 : vector<8xf32> to vector<8x1xf32>
    %50 = tpu.reciprocal %49 {approx = true} : vector<8x1xf32> -> vector<8x1xf32>
    %51 = vector.broadcast %50 : vector<8x1xf32> to vector<8x8xf32>
    %52 = arith.mulf %47, %51 : vector<8x8xf32>
    %cst_22 = arith.constant dense<0.000000e+00> : vector<8x8xf32>
    %53 = tpu.matmul %52, %36, %cst_22 {dimension_numbers = #tpu.dot_dimension_numbers<[1], [0], [0], [1], [0, 0, 1, 1], [], []>} : vector<8x8xf32>, vector<8x8xf32>, vector<8x8xf32> -> vector<8x8xf32>
    %54 = vector.extract_strided_slice %32 {offsets = [0, 8], sizes = [8, 8], strides = [1, 1]} : vector<16x96xf32> to vector<8x8xf32>
    %55 = vector.extract_strided_slice %32 {offsets = [0, 40], sizes = [8, 8], strides = [1, 1]} : vector<16x96xf32> to vector<8x8xf32>
    %56 = vector.extract_strided_slice %32 {offsets = [0, 72], sizes = [8, 8], strides = [1, 1]} : vector<16x96xf32> to vector<8x8xf32>
    %57 = tpu.transpose %55, [1, 0] : vector<8x8xf32> -> vector<8x8xf32>
    %cst_23 = arith.constant dense<0.000000e+00> : vector<8x8xf32>
    %58 = tpu.matmul %54, %57, %cst_23 {dimension_numbers = #tpu.dot_dimension_numbers<[1], [0], [0], [1], [0, 0, 1, 1], [], []>} : vector<8x8xf32>, vector<8x8xf32>, vector<8x8xf32> -> vector<8x8xf32>
    %cst_24 = arith.constant 0.353553385 : f32
    %59 = vector.broadcast %cst_24 : f32 to vector<8x8xf32>
    %60 = arith.mulf %58, %59 : vector<8x8xf32>
    %61 = vector.broadcast %33 : vector<1x8xf32> to vector<8x8xf32>
    %62 = arith.addf %60, %61 : vector<8x8xf32>
    %cst_25 = arith.constant dense<0xFF800000> : vector<8xf32>
    %63 = vector.multi_reduction <maximumf>, %62, %cst_25 [1] : vector<8x8xf32> to vector<8xf32>
    %64 = vector.shape_cast %63 : vector<8xf32> to vector<8x1xf32>
    %65 = vector.broadcast %64 : vector<8x1xf32> to vector<8x8xf32>
    %66 = arith.subf %62, %65 : vector<8x8xf32>
    %67 = math.exp %66 : vector<8x8xf32>
    %cst_26 = arith.constant dense<0.000000e+00> : vector<8xf32>
    %68 = vector.multi_reduction <add>, %67, %cst_26 [1] : vector<8x8xf32> to vector<8xf32>
    %69 = vector.shape_cast %68 : vector<8xf32> to vector<8x1xf32>
    %70 = tpu.reciprocal %69 {approx = true} : vector<8x1xf32> -> vector<8x1xf32>
    %71 = vector.broadcast %70 : vector<8x1xf32> to vector<8x8xf32>
    %72 = arith.mulf %67, %71 : vector<8x8xf32>
    %cst_27 = arith.constant dense<0.000000e+00> : vector<8x8xf32>
    %73 = tpu.matmul %72, %56, %cst_27 {dimension_numbers = #tpu.dot_dimension_numbers<[1], [0], [0], [1], [0, 0, 1, 1], [], []>} : vector<8x8xf32>, vector<8x8xf32>, vector<8x8xf32> -> vector<8x8xf32>
    %74 = vector.extract_strided_slice %32 {offsets = [0, 16], sizes = [8, 8], strides = [1, 1]} : vector<16x96xf32> to vector<8x8xf32>
    %75 = vector.extract_strided_slice %32 {offsets = [0, 48], sizes = [8, 8], strides = [1, 1]} : vector<16x96xf32> to vector<8x8xf32>
    %76 = vector.extract_strided_slice %32 {offsets = [0, 80], sizes = [8, 8], strides = [1, 1]} : vector<16x96xf32> to vector<8x8xf32>
    %77 = tpu.transpose %75, [1, 0] : vector<8x8xf32> -> vector<8x8xf32>
    %cst_28 = arith.constant dense<0.000000e+00> : vector<8x8xf32>
    %78 = tpu.matmul %74, %77, %cst_28 {dimension_numbers = #tpu.dot_dimension_numbers<[1], [0], [0], [1], [0, 0, 1, 1], [], []>} : vector<8x8xf32>, vector<8x8xf32>, vector<8x8xf32> -> vector<8x8xf32>
    %cst_29 = arith.constant 0.353553385 : f32
    %79 = vector.broadcast %cst_29 : f32 to vector<8x8xf32>
    %80 = arith.mulf %78, %79 : vector<8x8xf32>
    %81 = vector.broadcast %33 : vector<1x8xf32> to vector<8x8xf32>
    %82 = arith.addf %80, %81 : vector<8x8xf32>
    %cst_30 = arith.constant dense<0xFF800000> : vector<8xf32>
    %83 = vector.multi_reduction <maximumf>, %82, %cst_30 [1] : vector<8x8xf32> to vector<8xf32>
    %84 = vector.shape_cast %83 : vector<8xf32> to vector<8x1xf32>
    %85 = vector.broadcast %84 : vector<8x1xf32> to vector<8x8xf32>
    %86 = arith.subf %82, %85 : vector<8x8xf32>
    %87 = math.exp %86 : vector<8x8xf32>
    %cst_31 = arith.constant dense<0.000000e+00> : vector<8xf32>
    %88 = vector.multi_reduction <add>, %87, %cst_31 [1] : vector<8x8xf32> to vector<8xf32>
    %89 = vector.shape_cast %88 : vector<8xf32> to vector<8x1xf32>
    %90 = tpu.reciprocal %89 {approx = true} : vector<8x1xf32> -> vector<8x1xf32>
    %91 = vector.broadcast %90 : vector<8x1xf32> to vector<8x8xf32>
    %92 = arith.mulf %87, %91 : vector<8x8xf32>
    %cst_32 = arith.constant dense<0.000000e+00> : vector<8x8xf32>
    %93 = tpu.matmul %92, %76, %cst_32 {dimension_numbers = #tpu.dot_dimension_numbers<[1], [0], [0], [1], [0, 0, 1, 1], [], []>} : vector<8x8xf32>, vector<8x8xf32>, vector<8x8xf32> -> vector<8x8xf32>
    %94 = vector.extract_strided_slice %32 {offsets = [0, 24], sizes = [8, 8], strides = [1, 1]} : vector<16x96xf32> to vector<8x8xf32>
    %95 = vector.extract_strided_slice %32 {offsets = [0, 56], sizes = [8, 8], strides = [1, 1]} : vector<16x96xf32> to vector<8x8xf32>
    %96 = vector.extract_strided_slice %32 {offsets = [0, 88], sizes = [8, 8], strides = [1, 1]} : vector<16x96xf32> to vector<8x8xf32>
    %97 = tpu.transpose %95, [1, 0] : vector<8x8xf32> -> vector<8x8xf32>
    %cst_33 = arith.constant dense<0.000000e+00> : vector<8x8xf32>
    %98 = tpu.matmul %94, %97, %cst_33 {dimension_numbers = #tpu.dot_dimension_numbers<[1], [0], [0], [1], [0, 0, 1, 1], [], []>} : vector<8x8xf32>, vector<8x8xf32>, vector<8x8xf32> -> vector<8x8xf32>
    %cst_34 = arith.constant 0.353553385 : f32
    %99 = vector.broadcast %cst_34 : f32 to vector<8x8xf32>
    %100 = arith.mulf %98, %99 : vector<8x8xf32>
    %101 = vector.broadcast %33 : vector<1x8xf32> to vector<8x8xf32>
    %102 = arith.addf %100, %101 : vector<8x8xf32>
    %cst_35 = arith.constant dense<0xFF800000> : vector<8xf32>
    %103 = vector.multi_reduction <maximumf>, %102, %cst_35 [1] : vector<8x8xf32> to vector<8xf32>
    %104 = vector.shape_cast %103 : vector<8xf32> to vector<8x1xf32>
    %105 = vector.broadcast %104 : vector<8x1xf32> to vector<8x8xf32>
    %106 = arith.subf %102, %105 : vector<8x8xf32>
    %107 = math.exp %106 : vector<8x8xf32>
    %cst_36 = arith.constant dense<0.000000e+00> : vector<8xf32>
    %108 = vector.multi_reduction <add>, %107, %cst_36 [1] : vector<8x8xf32> to vector<8xf32>
    %109 = vector.shape_cast %108 : vector<8xf32> to vector<8x1xf32>
    %110 = tpu.reciprocal %109 {approx = true} : vector<8x1xf32> -> vector<8x1xf32>
    %111 = vector.broadcast %110 : vector<8x1xf32> to vector<8x8xf32>
    %112 = arith.mulf %107, %111 : vector<8x8xf32>
    %cst_37 = arith.constant dense<0.000000e+00> : vector<8x8xf32>
    %113 = tpu.matmul %112, %96, %cst_37 {dimension_numbers = #tpu.dot_dimension_numbers<[1], [0], [0], [1], [0, 0, 1, 1], [], []>} : vector<8x8xf32>, vector<8x8xf32>, vector<8x8xf32> -> vector<8x8xf32>
    %114 = tpu.concatenate %53, %73, %93, %113 in 1 : vector<8x8xf32>, vector<8x8xf32>, vector<8x8xf32>, vector<8x8xf32> -> vector<8x32xf32>
    %115 = vector.extract_strided_slice %1 {offsets = [1, 0], sizes = [1, 8], strides = [1, 1]} : vector<2x8xf32> to vector<1x8xf32>
    %116 = vector.extract_strided_slice %32 {offsets = [8, 0], sizes = [8, 8], strides = [1, 1]} : vector<16x96xf32> to vector<8x8xf32>
    %117 = vector.extract_strided_slice %32 {offsets = [8, 32], sizes = [8, 8], strides = [1, 1]} : vector<16x96xf32> to vector<8x8xf32>
    %118 = vector.extract_strided_slice %32 {offsets = [8, 64], sizes = [8, 8], strides = [1, 1]} : vector<16x96xf32> to vector<8x8xf32>
    %119 = tpu.transpose %117, [1, 0] : vector<8x8xf32> -> vector<8x8xf32>
    %cst_38 = arith.constant dense<0.000000e+00> : vector<8x8xf32>
    %120 = tpu.matmul %116, %119, %cst_38 {dimension_numbers = #tpu.dot_dimension_numbers<[1], [0], [0], [1], [0, 0, 1, 1], [], []>} : vector<8x8xf32>, vector<8x8xf32>, vector<8x8xf32> -> vector<8x8xf32>
    %cst_39 = arith.constant 0.353553385 : f32
    %121 = vector.broadcast %cst_39 : f32 to vector<8x8xf32>
    %122 = arith.mulf %120, %121 : vector<8x8xf32>
    %123 = vector.broadcast %115 : vector<1x8xf32> to vector<8x8xf32>
    %124 = arith.addf %122, %123 : vector<8x8xf32>
    %cst_40 = arith.constant dense<0xFF800000> : vector<8xf32>
    %125 = vector.multi_reduction <maximumf>, %124, %cst_40 [1] : vector<8x8xf32> to vector<8xf32>
    %126 = vector.shape_cast %125 : vector<8xf32> to vector<8x1xf32>
    %127 = vector.broadcast %126 : vector<8x1xf32> to vector<8x8xf32>
    %128 = arith.subf %124, %127 : vector<8x8xf32>
    %129 = math.exp %128 : vector<8x8xf32>
    %cst_41 = arith.constant dense<0.000000e+00> : vector<8xf32>
    %130 = vector.multi_reduction <add>, %129, %cst_41 [1] : vector<8x8xf32> to vector<8xf32>
    %131 = vector.shape_cast %130 : vector<8xf32> to vector<8x1xf32>
    %132 = tpu.reciprocal %131 {approx = true} : vector<8x1xf32> -> vector<8x1xf32>
    %133 = vector.broadcast %132 : vector<8x1xf32> to vector<8x8xf32>
    %134 = arith.mulf %129, %133 : vector<8x8xf32>
    %cst_42 = arith.constant dense<0.000000e+00> : vector<8x8xf32>
    %135 = tpu.matmul %134, %118, %cst_42 {dimension_numbers = #tpu.dot_dimension_numbers<[1], [0], [0], [1], [0, 0, 1, 1], [], []>} : vector<8x8xf32>, vector<8x8xf32>, vector<8x8xf32> -> vector<8x8xf32>
    %136 = vector.extract_strided_slice %32 {offsets = [8, 8], sizes = [8, 8], strides = [1, 1]} : vector<16x96xf32> to vector<8x8xf32>
    %137 = vector.extract_strided_slice %32 {offsets = [8, 40], sizes = [8, 8], strides = [1, 1]} : vector<16x96xf32> to vector<8x8xf32>
    %138 = vector.extract_strided_slice %32 {offsets = [8, 72], sizes = [8, 8], strides = [1, 1]} : vector<16x96xf32> to vector<8x8xf32>
    %139 = tpu.transpose %137, [1, 0] : vector<8x8xf32> -> vector<8x8xf32>
    %cst_43 = arith.constant dense<0.000000e+00> : vector<8x8xf32>
    %140 = tpu.matmul %136, %139, %cst_43 {dimension_numbers = #tpu.dot_dimension_numbers<[1], [0], [0], [1], [0, 0, 1, 1], [], []>} : vector<8x8xf32>, vector<8x8xf32>, vector<8x8xf32> -> vector<8x8xf32>
    %cst_44 = arith.constant 0.353553385 : f32
    %141 = vector.broadcast %cst_44 : f32 to vector<8x8xf32>
    %142 = arith.mulf %140, %141 : vector<8x8xf32>
    %143 = vector.broadcast %115 : vector<1x8xf32> to vector<8x8xf32>
    %144 = arith.addf %142, %143 : vector<8x8xf32>
    %cst_45 = arith.constant dense<0xFF800000> : vector<8xf32>
    %145 = vector.multi_reduction <maximumf>, %144, %cst_45 [1] : vector<8x8xf32> to vector<8xf32>
    %146 = vector.shape_cast %145 : vector<8xf32> to vector<8x1xf32>
    %147 = vector.broadcast %146 : vector<8x1xf32> to vector<8x8xf32>
    %148 = arith.subf %144, %147 : vector<8x8xf32>
    %149 = math.exp %148 : vector<8x8xf32>
    %cst_46 = arith.constant dense<0.000000e+00> : vector<8xf32>
    %150 = vector.multi_reduction <add>, %149, %cst_46 [1] : vector<8x8xf32> to vector<8xf32>
    %151 = vector.shape_cast %150 : vector<8xf32> to vector<8x1xf32>
    %152 = tpu.reciprocal %151 {approx = true} : vector<8x1xf32> -> vector<8x1xf32>
    %153 = vector.broadcast %152 : vector<8x1xf32> to vector<8x8xf32>
    %154 = arith.mulf %149, %153 : vector<8x8xf32>
    %cst_47 = arith.constant dense<0.000000e+00> : vector<8x8xf32>
    %155 = tpu.matmul %154, %138, %cst_47 {dimension_numbers = #tpu.dot_dimension_numbers<[1], [0], [0], [1], [0, 0, 1, 1], [], []>} : vector<8x8xf32>, vector<8x8xf32>, vector<8x8xf32> -> vector<8x8xf32>
    %156 = vector.extract_strided_slice %32 {offsets = [8, 16], sizes = [8, 8], strides = [1, 1]} : vector<16x96xf32> to vector<8x8xf32>
    %157 = vector.extract_strided_slice %32 {offsets = [8, 48], sizes = [8, 8], strides = [1, 1]} : vector<16x96xf32> to vector<8x8xf32>
    %158 = vector.extract_strided_slice %32 {offsets = [8, 80], sizes = [8, 8], strides = [1, 1]} : vector<16x96xf32> to vector<8x8xf32>
    %159 = tpu.transpose %157, [1, 0] : vector<8x8xf32> -> vector<8x8xf32>
    %cst_48 = arith.constant dense<0.000000e+00> : vector<8x8xf32>
    %160 = tpu.matmul %156, %159, %cst_48 {dimension_numbers = #tpu.dot_dimension_numbers<[1], [0], [0], [1], [0, 0, 1, 1], [], []>} : vector<8x8xf32>, vector<8x8xf32>, vector<8x8xf32> -> vector<8x8xf32>
    %cst_49 = arith.constant 0.353553385 : f32
    %161 = vector.broadcast %cst_49 : f32 to vector<8x8xf32>
    %162 = arith.mulf %160, %161 : vector<8x8xf32>
    %163 = vector.broadcast %115 : vector<1x8xf32> to vector<8x8xf32>
    %164 = arith.addf %162, %163 : vector<8x8xf32>
    %cst_50 = arith.constant dense<0xFF800000> : vector<8xf32>
    %165 = vector.multi_reduction <maximumf>, %164, %cst_50 [1] : vector<8x8xf32> to vector<8xf32>
    %166 = vector.shape_cast %165 : vector<8xf32> to vector<8x1xf32>
    %167 = vector.broadcast %166 : vector<8x1xf32> to vector<8x8xf32>
    %168 = arith.subf %164, %167 : vector<8x8xf32>
    %169 = math.exp %168 : vector<8x8xf32>
    %cst_51 = arith.constant dense<0.000000e+00> : vector<8xf32>
    %170 = vector.multi_reduction <add>, %169, %cst_51 [1] : vector<8x8xf32> to vector<8xf32>
    %171 = vector.shape_cast %170 : vector<8xf32> to vector<8x1xf32>
    %172 = tpu.reciprocal %171 {approx = true} : vector<8x1xf32> -> vector<8x1xf32>
    %173 = vector.broadcast %172 : vector<8x1xf32> to vector<8x8xf32>
    %174 = arith.mulf %169, %173 : vector<8x8xf32>
    %cst_52 = arith.constant dense<0.000000e+00> : vector<8x8xf32>
    %175 = tpu.matmul %174, %158, %cst_52 {dimension_numbers = #tpu.dot_dimension_numbers<[1], [0], [0], [1], [0, 0, 1, 1], [], []>} : vector<8x8xf32>, vector<8x8xf32>, vector<8x8xf32> -> vector<8x8xf32>
    %176 = vector.extract_strided_slice %32 {offsets = [8, 24], sizes = [8, 8], strides = [1, 1]} : vector<16x96xf32> to vector<8x8xf32>
    %177 = vector.extract_strided_slice %32 {offsets = [8, 56], sizes = [8, 8], strides = [1, 1]} : vector<16x96xf32> to vector<8x8xf32>
    %178 = vector.extract_strided_slice %32 {offsets = [8, 88], sizes = [8, 8], strides = [1, 1]} : vector<16x96xf32> to vector<8x8xf32>
    %179 = tpu.transpose %177, [1, 0] : vector<8x8xf32> -> vector<8x8xf32>
    %cst_53 = arith.constant dense<0.000000e+00> : vector<8x8xf32>
    %180 = tpu.matmul %176, %179, %cst_53 {dimension_numbers = #tpu.dot_dimension_numbers<[1], [0], [0], [1], [0, 0, 1, 1], [], []>} : vector<8x8xf32>, vector<8x8xf32>, vector<8x8xf32> -> vector<8x8xf32>
    %cst_54 = arith.constant 0.353553385 : f32
    %181 = vector.broadcast %cst_54 : f32 to vector<8x8xf32>
    %182 = arith.mulf %180, %181 : vector<8x8xf32>
    %183 = vector.broadcast %115 : vector<1x8xf32> to vector<8x8xf32>
    %184 = arith.addf %182, %183 : vector<8x8xf32>
    %cst_55 = arith.constant dense<0xFF800000> : vector<8xf32>
    %185 = vector.multi_reduction <maximumf>, %184, %cst_55 [1] : vector<8x8xf32> to vector<8xf32>
    %186 = vector.shape_cast %185 : vector<8xf32> to vector<8x1xf32>
    %187 = vector.broadcast %186 : vector<8x1xf32> to vector<8x8xf32>
    %188 = arith.subf %184, %187 : vector<8x8xf32>
    %189 = math.exp %188 : vector<8x8xf32>
    %cst_56 = arith.constant dense<0.000000e+00> : vector<8xf32>
    %190 = vector.multi_reduction <add>, %189, %cst_56 [1] : vector<8x8xf32> to vector<8xf32>
    %191 = vector.shape_cast %190 : vector<8xf32> to vector<8x1xf32>
    %192 = tpu.reciprocal %191 {approx = true} : vector<8x1xf32> -> vector<8x1xf32>
    %193 = vector.broadcast %192 : vector<8x1xf32> to vector<8x8xf32>
    %194 = arith.mulf %189, %193 : vector<8x8xf32>
    %cst_57 = arith.constant dense<0.000000e+00> : vector<8x8xf32>
    %195 = tpu.matmul %194, %178, %cst_57 {dimension_numbers = #tpu.dot_dimension_numbers<[1], [0], [0], [1], [0, 0, 1, 1], [], []>} : vector<8x8xf32>, vector<8x8xf32>, vector<8x8xf32> -> vector<8x8xf32>
    %196 = tpu.concatenate %135, %155, %175, %195 in 1 : vector<8x8xf32>, vector<8x8xf32>, vector<8x8xf32>, vector<8x8xf32> -> vector<8x32xf32>
    %197 = tpu.concatenate %114, %196 in 0 : vector<8x32xf32>, vector<8x32xf32> -> vector<16x32xf32>
    %c0_58 = arith.constant 0 : index
    %c0_59 = arith.constant 0 : index
    %c0_60 = arith.constant 0 : index
    %198 = vector.load %arg6[%c0_58, %c0_59, %c0_60] : memref<2x32x32xf32, #tpu.memory_space<vmem>>, vector<1x32x32xf32>
    %199 = vector.shape_cast %198 : vector<1x32x32xf32> to vector<32x32xf32>
    %cst_61 = arith.constant dense<0.000000e+00> : vector<16x32xf32>
    %200 = tpu.matmul %197, %199, %cst_61 {dimension_numbers = #tpu.dot_dimension_numbers<[1], [0], [0], [1], [0, 0, 1, 1], [], []>} : vector<16x32xf32>, vector<32x32xf32>, vector<16x32xf32> -> vector<16x32xf32>
    %c0_62 = arith.constant 0 : index
    %c0_63 = arith.constant 0 : index
    %c0_64 = arith.constant 0 : index
    %201 = vector.load %arg7[%c0_62, %c0_63, %c0_64] : memref<2x1x32xf32, #tpu.memory_space<vmem>>, vector<1x1x32xf32>
    %202 = vector.shape_cast %201 : vector<1x1x32xf32> to vector<1x32xf32>
    %203 = vector.broadcast %202 : vector<1x32xf32> to vector<16x32xf32>
    %204 = arith.addf %200, %203 : vector<16x32xf32>
    %205 = arith.addf %25, %204 : vector<16x32xf32>
    %c0_65 = arith.constant 0 : index
    %c0_66 = arith.constant 0 : index
    %c0_67 = arith.constant 0 : index
    %206 = vector.load %arg8[%c0_65, %c0_66, %c0_67] : memref<2x1x32xf32, #tpu.memory_space<vmem>>, vector<1x1x32xf32>
    %207 = vector.shape_cast %206 : vector<1x1x32xf32> to vector<1x32xf32>
    %c0_68 = arith.constant 0 : index
    %c0_69 = arith.constant 0 : index
    %c0_70 = arith.constant 0 : index
    %208 = vector.load %arg9[%c0_68, %c0_69, %c0_70] : memref<2x1x32xf32, #tpu.memory_space<vmem>>, vector<1x1x32xf32>
    %209 = vector.shape_cast %208 : vector<1x1x32xf32> to vector<1x32xf32>
    %cst_71 = arith.constant dense<0.000000e+00> : vector<16xf32>
    %210 = vector.multi_reduction <add>, %205, %cst_71 [1] : vector<16x32xf32> to vector<16xf32>
    %211 = vector.shape_cast %210 : vector<16xf32> to vector<16x1xf32>
    %cst_72 = arith.constant 3.200000e+01 : f32
    %212 = vector.broadcast %cst_72 : f32 to vector<16x1xf32>
    %213 = arith.divf %211, %212 : vector<16x1xf32>
    %214 = vector.broadcast %213 : vector<16x1xf32> to vector<16x32xf32>
    %215 = arith.subf %205, %214 : vector<16x32xf32>
    %216 = arith.mulf %215, %215 : vector<16x32xf32>
    %cst_73 = arith.constant dense<0.000000e+00> : vector<16xf32>
    %217 = vector.multi_reduction <add>, %216, %cst_73 [1] : vector<16x32xf32> to vector<16xf32>
    %218 = vector.shape_cast %217 : vector<16xf32> to vector<16x1xf32>
    %cst_74 = arith.constant 3.200000e+01 : f32
    %219 = vector.broadcast %cst_74 : f32 to vector<16x1xf32>
    %220 = arith.divf %218, %219 : vector<16x1xf32>
    %221 = vector.broadcast %213 : vector<16x1xf32> to vector<16x32xf32>
    %222 = arith.subf %205, %221 : vector<16x32xf32>
    %cst_75 = arith.constant 9.99999996E-13 : f32
    %223 = vector.broadcast %cst_75 : f32 to vector<16x1xf32>
    %224 = arith.addf %220, %223 : vector<16x1xf32>
    %225 = math.rsqrt %224 : vector<16x1xf32>
    %226 = vector.broadcast %225 : vector<16x1xf32> to vector<16x32xf32>
    %227 = arith.mulf %222, %226 : vector<16x32xf32>
    %228 = vector.broadcast %207 : vector<1x32xf32> to vector<16x32xf32>
    %229 = arith.mulf %227, %228 : vector<16x32xf32>
    %230 = vector.broadcast %209 : vector<1x32xf32> to vector<16x32xf32>
    %231 = arith.addf %229, %230 : vector<16x32xf32>
    %c0_76 = arith.constant 0 : index
    %c0_77 = arith.constant 0 : index
    %c0_78 = arith.constant 0 : index
    %232 = vector.load %arg10[%c0_76, %c0_77, %c0_78] : memref<2x32x64xf32, #tpu.memory_space<vmem>>, vector<1x32x64xf32>
    %233 = vector.shape_cast %232 : vector<1x32x64xf32> to vector<32x64xf32>
    %cst_79 = arith.constant dense<0.000000e+00> : vector<16x64xf32>
    %234 = tpu.matmul %231, %233, %cst_79 {dimension_numbers = #tpu.dot_dimension_numbers<[1], [0], [0], [1], [0, 0, 1, 1], [], []>} : vector<16x32xf32>, vector<32x64xf32>, vector<16x64xf32> -> vector<16x64xf32>
    %c0_80 = arith.constant 0 : index
    %c0_81 = arith.constant 0 : index
    %c0_82 = arith.constant 0 : index
    %235 = vector.load %arg11[%c0_80, %c0_81, %c0_82] : memref<2x1x64xf32, #tpu.memory_space<vmem>>, vector<1x1x64xf32>
    %236 = vector.shape_cast %235 : vector<1x1x64xf32> to vector<1x64xf32>
    %237 = vector.broadcast %236 : vector<1x64xf32> to vector<16x64xf32>
    %238 = arith.addf %234, %237 : vector<16x64xf32>
    %239 = arith.mulf %238, %238 : vector<16x64xf32>
    %240 = arith.mulf %238, %239 : vector<16x64xf32>
    %cst_83 = arith.constant 4.471500e-02 : f32
    %241 = vector.broadcast %cst_83 : f32 to vector<16x64xf32>
    %242 = arith.mulf %241, %240 : vector<16x64xf32>
    %243 = arith.addf %238, %242 : vector<16x64xf32>
    %cst_84 = arith.constant 0.797884583 : f32
    %244 = vector.broadcast %cst_84 : f32 to vector<16x64xf32>
    %245 = arith.mulf %244, %243 : vector<16x64xf32>
    %246 = math.tanh %245 : vector<16x64xf32>
    %cst_85 = arith.constant 1.000000e+00 : f32
    %247 = vector.broadcast %cst_85 : f32 to vector<16x64xf32>
    %248 = arith.addf %247, %246 : vector<16x64xf32>
    %cst_86 = arith.constant 5.000000e-01 : f32
    %249 = vector.broadcast %cst_86 : f32 to vector<16x64xf32>
    %250 = arith.mulf %249, %248 : vector<16x64xf32>
    %251 = arith.mulf %238, %250 : vector<16x64xf32>
    %c0_87 = arith.constant 0 : index
    %c0_88 = arith.constant 0 : index
    %c0_89 = arith.constant 0 : index
    %252 = vector.load %arg12[%c0_87, %c0_88, %c0_89] : memref<2x64x32xf32, #tpu.memory_space<vmem>>, vector<1x64x32xf32>
    %253 = vector.shape_cast %252 : vector<1x64x32xf32> to vector<64x32xf32>
    %cst_90 = arith.constant dense<0.000000e+00> : vector<16x32xf32>
    %254 = tpu.matmul %251, %253, %cst_90 {dimension_numbers = #tpu.dot_dimension_numbers<[1], [0], [0], [1], [0, 0, 1, 1], [], []>} : vector<16x64xf32>, vector<64x32xf32>, vector<16x32xf32> -> vector<16x32xf32>
    %c0_91 = arith.constant 0 : index
    %c0_92 = arith.constant 0 : index
    %c0_93 = arith.constant 0 : index
    %255 = vector.load %arg13[%c0_91, %c0_92, %c0_93] : memref<2x1x32xf32, #tpu.memory_space<vmem>>, vector<1x1x32xf32>
    %256 = vector.shape_cast %255 : vector<1x1x32xf32> to vector<1x32xf32>
    %257 = vector.broadcast %256 : vector<1x32xf32> to vector<16x32xf32>
    %258 = arith.addf %254, %257 : vector<16x32xf32>
    %259 = arith.addf %231, %258 : vector<16x32xf32>
    %c0_94 = arith.constant 0 : index
    %c0_95 = arith.constant 0 : index
    %c0_96 = arith.constant 0 : index
    %260 = vector.load %arg14[%c0_94, %c0_95, %c0_96] : memref<2x1x32xf32, #tpu.memory_space<vmem>>, vector<1x1x32xf32>
    %261 = vector.shape_cast %260 : vector<1x1x32xf32> to vector<1x32xf32>
    %c0_97 = arith.constant 0 : index
    %c0_98 = arith.constant 0 : index
    %c0_99 = arith.constant 0 : index
    %262 = vector.load %arg15[%c0_97, %c0_98, %c0_99] : memref<2x1x32xf32, #tpu.memory_space<vmem>>, vector<1x1x32xf32>
    %263 = vector.shape_cast %262 : vector<1x1x32xf32> to vector<1x32xf32>
    %cst_100 = arith.constant dense<0.000000e+00> : vector<16xf32>
    %264 = vector.multi_reduction <add>, %259, %cst_100 [1] : vector<16x32xf32> to vector<16xf32>
    %265 = vector.shape_cast %264 : vector<16xf32> to vector<16x1xf32>
    %cst_101 = arith.constant 3.200000e+01 : f32
    %266 = vector.broadcast %cst_101 : f32 to vector<16x1xf32>
    %267 = arith.divf %265, %266 : vector<16x1xf32>
    %268 = vector.broadcast %267 : vector<16x1xf32> to vector<16x32xf32>
    %269 = arith.subf %259, %268 : vector<16x32xf32>
    %270 = arith.mulf %269, %269 : vector<16x32xf32>
    %cst_102 = arith.constant dense<0.000000e+00> : vector<16xf32>
    %271 = vector.multi_reduction <add>, %270, %cst_102 [1] : vector<16x32xf32> to vector<16xf32>
    %272 = vector.shape_cast %271 : vector<16xf32> to vector<16x1xf32>
    %cst_103 = arith.constant 3.200000e+01 : f32
    %273 = vector.broadcast %cst_103 : f32 to vector<16x1xf32>
    %274 = arith.divf %272, %273 : vector<16x1xf32>
    %275 = vector.broadcast %267 : vector<16x1xf32> to vector<16x32xf32>
    %276 = arith.subf %259, %275 : vector<16x32xf32>
    %cst_104 = arith.constant 9.99999996E-13 : f32
    %277 = vector.broadcast %cst_104 : f32 to vector<16x1xf32>
    %278 = arith.addf %274, %277 : vector<16x1xf32>
    %279 = math.rsqrt %278 : vector<16x1xf32>
    %280 = vector.broadcast %279 : vector<16x1xf32> to vector<16x32xf32>
    %281 = arith.mulf %276, %280 : vector<16x32xf32>
    %282 = vector.broadcast %261 : vector<1x32xf32> to vector<16x32xf32>
    %283 = arith.mulf %281, %282 : vector<16x32xf32>
    %284 = vector.broadcast %263 : vector<1x32xf32> to vector<16x32xf32>
    %285 = arith.addf %283, %284 : vector<16x32xf32>
    %c1 = arith.constant 1 : index
    %c0_105 = arith.constant 0 : index
    %c0_106 = arith.constant 0 : index
    %286 = vector.load %arg4[%c1, %c0_105, %c0_106] : memref<2x32x96xf32, #tpu.memory_space<vmem>>, vector<1x32x96xf32>
    %287 = vector.shape_cast %286 : vector<1x32x96xf32> to vector<32x96xf32>
    %cst_107 = arith.constant dense<0.000000e+00> : vector<16x96xf32>
    %288 = tpu.matmul %285, %287, %cst_107 {dimension_numbers = #tpu.dot_dimension_numbers<[1], [0], [0], [1], [0, 0, 1, 1], [], []>} : vector<16x32xf32>, vector<32x96xf32>, vector<16x96xf32> -> vector<16x96xf32>
    %c1_108 = arith.constant 1 : index
    %c0_109 = arith.constant 0 : index
    %c0_110 = arith.constant 0 : index
    %289 = vector.load %arg5[%c1_108, %c0_109, %c0_110] : memref<2x1x96xf32, #tpu.memory_space<vmem>>, vector<1x1x96xf32>
    %290 = vector.shape_cast %289 : vector<1x1x96xf32> to vector<1x96xf32>
    %291 = vector.broadcast %290 : vector<1x96xf32> to vector<16x96xf32>
    %292 = arith.addf %288, %291 : vector<16x96xf32>
    %293 = vector.extract_strided_slice %1 {offsets = [0, 0], sizes = [1, 8], strides = [1, 1]} : vector<2x8xf32> to vector<1x8xf32>
    %294 = vector.extract_strided_slice %292 {offsets = [0, 0], sizes = [8, 8], strides = [1, 1]} : vector<16x96xf32> to vector<8x8xf32>
    %295 = vector.extract_strided_slice %292 {offsets = [0, 32], sizes = [8, 8], strides = [1, 1]} : vector<16x96xf32> to vector<8x8xf32>
    %296 = vector.extract_strided_slice %292 {offsets = [0, 64], sizes = [8, 8], strides = [1, 1]} : vector<16x96xf32> to vector<8x8xf32>
    %297 = tpu.transpose %295, [1, 0] : vector<8x8xf32> -> vector<8x8xf32>
    %cst_111 = arith.constant dense<0.000000e+00> : vector<8x8xf32>
    %298 = tpu.matmul %294, %297, %cst_111 {dimension_numbers = #tpu.dot_dimension_numbers<[1], [0], [0], [1], [0, 0, 1, 1], [], []>} : vector<8x8xf32>, vector<8x8xf32>, vector<8x8xf32> -> vector<8x8xf32>
    %cst_112 = arith.constant 0.353553385 : f32
    %299 = vector.broadcast %cst_112 : f32 to vector<8x8xf32>
    %300 = arith.mulf %298, %299 : vector<8x8xf32>
    %301 = vector.broadcast %293 : vector<1x8xf32> to vector<8x8xf32>
    %302 = arith.addf %300, %301 : vector<8x8xf32>
    %cst_113 = arith.constant dense<0xFF800000> : vector<8xf32>
    %303 = vector.multi_reduction <maximumf>, %302, %cst_113 [1] : vector<8x8xf32> to vector<8xf32>
    %304 = vector.shape_cast %303 : vector<8xf32> to vector<8x1xf32>
    %305 = vector.broadcast %304 : vector<8x1xf32> to vector<8x8xf32>
    %306 = arith.subf %302, %305 : vector<8x8xf32>
    %307 = math.exp %306 : vector<8x8xf32>
    %cst_114 = arith.constant dense<0.000000e+00> : vector<8xf32>
    %308 = vector.multi_reduction <add>, %307, %cst_114 [1] : vector<8x8xf32> to vector<8xf32>
    %309 = vector.shape_cast %308 : vector<8xf32> to vector<8x1xf32>
    %310 = tpu.reciprocal %309 {approx = true} : vector<8x1xf32> -> vector<8x1xf32>
    %311 = vector.broadcast %310 : vector<8x1xf32> to vector<8x8xf32>
    %312 = arith.mulf %307, %311 : vector<8x8xf32>
    %cst_115 = arith.constant dense<0.000000e+00> : vector<8x8xf32>
    %313 = tpu.matmul %312, %296, %cst_115 {dimension_numbers = #tpu.dot_dimension_numbers<[1], [0], [0], [1], [0, 0, 1, 1], [], []>} : vector<8x8xf32>, vector<8x8xf32>, vector<8x8xf32> -> vector<8x8xf32>
    %314 = vector.extract_strided_slice %292 {offsets = [0, 8], sizes = [8, 8], strides = [1, 1]} : vector<16x96xf32> to vector<8x8xf32>
    %315 = vector.extract_strided_slice %292 {offsets = [0, 40], sizes = [8, 8], strides = [1, 1]} : vector<16x96xf32> to vector<8x8xf32>
    %316 = vector.extract_strided_slice %292 {offsets = [0, 72], sizes = [8, 8], strides = [1, 1]} : vector<16x96xf32> to vector<8x8xf32>
    %317 = tpu.transpose %315, [1, 0] : vector<8x8xf32> -> vector<8x8xf32>
    %cst_116 = arith.constant dense<0.000000e+00> : vector<8x8xf32>
    %318 = tpu.matmul %314, %317, %cst_116 {dimension_numbers = #tpu.dot_dimension_numbers<[1], [0], [0], [1], [0, 0, 1, 1], [], []>} : vector<8x8xf32>, vector<8x8xf32>, vector<8x8xf32> -> vector<8x8xf32>
    %cst_117 = arith.constant 0.353553385 : f32
    %319 = vector.broadcast %cst_117 : f32 to vector<8x8xf32>
    %320 = arith.mulf %318, %319 : vector<8x8xf32>
    %321 = vector.broadcast %293 : vector<1x8xf32> to vector<8x8xf32>
    %322 = arith.addf %320, %321 : vector<8x8xf32>
    %cst_118 = arith.constant dense<0xFF800000> : vector<8xf32>
    %323 = vector.multi_reduction <maximumf>, %322, %cst_118 [1] : vector<8x8xf32> to vector<8xf32>
    %324 = vector.shape_cast %323 : vector<8xf32> to vector<8x1xf32>
    %325 = vector.broadcast %324 : vector<8x1xf32> to vector<8x8xf32>
    %326 = arith.subf %322, %325 : vector<8x8xf32>
    %327 = math.exp %326 : vector<8x8xf32>
    %cst_119 = arith.constant dense<0.000000e+00> : vector<8xf32>
    %328 = vector.multi_reduction <add>, %327, %cst_119 [1] : vector<8x8xf32> to vector<8xf32>
    %329 = vector.shape_cast %328 : vector<8xf32> to vector<8x1xf32>
    %330 = tpu.reciprocal %329 {approx = true} : vector<8x1xf32> -> vector<8x1xf32>
    %331 = vector.broadcast %330 : vector<8x1xf32> to vector<8x8xf32>
    %332 = arith.mulf %327, %331 : vector<8x8xf32>
    %cst_120 = arith.constant dense<0.000000e+00> : vector<8x8xf32>
    %333 = tpu.matmul %332, %316, %cst_120 {dimension_numbers = #tpu.dot_dimension_numbers<[1], [0], [0], [1], [0, 0, 1, 1], [], []>} : vector<8x8xf32>, vector<8x8xf32>, vector<8x8xf32> -> vector<8x8xf32>
    %334 = vector.extract_strided_slice %292 {offsets = [0, 16], sizes = [8, 8], strides = [1, 1]} : vector<16x96xf32> to vector<8x8xf32>
    %335 = vector.extract_strided_slice %292 {offsets = [0, 48], sizes = [8, 8], strides = [1, 1]} : vector<16x96xf32> to vector<8x8xf32>
    %336 = vector.extract_strided_slice %292 {offsets = [0, 80], sizes = [8, 8], strides = [1, 1]} : vector<16x96xf32> to vector<8x8xf32>
    %337 = tpu.transpose %335, [1, 0] : vector<8x8xf32> -> vector<8x8xf32>
    %cst_121 = arith.constant dense<0.000000e+00> : vector<8x8xf32>
    %338 = tpu.matmul %334, %337, %cst_121 {dimension_numbers = #tpu.dot_dimension_numbers<[1], [0], [0], [1], [0, 0, 1, 1], [], []>} : vector<8x8xf32>, vector<8x8xf32>, vector<8x8xf32> -> vector<8x8xf32>
    %cst_122 = arith.constant 0.353553385 : f32
    %339 = vector.broadcast %cst_122 : f32 to vector<8x8xf32>
    %340 = arith.mulf %338, %339 : vector<8x8xf32>
    %341 = vector.broadcast %293 : vector<1x8xf32> to vector<8x8xf32>
    %342 = arith.addf %340, %341 : vector<8x8xf32>
    %cst_123 = arith.constant dense<0xFF800000> : vector<8xf32>
    %343 = vector.multi_reduction <maximumf>, %342, %cst_123 [1] : vector<8x8xf32> to vector<8xf32>
    %344 = vector.shape_cast %343 : vector<8xf32> to vector<8x1xf32>
    %345 = vector.broadcast %344 : vector<8x1xf32> to vector<8x8xf32>
    %346 = arith.subf %342, %345 : vector<8x8xf32>
    %347 = math.exp %346 : vector<8x8xf32>
    %cst_124 = arith.constant dense<0.000000e+00> : vector<8xf32>
    %348 = vector.multi_reduction <add>, %347, %cst_124 [1] : vector<8x8xf32> to vector<8xf32>
    %349 = vector.shape_cast %348 : vector<8xf32> to vector<8x1xf32>
    %350 = tpu.reciprocal %349 {approx = true} : vector<8x1xf32> -> vector<8x1xf32>
    %351 = vector.broadcast %350 : vector<8x1xf32> to vector<8x8xf32>
    %352 = arith.mulf %347, %351 : vector<8x8xf32>
    %cst_125 = arith.constant dense<0.000000e+00> : vector<8x8xf32>
    %353 = tpu.matmul %352, %336, %cst_125 {dimension_numbers = #tpu.dot_dimension_numbers<[1], [0], [0], [1], [0, 0, 1, 1], [], []>} : vector<8x8xf32>, vector<8x8xf32>, vector<8x8xf32> -> vector<8x8xf32>
    %354 = vector.extract_strided_slice %292 {offsets = [0, 24], sizes = [8, 8], strides = [1, 1]} : vector<16x96xf32> to vector<8x8xf32>
    %355 = vector.extract_strided_slice %292 {offsets = [0, 56], sizes = [8, 8], strides = [1, 1]} : vector<16x96xf32> to vector<8x8xf32>
    %356 = vector.extract_strided_slice %292 {offsets = [0, 88], sizes = [8, 8], strides = [1, 1]} : vector<16x96xf32> to vector<8x8xf32>
    %357 = tpu.transpose %355, [1, 0] : vector<8x8xf32> -> vector<8x8xf32>
    %cst_126 = arith.constant dense<0.000000e+00> : vector<8x8xf32>
    %358 = tpu.matmul %354, %357, %cst_126 {dimension_numbers = #tpu.dot_dimension_numbers<[1], [0], [0], [1], [0, 0, 1, 1], [], []>} : vector<8x8xf32>, vector<8x8xf32>, vector<8x8xf32> -> vector<8x8xf32>
    %cst_127 = arith.constant 0.353553385 : f32
    %359 = vector.broadcast %cst_127 : f32 to vector<8x8xf32>
    %360 = arith.mulf %358, %359 : vector<8x8xf32>
    %361 = vector.broadcast %293 : vector<1x8xf32> to vector<8x8xf32>
    %362 = arith.addf %360, %361 : vector<8x8xf32>
    %cst_128 = arith.constant dense<0xFF800000> : vector<8xf32>
    %363 = vector.multi_reduction <maximumf>, %362, %cst_128 [1] : vector<8x8xf32> to vector<8xf32>
    %364 = vector.shape_cast %363 : vector<8xf32> to vector<8x1xf32>
    %365 = vector.broadcast %364 : vector<8x1xf32> to vector<8x8xf32>
    %366 = arith.subf %362, %365 : vector<8x8xf32>
    %367 = math.exp %366 : vector<8x8xf32>
    %cst_129 = arith.constant dense<0.000000e+00> : vector<8xf32>
    %368 = vector.multi_reduction <add>, %367, %cst_129 [1] : vector<8x8xf32> to vector<8xf32>
    %369 = vector.shape_cast %368 : vector<8xf32> to vector<8x1xf32>
    %370 = tpu.reciprocal %369 {approx = true} : vector<8x1xf32> -> vector<8x1xf32>
    %371 = vector.broadcast %370 : vector<8x1xf32> to vector<8x8xf32>
    %372 = arith.mulf %367, %371 : vector<8x8xf32>
    %cst_130 = arith.constant dense<0.000000e+00> : vector<8x8xf32>
    %373 = tpu.matmul %372, %356, %cst_130 {dimension_numbers = #tpu.dot_dimension_numbers<[1], [0], [0], [1], [0, 0, 1, 1], [], []>} : vector<8x8xf32>, vector<8x8xf32>, vector<8x8xf32> -> vector<8x8xf32>
    %374 = tpu.concatenate %313, %333, %353, %373 in 1 : vector<8x8xf32>, vector<8x8xf32>, vector<8x8xf32>, vector<8x8xf32> -> vector<8x32xf32>
    %375 = vector.extract_strided_slice %1 {offsets = [1, 0], sizes = [1, 8], strides = [1, 1]} : vector<2x8xf32> to vector<1x8xf32>
    %376 = vector.extract_strided_slice %292 {offsets = [8, 0], sizes = [8, 8], strides = [1, 1]} : vector<16x96xf32> to vector<8x8xf32>
    %377 = vector.extract_strided_slice %292 {offsets = [8, 32], sizes = [8, 8], strides = [1, 1]} : vector<16x96xf32> to vector<8x8xf32>
    %378 = vector.extract_strided_slice %292 {offsets = [8, 64], sizes = [8, 8], strides = [1, 1]} : vector<16x96xf32> to vector<8x8xf32>
    %379 = tpu.transpose %377, [1, 0] : vector<8x8xf32> -> vector<8x8xf32>
    %cst_131 = arith.constant dense<0.000000e+00> : vector<8x8xf32>
    %380 = tpu.matmul %376, %379, %cst_131 {dimension_numbers = #tpu.dot_dimension_numbers<[1], [0], [0], [1], [0, 0, 1, 1], [], []>} : vector<8x8xf32>, vector<8x8xf32>, vector<8x8xf32> -> vector<8x8xf32>
    %cst_132 = arith.constant 0.353553385 : f32
    %381 = vector.broadcast %cst_132 : f32 to vector<8x8xf32>
    %382 = arith.mulf %380, %381 : vector<8x8xf32>
    %383 = vector.broadcast %375 : vector<1x8xf32> to vector<8x8xf32>
    %384 = arith.addf %382, %383 : vector<8x8xf32>
    %cst_133 = arith.constant dense<0xFF800000> : vector<8xf32>
    %385 = vector.multi_reduction <maximumf>, %384, %cst_133 [1] : vector<8x8xf32> to vector<8xf32>
    %386 = vector.shape_cast %385 : vector<8xf32> to vector<8x1xf32>
    %387 = vector.broadcast %386 : vector<8x1xf32> to vector<8x8xf32>
    %388 = arith.subf %384, %387 : vector<8x8xf32>
    %389 = math.exp %388 : vector<8x8xf32>
    %cst_134 = arith.constant dense<0.000000e+00> : vector<8xf32>
    %390 = vector.multi_reduction <add>, %389, %cst_134 [1] : vector<8x8xf32> to vector<8xf32>
    %391 = vector.shape_cast %390 : vector<8xf32> to vector<8x1xf32>
    %392 = tpu.reciprocal %391 {approx = true} : vector<8x1xf32> -> vector<8x1xf32>
    %393 = vector.broadcast %392 : vector<8x1xf32> to vector<8x8xf32>
    %394 = arith.mulf %389, %393 : vector<8x8xf32>
    %cst_135 = arith.constant dense<0.000000e+00> : vector<8x8xf32>
    %395 = tpu.matmul %394, %378, %cst_135 {dimension_numbers = #tpu.dot_dimension_numbers<[1], [0], [0], [1], [0, 0, 1, 1], [], []>} : vector<8x8xf32>, vector<8x8xf32>, vector<8x8xf32> -> vector<8x8xf32>
    %396 = vector.extract_strided_slice %292 {offsets = [8, 8], sizes = [8, 8], strides = [1, 1]} : vector<16x96xf32> to vector<8x8xf32>
    %397 = vector.extract_strided_slice %292 {offsets = [8, 40], sizes = [8, 8], strides = [1, 1]} : vector<16x96xf32> to vector<8x8xf32>
    %398 = vector.extract_strided_slice %292 {offsets = [8, 72], sizes = [8, 8], strides = [1, 1]} : vector<16x96xf32> to vector<8x8xf32>
    %399 = tpu.transpose %397, [1, 0] : vector<8x8xf32> -> vector<8x8xf32>
    %cst_136 = arith.constant dense<0.000000e+00> : vector<8x8xf32>
    %400 = tpu.matmul %396, %399, %cst_136 {dimension_numbers = #tpu.dot_dimension_numbers<[1], [0], [0], [1], [0, 0, 1, 1], [], []>} : vector<8x8xf32>, vector<8x8xf32>, vector<8x8xf32> -> vector<8x8xf32>
    %cst_137 = arith.constant 0.353553385 : f32
    %401 = vector.broadcast %cst_137 : f32 to vector<8x8xf32>
    %402 = arith.mulf %400, %401 : vector<8x8xf32>
    %403 = vector.broadcast %375 : vector<1x8xf32> to vector<8x8xf32>
    %404 = arith.addf %402, %403 : vector<8x8xf32>
    %cst_138 = arith.constant dense<0xFF800000> : vector<8xf32>
    %405 = vector.multi_reduction <maximumf>, %404, %cst_138 [1] : vector<8x8xf32> to vector<8xf32>
    %406 = vector.shape_cast %405 : vector<8xf32> to vector<8x1xf32>
    %407 = vector.broadcast %406 : vector<8x1xf32> to vector<8x8xf32>
    %408 = arith.subf %404, %407 : vector<8x8xf32>
    %409 = math.exp %408 : vector<8x8xf32>
    %cst_139 = arith.constant dense<0.000000e+00> : vector<8xf32>
    %410 = vector.multi_reduction <add>, %409, %cst_139 [1] : vector<8x8xf32> to vector<8xf32>
    %411 = vector.shape_cast %410 : vector<8xf32> to vector<8x1xf32>
    %412 = tpu.reciprocal %411 {approx = true} : vector<8x1xf32> -> vector<8x1xf32>
    %413 = vector.broadcast %412 : vector<8x1xf32> to vector<8x8xf32>
    %414 = arith.mulf %409, %413 : vector<8x8xf32>
    %cst_140 = arith.constant dense<0.000000e+00> : vector<8x8xf32>
    %415 = tpu.matmul %414, %398, %cst_140 {dimension_numbers = #tpu.dot_dimension_numbers<[1], [0], [0], [1], [0, 0, 1, 1], [], []>} : vector<8x8xf32>, vector<8x8xf32>, vector<8x8xf32> -> vector<8x8xf32>
    %416 = vector.extract_strided_slice %292 {offsets = [8, 16], sizes = [8, 8], strides = [1, 1]} : vector<16x96xf32> to vector<8x8xf32>
    %417 = vector.extract_strided_slice %292 {offsets = [8, 48], sizes = [8, 8], strides = [1, 1]} : vector<16x96xf32> to vector<8x8xf32>
    %418 = vector.extract_strided_slice %292 {offsets = [8, 80], sizes = [8, 8], strides = [1, 1]} : vector<16x96xf32> to vector<8x8xf32>
    %419 = tpu.transpose %417, [1, 0] : vector<8x8xf32> -> vector<8x8xf32>
    %cst_141 = arith.constant dense<0.000000e+00> : vector<8x8xf32>
    %420 = tpu.matmul %416, %419, %cst_141 {dimension_numbers = #tpu.dot_dimension_numbers<[1], [0], [0], [1], [0, 0, 1, 1], [], []>} : vector<8x8xf32>, vector<8x8xf32>, vector<8x8xf32> -> vector<8x8xf32>
    %cst_142 = arith.constant 0.353553385 : f32
    %421 = vector.broadcast %cst_142 : f32 to vector<8x8xf32>
    %422 = arith.mulf %420, %421 : vector<8x8xf32>
    %423 = vector.broadcast %375 : vector<1x8xf32> to vector<8x8xf32>
    %424 = arith.addf %422, %423 : vector<8x8xf32>
    %cst_143 = arith.constant dense<0xFF800000> : vector<8xf32>
    %425 = vector.multi_reduction <maximumf>, %424, %cst_143 [1] : vector<8x8xf32> to vector<8xf32>
    %426 = vector.shape_cast %425 : vector<8xf32> to vector<8x1xf32>
    %427 = vector.broadcast %426 : vector<8x1xf32> to vector<8x8xf32>
    %428 = arith.subf %424, %427 : vector<8x8xf32>
    %429 = math.exp %428 : vector<8x8xf32>
    %cst_144 = arith.constant dense<0.000000e+00> : vector<8xf32>
    %430 = vector.multi_reduction <add>, %429, %cst_144 [1] : vector<8x8xf32> to vector<8xf32>
    %431 = vector.shape_cast %430 : vector<8xf32> to vector<8x1xf32>
    %432 = tpu.reciprocal %431 {approx = true} : vector<8x1xf32> -> vector<8x1xf32>
    %433 = vector.broadcast %432 : vector<8x1xf32> to vector<8x8xf32>
    %434 = arith.mulf %429, %433 : vector<8x8xf32>
    %cst_145 = arith.constant dense<0.000000e+00> : vector<8x8xf32>
    %435 = tpu.matmul %434, %418, %cst_145 {dimension_numbers = #tpu.dot_dimension_numbers<[1], [0], [0], [1], [0, 0, 1, 1], [], []>} : vector<8x8xf32>, vector<8x8xf32>, vector<8x8xf32> -> vector<8x8xf32>
    %436 = vector.extract_strided_slice %292 {offsets = [8, 24], sizes = [8, 8], strides = [1, 1]} : vector<16x96xf32> to vector<8x8xf32>
    %437 = vector.extract_strided_slice %292 {offsets = [8, 56], sizes = [8, 8], strides = [1, 1]} : vector<16x96xf32> to vector<8x8xf32>
    %438 = vector.extract_strided_slice %292 {offsets = [8, 88], sizes = [8, 8], strides = [1, 1]} : vector<16x96xf32> to vector<8x8xf32>
    %439 = tpu.transpose %437, [1, 0] : vector<8x8xf32> -> vector<8x8xf32>
    %cst_146 = arith.constant dense<0.000000e+00> : vector<8x8xf32>
    %440 = tpu.matmul %436, %439, %cst_146 {dimension_numbers = #tpu.dot_dimension_numbers<[1], [0], [0], [1], [0, 0, 1, 1], [], []>} : vector<8x8xf32>, vector<8x8xf32>, vector<8x8xf32> -> vector<8x8xf32>
    %cst_147 = arith.constant 0.353553385 : f32
    %441 = vector.broadcast %cst_147 : f32 to vector<8x8xf32>
    %442 = arith.mulf %440, %441 : vector<8x8xf32>
    %443 = vector.broadcast %375 : vector<1x8xf32> to vector<8x8xf32>
    %444 = arith.addf %442, %443 : vector<8x8xf32>
    %cst_148 = arith.constant dense<0xFF800000> : vector<8xf32>
    %445 = vector.multi_reduction <maximumf>, %444, %cst_148 [1] : vector<8x8xf32> to vector<8xf32>
    %446 = vector.shape_cast %445 : vector<8xf32> to vector<8x1xf32>
    %447 = vector.broadcast %446 : vector<8x1xf32> to vector<8x8xf32>
    %448 = arith.subf %444, %447 : vector<8x8xf32>
    %449 = math.exp %448 : vector<8x8xf32>
    %cst_149 = arith.constant dense<0.000000e+00> : vector<8xf32>
    %450 = vector.multi_reduction <add>, %449, %cst_149 [1] : vector<8x8xf32> to vector<8xf32>
    %451 = vector.shape_cast %450 : vector<8xf32> to vector<8x1xf32>
    %452 = tpu.reciprocal %451 {approx = true} : vector<8x1xf32> -> vector<8x1xf32>
    %453 = vector.broadcast %452 : vector<8x1xf32> to vector<8x8xf32>
    %454 = arith.mulf %449, %453 : vector<8x8xf32>
    %cst_150 = arith.constant dense<0.000000e+00> : vector<8x8xf32>
    %455 = tpu.matmul %454, %438, %cst_150 {dimension_numbers = #tpu.dot_dimension_numbers<[1], [0], [0], [1], [0, 0, 1, 1], [], []>} : vector<8x8xf32>, vector<8x8xf32>, vector<8x8xf32> -> vector<8x8xf32>
    %456 = tpu.concatenate %395, %415, %435, %455 in 1 : vector<8x8xf32>, vector<8x8xf32>, vector<8x8xf32>, vector<8x8xf32> -> vector<8x32xf32>
    %457 = tpu.concatenate %374, %456 in 0 : vector<8x32xf32>, vector<8x32xf32> -> vector<16x32xf32>
    %c1_151 = arith.constant 1 : index
    %c0_152 = arith.constant 0 : index
    %c0_153 = arith.constant 0 : index
    %458 = vector.load %arg6[%c1_151, %c0_152, %c0_153] : memref<2x32x32xf32, #tpu.memory_space<vmem>>, vector<1x32x32xf32>
    %459 = vector.shape_cast %458 : vector<1x32x32xf32> to vector<32x32xf32>
    %cst_154 = arith.constant dense<0.000000e+00> : vector<16x32xf32>
    %460 = tpu.matmul %457, %459, %cst_154 {dimension_numbers = #tpu.dot_dimension_numbers<[1], [0], [0], [1], [0, 0, 1, 1], [], []>} : vector<16x32xf32>, vector<32x32xf32>, vector<16x32xf32> -> vector<16x32xf32>
    %c1_155 = arith.constant 1 : index
    %c0_156 = arith.constant 0 : index
    %c0_157 = arith.constant 0 : index
    %461 = vector.load %arg7[%c1_155, %c0_156, %c0_157] : memref<2x1x32xf32, #tpu.memory_space<vmem>>, vector<1x1x32xf32>
    %462 = vector.shape_cast %461 : vector<1x1x32xf32> to vector<1x32xf32>
    %463 = vector.broadcast %462 : vector<1x32xf32> to vector<16x32xf32>
    %464 = arith.addf %460, %463 : vector<16x32xf32>
    %465 = arith.addf %285, %464 : vector<16x32xf32>
    %c1_158 = arith.constant 1 : index
    %c0_159 = arith.constant 0 : index
    %c0_160 = arith.constant 0 : index
    %466 = vector.load %arg8[%c1_158, %c0_159, %c0_160] : memref<2x1x32xf32, #tpu.memory_space<vmem>>, vector<1x1x32xf32>
    %467 = vector.shape_cast %466 : vector<1x1x32xf32> to vector<1x32xf32>
    %c1_161 = arith.constant 1 : index
    %c0_162 = arith.constant 0 : index
    %c0_163 = arith.constant 0 : index
    %468 = vector.load %arg9[%c1_161, %c0_162, %c0_163] : memref<2x1x32xf32, #tpu.memory_space<vmem>>, vector<1x1x32xf32>
    %469 = vector.shape_cast %468 : vector<1x1x32xf32> to vector<1x32xf32>
    %cst_164 = arith.constant dense<0.000000e+00> : vector<16xf32>
    %470 = vector.multi_reduction <add>, %465, %cst_164 [1] : vector<16x32xf32> to vector<16xf32>
    %471 = vector.shape_cast %470 : vector<16xf32> to vector<16x1xf32>
    %cst_165 = arith.constant 3.200000e+01 : f32
    %472 = vector.broadcast %cst_165 : f32 to vector<16x1xf32>
    %473 = arith.divf %471, %472 : vector<16x1xf32>
    %474 = vector.broadcast %473 : vector<16x1xf32> to vector<16x32xf32>
    %475 = arith.subf %465, %474 : vector<16x32xf32>
    %476 = arith.mulf %475, %475 : vector<16x32xf32>
    %cst_166 = arith.constant dense<0.000000e+00> : vector<16xf32>
    %477 = vector.multi_reduction <add>, %476, %cst_166 [1] : vector<16x32xf32> to vector<16xf32>
    %478 = vector.shape_cast %477 : vector<16xf32> to vector<16x1xf32>
    %cst_167 = arith.constant 3.200000e+01 : f32
    %479 = vector.broadcast %cst_167 : f32 to vector<16x1xf32>
    %480 = arith.divf %478, %479 : vector<16x1xf32>
    %481 = vector.broadcast %473 : vector<16x1xf32> to vector<16x32xf32>
    %482 = arith.subf %465, %481 : vector<16x32xf32>
    %cst_168 = arith.constant 9.99999996E-13 : f32
    %483 = vector.broadcast %cst_168 : f32 to vector<16x1xf32>
    %484 = arith.addf %480, %483 : vector<16x1xf32>
    %485 = math.rsqrt %484 : vector<16x1xf32>
    %486 = vector.broadcast %485 : vector<16x1xf32> to vector<16x32xf32>
    %487 = arith.mulf %482, %486 : vector<16x32xf32>
    %488 = vector.broadcast %467 : vector<1x32xf32> to vector<16x32xf32>
    %489 = arith.mulf %487, %488 : vector<16x32xf32>
    %490 = vector.broadcast %469 : vector<1x32xf32> to vector<16x32xf32>
    %491 = arith.addf %489, %490 : vector<16x32xf32>
    %c1_169 = arith.constant 1 : index
    %c0_170 = arith.constant 0 : index
    %c0_171 = arith.constant 0 : index
    %492 = vector.load %arg10[%c1_169, %c0_170, %c0_171] : memref<2x32x64xf32, #tpu.memory_space<vmem>>, vector<1x32x64xf32>
    %493 = vector.shape_cast %492 : vector<1x32x64xf32> to vector<32x64xf32>
    %cst_172 = arith.constant dense<0.000000e+00> : vector<16x64xf32>
    %494 = tpu.matmul %491, %493, %cst_172 {dimension_numbers = #tpu.dot_dimension_numbers<[1], [0], [0], [1], [0, 0, 1, 1], [], []>} : vector<16x32xf32>, vector<32x64xf32>, vector<16x64xf32> -> vector<16x64xf32>
    %c1_173 = arith.constant 1 : index
    %c0_174 = arith.constant 0 : index
    %c0_175 = arith.constant 0 : index
    %495 = vector.load %arg11[%c1_173, %c0_174, %c0_175] : memref<2x1x64xf32, #tpu.memory_space<vmem>>, vector<1x1x64xf32>
    %496 = vector.shape_cast %495 : vector<1x1x64xf32> to vector<1x64xf32>
    %497 = vector.broadcast %496 : vector<1x64xf32> to vector<16x64xf32>
    %498 = arith.addf %494, %497 : vector<16x64xf32>
    %499 = arith.mulf %498, %498 : vector<16x64xf32>
    %500 = arith.mulf %498, %499 : vector<16x64xf32>
    %cst_176 = arith.constant 4.471500e-02 : f32
    %501 = vector.broadcast %cst_176 : f32 to vector<16x64xf32>
    %502 = arith.mulf %501, %500 : vector<16x64xf32>
    %503 = arith.addf %498, %502 : vector<16x64xf32>
    %cst_177 = arith.constant 0.797884583 : f32
    %504 = vector.broadcast %cst_177 : f32 to vector<16x64xf32>
    %505 = arith.mulf %504, %503 : vector<16x64xf32>
    %506 = math.tanh %505 : vector<16x64xf32>
    %cst_178 = arith.constant 1.000000e+00 : f32
    %507 = vector.broadcast %cst_178 : f32 to vector<16x64xf32>
    %508 = arith.addf %507, %506 : vector<16x64xf32>
    %cst_179 = arith.constant 5.000000e-01 : f32
    %509 = vector.broadcast %cst_179 : f32 to vector<16x64xf32>
    %510 = arith.mulf %509, %508 : vector<16x64xf32>
    %511 = arith.mulf %498, %510 : vector<16x64xf32>
    %c1_180 = arith.constant 1 : index
    %c0_181 = arith.constant 0 : index
    %c0_182 = arith.constant 0 : index
    %512 = vector.load %arg12[%c1_180, %c0_181, %c0_182] : memref<2x64x32xf32, #tpu.memory_space<vmem>>, vector<1x64x32xf32>
    %513 = vector.shape_cast %512 : vector<1x64x32xf32> to vector<64x32xf32>
    %cst_183 = arith.constant dense<0.000000e+00> : vector<16x32xf32>
    %514 = tpu.matmul %511, %513, %cst_183 {dimension_numbers = #tpu.dot_dimension_numbers<[1], [0], [0], [1], [0, 0, 1, 1], [], []>} : vector<16x64xf32>, vector<64x32xf32>, vector<16x32xf32> -> vector<16x32xf32>
    %c1_184 = arith.constant 1 : index
    %c0_185 = arith.constant 0 : index
    %c0_186 = arith.constant 0 : index
    %515 = vector.load %arg13[%c1_184, %c0_185, %c0_186] : memref<2x1x32xf32, #tpu.memory_space<vmem>>, vector<1x1x32xf32>
    %516 = vector.shape_cast %515 : vector<1x1x32xf32> to vector<1x32xf32>
    %517 = vector.broadcast %516 : vector<1x32xf32> to vector<16x32xf32>
    %518 = arith.addf %514, %517 : vector<16x32xf32>
    %519 = arith.addf %491, %518 : vector<16x32xf32>
    %c1_187 = arith.constant 1 : index
    %c0_188 = arith.constant 0 : index
    %c0_189 = arith.constant 0 : index
    %520 = vector.load %arg14[%c1_187, %c0_188, %c0_189] : memref<2x1x32xf32, #tpu.memory_space<vmem>>, vector<1x1x32xf32>
    %521 = vector.shape_cast %520 : vector<1x1x32xf32> to vector<1x32xf32>
    %c1_190 = arith.constant 1 : index
    %c0_191 = arith.constant 0 : index
    %c0_192 = arith.constant 0 : index
    %522 = vector.load %arg15[%c1_190, %c0_191, %c0_192] : memref<2x1x32xf32, #tpu.memory_space<vmem>>, vector<1x1x32xf32>
    %523 = vector.shape_cast %522 : vector<1x1x32xf32> to vector<1x32xf32>
    %cst_193 = arith.constant dense<0.000000e+00> : vector<16xf32>
    %524 = vector.multi_reduction <add>, %519, %cst_193 [1] : vector<16x32xf32> to vector<16xf32>
    %525 = vector.shape_cast %524 : vector<16xf32> to vector<16x1xf32>
    %cst_194 = arith.constant 3.200000e+01 : f32
    %526 = vector.broadcast %cst_194 : f32 to vector<16x1xf32>
    %527 = arith.divf %525, %526 : vector<16x1xf32>
    %528 = vector.broadcast %527 : vector<16x1xf32> to vector<16x32xf32>
    %529 = arith.subf %519, %528 : vector<16x32xf32>
    %530 = arith.mulf %529, %529 : vector<16x32xf32>
    %cst_195 = arith.constant dense<0.000000e+00> : vector<16xf32>
    %531 = vector.multi_reduction <add>, %530, %cst_195 [1] : vector<16x32xf32> to vector<16xf32>
    %532 = vector.shape_cast %531 : vector<16xf32> to vector<16x1xf32>
    %cst_196 = arith.constant 3.200000e+01 : f32
    %533 = vector.broadcast %cst_196 : f32 to vector<16x1xf32>
    %534 = arith.divf %532, %533 : vector<16x1xf32>
    %535 = vector.broadcast %527 : vector<16x1xf32> to vector<16x32xf32>
    %536 = arith.subf %519, %535 : vector<16x32xf32>
    %cst_197 = arith.constant 9.99999996E-13 : f32
    %537 = vector.broadcast %cst_197 : f32 to vector<16x1xf32>
    %538 = arith.addf %534, %537 : vector<16x1xf32>
    %539 = math.rsqrt %538 : vector<16x1xf32>
    %540 = vector.broadcast %539 : vector<16x1xf32> to vector<16x32xf32>
    %541 = arith.mulf %536, %540 : vector<16x32xf32>
    %542 = vector.broadcast %521 : vector<1x32xf32> to vector<16x32xf32>
    %543 = arith.mulf %541, %542 : vector<16x32xf32>
    %544 = vector.broadcast %523 : vector<1x32xf32> to vector<16x32xf32>
    %545 = arith.addf %543, %544 : vector<16x32xf32>
    %c0_198 = arith.constant 0 : index
    %c0_199 = arith.constant 0 : index
    %546 = vector.load %arg16[%c0_198, %c0_199] : memref<32x32xf32, #tpu.memory_space<vmem>>, vector<32x32xf32>
    %cst_200 = arith.constant dense<0.000000e+00> : vector<16x32xf32>
    %547 = tpu.matmul %545, %546, %cst_200 {dimension_numbers = #tpu.dot_dimension_numbers<[1], [0], [0], [1], [0, 0, 1, 1], [], []>} : vector<16x32xf32>, vector<32x32xf32>, vector<16x32xf32> -> vector<16x32xf32>
    %c0_201 = arith.constant 0 : index
    %c0_202 = arith.constant 0 : index
    %548 = vector.load %arg17[%c0_201, %c0_202] : memref<1x32xf32, #tpu.memory_space<vmem>>, vector<1x32xf32>
    %549 = vector.broadcast %548 : vector<1x32xf32> to vector<16x32xf32>
    %550 = arith.addf %547, %549 : vector<16x32xf32>
    %551 = math.tanh %550 : vector<16x32xf32>
    %c0_203 = arith.constant 0 : index
    %c0_204 = arith.constant 0 : index
    %552 = vector.load %arg18[%c0_203, %c0_204] : memref<32x128xf32, #tpu.memory_space<vmem>>, vector<32x128xf32>
    %cst_205 = arith.constant dense<0.000000e+00> : vector<16x128xf32>
    %553 = tpu.matmul %551, %552, %cst_205 {dimension_numbers = #tpu.dot_dimension_numbers<[1], [0], [0], [1], [0, 0, 1, 1], [], []>} : vector<16x32xf32>, vector<32x128xf32>, vector<16x128xf32> -> vector<16x128xf32>
    %c0_206 = arith.constant 0 : index
    %c0_207 = arith.constant 0 : index
    %554 = vector.load %arg19[%c0_206, %c0_207] : memref<1x128xf32, #tpu.memory_space<vmem>>, vector<1x128xf32>
    %555 = vector.broadcast %554 : vector<1x128xf32> to vector<16x128xf32>
    %556 = arith.addf %553, %555 : vector<16x128xf32>
    %c0_208 = arith.constant 0 : index
    %c0_209 = arith.constant 0 : index
    %557 = vector.load %arg20[%c0_208, %c0_209] : memref<16x128xf32, #tpu.memory_space<vmem>>, vector<16x128xf32>
    tpu.vector_store %arg20[%c0_208, %c0_209], %556 {strides = array<i32>} : memref<16x128xf32, #tpu.memory_space<vmem>>, vector<16x128xf32>,
    return
  }
}

</mosaic_0001>

<llo_original>
// kernel: tpu_custom_call.1
$region0: #{tpu_custom_call.1}
  #allocation0 [shape = 'u32[]', space=smem, size = 0x4, offset = 0x4, fixed_abs, tag = 'smem constant byte address 0x4 - core index']
  #allocation1 [shape = 'u32[144,128]{1,0:T(1,128)}', space=vmem, size = 0x12000, scoped, tag = 'internal scratch']
  %s0 = inlined_call_operand.hbm [shape: f32[16,32], index: 0, kind: input, shape index: {}]
  %s1 = inlined_call_operand.hbm [shape: f32[2,8], index: 1, kind: input, shape index: {}]
  %s2 = inlined_call_operand.hbm [shape: f32[1,32], index: 2, kind: input, shape index: {}]
  %s3 = inlined_call_operand.hbm [shape: f32[1,32], index: 3, kind: input, shape index: {}]
  %s4 = inlined_call_operand.vmem [shape: f32[2,32,96], index: 4, kind: input, shape index: {}]
  %s5 = inlined_call_operand.hbm [shape: f32[2,1,96], index: 5, kind: input, shape index: {}]
  %s6 = inlined_call_operand.vmem [shape: f32[2,32,32], index: 6, kind: input, shape index: {}]
  %s7 = inlined_call_operand.hbm [shape: f32[2,1,32], index: 7, kind: input, shape index: {}]
  %s8 = inlined_call_operand.hbm [shape: f32[2,1,32], index: 8, kind: input, shape index: {}]
  %s9 = inlined_call_operand.hbm [shape: f32[2,1,32], index: 9, kind: input, shape index: {}]
  %s10 = inlined_call_operand.vmem [shape: f32[2,32,64], index: 10, kind: input, shape index: {}]
  %s11 = inlined_call_operand.hbm [shape: f32[2,1,64], index: 11, kind: input, shape index: {}]
  %s12 = inlined_call_operand.vmem [shape: f32[2,64,32], index: 12, kind: input, shape index: {}]
  %s13 = inlined_call_operand.hbm [shape: f32[2,1,32], index: 13, kind: input, shape index: {}]
  %s14 = inlined_call_operand.hbm [shape: f32[2,1,32], index: 14, kind: input, shape index: {}]
  %s15 = inlined_call_operand.hbm [shape: f32[2,1,32], index: 15, kind: input, shape index: {}]
  %s16 = inlined_call_operand.vmem [shape: f32[32,32], index: 16, kind: input, shape index: {}]
  %s17 = inlined_call_operand.hbm [shape: f32[1,32], index: 17, kind: input, shape index: {}]
  %s18 = inlined_call_operand.vmem [shape: f32[32,128], index: 18, kind: input, shape index: {}]
  %s19 = inlined_call_operand.vmem [shape: f32[1,128], index: 19, kind: input, shape index: {}]
  %s20 = inlined_call_operand.hbm [shape: f32[16,128], index: 20, kind: output, shape index: {}]
  %s21 = sld [smem:[#allocation0]]
  $region142: #{tpu_custom_call.1} parent=0
    _
  %s23 = ssub.s32 1, %s21
  %s24 = scalar_select 0, %s23, %s21
  $region1: #{tpu_custom_call.1} parent=0
    #allocation2 [shape = 'u8[8192]{0}', space=vmem, size = 0x2000, scoped, tag = 'input window, operand 0, single buffered']
    #allocation3 [shape = 's32[1]{0}', space=sflag, size = 0x4, scoped, tag = 'scoped memory for tpu_custom_call.1']
    #allocation4 [shape = 's32[1]{0}', space=sflag, size = 0x4, scoped, tag = 'scoped memory for tpu_custom_call.1']
    #allocation5 [shape = 'u8[1024]{0}', space=vmem, size = 0x400, scoped, tag = 'input window, operand 1, single buffered']
    #allocation6 [shape = 's32[1]{0}', space=sflag, size = 0x4, scoped, tag = 'scoped memory for tpu_custom_call.1']
    #allocation7 [shape = 'u8[512]{0}', space=vmem, size = 0x400, scoped, tag = 'input window, operand 2, single buffered']
    #allocation8 [shape = 'u8[512]{0}', space=vmem, size = 0x400, scoped, tag = 'input window, operand 3, single buffered']
    #allocation9 [shape = 's32[1]{0}', space=sflag, size = 0x4, scoped, tag = 'scoped memory for tpu_custom_call.1']
    #allocation10 [shape = 'u8[1024]{0}', space=vmem, size = 0x400, scoped, tag = 'input window, operand 5, single buffered']
    #allocation11 [shape = 'u8[1024]{0}', space=vmem, size = 0x400, scoped, tag = 'input window, operand 7, single buffered']
    #allocation12 [shape = 's32[1]{0}', space=sflag, size = 0x4, scoped, tag = 'scoped memory for tpu_custom_call.1']
    #allocation13 [shape = 'u8[1024]{0}', space=vmem, size = 0x400, scoped, tag = 'input window, operand 8, single buffered']
    #allocation14 [shape = 'u8[1024]{0}', space=vmem, size = 0x400, scoped, tag = 'input window, operand 9, single buffered']
    #allocation15 [shape = 's32[1]{0}', space=sflag, size = 0x4, scoped, tag = 'scoped memory for tpu_custom_call.1']
    #allocation16 [shape = 'u8[1024]{0}', space=vmem, size = 0x400, scoped, tag = 'input window, operand 11, single buffered']
    #allocation17 [shape = 'u8[1024]{0}', space=vmem, size = 0x400, scoped, tag = 'input window, operand 13, single buffered']
    #allocation18 [shape = 's32[1]{0}', space=sflag, size = 0x4, scoped, tag = 'scoped memory for tpu_custom_call.1']
    #allocation19 [shape = 'u8[1024]{0}', space=vmem, size = 0x400, scoped, tag = 'input window, operand 14, single buffered']
    #allocation20 [shape = 'u8[1024]{0}', space=vmem, size = 0x400, scoped, tag = 'input window, operand 15, single buffered']
    #allocation21 [shape = 's32[1]{0}', space=sflag, size = 0x4, scoped, tag = 'scoped memory for tpu_custom_call.1']
    #allocation22 [shape = 'u8[512]{0}', space=vmem, size = 0x400, scoped, tag = 'input window, operand 17, single buffered']
    #allocation23 [shape = 'u8[8192]{0}', space=vmem, size = 0x2000, scoped, tag = 'output window, operand 0, single buffered']
    %25 = vsyncpa [#allocation3], 0
    %26 = vsyncpa [#allocation6], 0
    %27 = vsyncpa [#allocation9], 0
    %28 = vsyncpa [#allocation12], 0
    %29 = vsyncpa [#allocation15], 0
    %30 = vsyncpa [#allocation18], 0
    %31 = vsyncpa [#allocation21], 0
    %32 = vsyncpa [#allocation4], 0
    // Predicated region
    $region2: #{tpu_custom_call.1} parent=1 // pred_check
      _
    $region3: #{tpu_custom_call.1} parent=1 // pred_check_branch
      %34 = sbr.rel (0) target = $region5
    $region4: #{tpu_custom_call.1} parent=1 // pred_region
      %s36 = ssub.s32 256, 256
      %37 = vsyncadd [#allocation3], %s36
      %s38 = sshll.u32 [#allocation2], 4
      %s39 = int_to_ptr.vmem [resolvable:$true] %s38
      %44 = dma.hbm_to_vmem [thread:$0]  %s0, 256, %s39, [#allocation3], 128, 128, 8
    $region5: #{tpu_custom_call.1} parent=1 // pred_fallthru
      _
    // Predicated region
    $region6: #{tpu_custom_call.1} parent=1 // pred_check
      _
    $region7: #{tpu_custom_call.1} parent=1 // pred_check_branch
      %46 = sbr.rel (0) target = $region9
    $region8: #{tpu_custom_call.1} parent=1 // pred_region
      %s48 = ssub.s32 32, 32
      %49 = vsyncadd [#allocation6], %s48
      %s51 = sshll.u32 [#allocation5], 4
      %s52 = int_to_ptr.vmem [resolvable:$true] %s51
      %54 = dma.hbm_to_vmem [thread:$0]  %s1, 32, %s52, [#allocation6]
    $region9: #{tpu_custom_call.1} parent=1 // pred_fallthru
      _
    // Predicated region
    $region10: #{tpu_custom_call.1} parent=1 // pred_check
      _
    $region11: #{tpu_custom_call.1} parent=1 // pred_check_branch
      %56 = sbr.rel (0) target = $region13
    $region12: #{tpu_custom_call.1} parent=1 // pred_region
      %s58 = ssub.s32 16, 16
      %59 = vsyncadd [#allocation6], %s58
      %s61 = sshll.u32 [#allocation7], 4
      %s62 = int_to_ptr.vmem [resolvable:$true] %s61
      %64 = dma.hbm_to_vmem [thread:$0]  %s2, 16, %s62, [#allocation6]
    $region13: #{tpu_custom_call.1} parent=1 // pred_fallthru
      _
    // Predicated region
    $region14: #{tpu_custom_call.1} parent=1 // pred_check
      _
    $region15: #{tpu_custom_call.1} parent=1 // pred_check_branch
      %66 = sbr.rel (0) target = $region17
    $region16: #{tpu_custom_call.1} parent=1 // pred_region
      %s68 = ssub.s32 16, 16
      %69 = vsyncadd [#allocation9], %s68
      %s71 = sshll.u32 [#allocation8], 4
      %s72 = int_to_ptr.vmem [resolvable:$true] %s71
      %74 = dma.hbm_to_vmem [thread:$0]  %s3, 16, %s72, [#allocation9]
    $region17: #{tpu_custom_call.1} parent=1 // pred_fallthru
      _
    // Predicated region
    $region18: #{tpu_custom_call.1} parent=1 // pred_check
      _
    $region19: #{tpu_custom_call.1} parent=1 // pred_check_branch
      %76 = sbr.rel (0) target = $region21
    $region20: #{tpu_custom_call.1} parent=1 // pred_region
      _
    $region21: #{tpu_custom_call.1} parent=1 // pred_fallthru
      _
    // Predicated region
    $region22: #{tpu_custom_call.1} parent=1 // pred_check
      _
    $region23: #{tpu_custom_call.1} parent=1 // pred_check_branch
      %78 = sbr.rel (0) target = $region25
    $region24: #{tpu_custom_call.1} parent=1 // pred_region
      %s80 = ssub.s32 32, 32
      %81 = vsyncadd [#allocation9], %s80
      %s82 = sshll.u32 [#allocation10], 4
      %s83 = int_to_ptr.vmem [resolvable:$true] %s82
      %88 = dma.hbm_to_vmem [thread:$0]  %s5, 32, %s83, [#allocation9], 16, 16, 1
    $region25: #{tpu_custom_call.1} parent=1 // pred_fallthru
      _
    // Predicated region
    $region26: #{tpu_custom_call.1} parent=1 // pred_check
      _
    $region27: #{tpu_custom_call.1} parent=1 // pred_check_branch
      %90 = sbr.rel (0) target = $region29
    $region28: #{tpu_custom_call.1} parent=1 // pred_region
      _
    $region29: #{tpu_custom_call.1} parent=1 // pred_fallthru
      _
    // Predicated region
    $region30: #{tpu_custom_call.1} parent=1 // pred_check
      _
    $region31: #{tpu_custom_call.1} parent=1 // pred_check_branch
      %92 = sbr.rel (0) target = $region33
    $region32: #{tpu_custom_call.1} parent=1 // pred_region
      %s94 = ssub.s32 32, 32
      %95 = vsyncadd [#allocation12], %s94
      %s96 = sshll.u32 [#allocation11], 4
      %s97 = int_to_ptr.vmem [resolvable:$true] %s96
      %102 = dma.hbm_to_vmem [thread:$0]  %s7, 32, %s97, [#allocation12], 16, 16, 1
    $region33: #{tpu_custom_call.1} parent=1 // pred_fallthru
      _
    // Predicated region
    $region34: #{tpu_custom_call.1} parent=1 // pred_check
      _
    $region35: #{tpu_custom_call.1} parent=1 // pred_check_branch
      %104 = sbr.rel (0) target = $region37
    $region36: #{tpu_custom_call.1} parent=1 // pred_region
      %s106 = ssub.s32 32, 32
      %107 = vsyncadd [#allocation12], %s106
      %s108 = sshll.u32 [#allocation13], 4
      %s109 = int_to_ptr.vmem [resolvable:$true] %s108
      %114 = dma.hbm_to_vmem [thread:$0]  %s8, 32, %s109, [#allocation12], 16, 16, 1
    $region37: #{tpu_custom_call.1} parent=1 // pred_fallthru
      _
    // Predicated region
    $region38: #{tpu_custom_call.1} parent=1 // pred_check
      _
    $region39: #{tpu_custom_call.1} parent=1 // pred_check_branch
      %116 = sbr.rel (0) target = $region41
    $region40: #{tpu_custom_call.1} parent=1 // pred_region
      %s118 = ssub.s32 32, 32
      %119 = vsyncadd [#allocation15], %s118
      %s120 = sshll.u32 [#allocation14], 4
      %s121 = int_to_ptr.vmem [resolvable:$true] %s120
      %126 = dma.hbm_to_vmem [thread:$0]  %s9, 32, %s121, [#allocation15], 16, 16, 1
    $region41: #{tpu_custom_call.1} parent=1 // pred_fallthru
      _
    // Predicated region
    $region42: #{tpu_custom_call.1} parent=1 // pred_check
      _
    $region43: #{tpu_custom_call.1} parent=1 // pred_check_branch
      %128 = sbr.rel (0) target = $region45
    $region44: #{tpu_custom_call.1} parent=1 // pred_region
      _
    $region45: #{tpu_custom_call.1} parent=1 // pred_fallthru
      _
    // Predicated region
    $region46: #{tpu_custom_call.1} parent=1 // pred_check
      _
    $region47: #{tpu_custom_call.1} parent=1 // pred_check_branch
      %130 = sbr.rel (0) target = $region49
    $region48: #{tpu_custom_call.1} parent=1 // pred_region
      %s132 = ssub.s32 32, 32
      %133 = vsyncadd [#allocation15], %s132
      %s134 = sshll.u32 [#allocation16], 4
      %s135 = int_to_ptr.vmem [resolvable:$true] %s134
      %140 = dma.hbm_to_vmem [thread:$0]  %s11, 32, %s135, [#allocation15], 16, 16, 1
    $region49: #{tpu_custom_call.1} parent=1 // pred_fallthru
      _
    // Predicated region
    $region50: #{tpu_custom_call.1} parent=1 // pred_check
      _
    $region51: #{tpu_custom_call.1} parent=1 // pred_check_branch
      %142 = sbr.rel (0) target = $region53
    $region52: #{tpu_custom_call.1} parent=1 // pred_region
      _
    $region53: #{tpu_custom_call.1} parent=1 // pred_fallthru
      _
    // Predicated region
    $region54: #{tpu_custom_call.1} parent=1 // pred_check
      _
    $region55: #{tpu_custom_call.1} parent=1 // pred_check_branch
      %144 = sbr.rel (0) target = $region57
    $region56: #{tpu_custom_call.1} parent=1 // pred_region
      %s146 = ssub.s32 32, 32
      %147 = vsyncadd [#allocation18], %s146
      %s148 = sshll.u32 [#allocation17], 4
      %s149 = int_to_ptr.vmem [resolvable:$true] %s148
      %154 = dma.hbm_to_vmem [thread:$0]  %s13, 32, %s149, [#allocation18], 16, 16, 1
    $region57: #{tpu_custom_call.1} parent=1 // pred_fallthru
      _
    // Predicated region
    $region58: #{tpu_custom_call.1} parent=1 // pred_check
      _
    $region59: #{tpu_custom_call.1} parent=1 // pred_check_branch
      %156 = sbr.rel (0) target = $region61
    $region60: #{tpu_custom_call.1} parent=1 // pred_region
      %s158 = ssub.s32 32, 32
      %159 = vsyncadd [#allocation18], %s158
      %s160 = sshll.u32 [#allocation19], 4
      %s161 = int_to_ptr.vmem [resolvable:$true] %s160
      %166 = dma.hbm_to_vmem [thread:$0]  %s14, 32, %s161, [#allocation18], 16, 16, 1
    $region61: #{tpu_custom_call.1} parent=1 // pred_fallthru
      _
    // Predicated region
    $region62: #{tpu_custom_call.1} parent=1 // pred_check
      _
    $region63: #{tpu_custom_call.1} parent=1 // pred_check_branch
      %168 = sbr.rel (0) target = $region65
    $region64: #{tpu_custom_call.1} parent=1 // pred_region
      %s170 = ssub.s32 32, 32
      %171 = vsyncadd [#allocation21], %s170
      %s172 = sshll.u32 [#allocation20], 4
      %s173 = int_to_ptr.vmem [resolvable:$true] %s172
      %178 = dma.hbm_to_vmem [thread:$0]  %s15, 32, %s173, [#allocation21], 16, 16, 1
    $region65: #{tpu_custom_call.1} parent=1 // pred_fallthru
      _
    // Predicated region
    $region66: #{tpu_custom_call.1} parent=1 // pred_check
      _
    $region67: #{tpu_custom_call.1} parent=1 // pred_check_branch
      %180 = sbr.rel (0) target = $region69
    $region68: #{tpu_custom_call.1} parent=1 // pred_region
      _
    $region69: #{tpu_custom_call.1} parent=1 // pred_fallthru
      _
    // Predicated region
    $region70: #{tpu_custom_call.1} parent=1 // pred_check
      _
    $region71: #{tpu_custom_call.1} parent=1 // pred_check_branch
      %182 = sbr.rel (0) target = $region73
    $region72: #{tpu_custom_call.1} parent=1 // pred_region
      %s184 = ssub.s32 16, 16
      %185 = vsyncadd [#allocation21], %s184
      %s187 = sshll.u32 [#allocation22], 4
      %s188 = int_to_ptr.vmem [resolvable:$true] %s187
      %190 = dma.hbm_to_vmem [thread:$0]  %s17, 16, %s188, [#allocation21]
    $region73: #{tpu_custom_call.1} parent=1 // pred_fallthru
      _
    // Predicated region
    $region74: #{tpu_custom_call.1} parent=1 // pred_check
      _
    $region75: #{tpu_custom_call.1} parent=1 // pred_check_branch
      %192 = sbr.rel (0) target = $region77
    $region76: #{tpu_custom_call.1} parent=1 // pred_region
      _
    $region77: #{tpu_custom_call.1} parent=1 // pred_fallthru
      _
    // Predicated region
    $region78: #{tpu_custom_call.1} parent=1 // pred_check
      _
    $region79: #{tpu_custom_call.1} parent=1 // pred_check_branch
      %194 = sbr.rel (0) target = $region81
    $region80: #{tpu_custom_call.1} parent=1 // pred_region
      _
    $region81: #{tpu_custom_call.1} parent=1 // pred_fallthru
      _
    // Predicated region
    $region82: #{tpu_custom_call.1} parent=1 // pred_check
      _
    $region83: #{tpu_custom_call.1} parent=1 // pred_check_branch
      %196 = sbr.rel (0) target = $region85
    $region84: #{tpu_custom_call.1} parent=1 // pred_region
      %197 = dma.done [#allocation3], 256
    $region85: #{tpu_custom_call.1} parent=1 // pred_fallthru
      _
    // Predicated region
    $region86: #{tpu_custom_call.1} parent=1 // pred_check
      _
    $region87: #{tpu_custom_call.1} parent=1 // pred_check_branch
      %199 = sbr.rel (0) target = $region89
    $region88: #{tpu_custom_call.1} parent=1 // pred_region
      %200 = dma.done [#allocation6], 32
    $region89: #{tpu_custom_call.1} parent=1 // pred_fallthru
      _
    // Predicated region
    $region90: #{tpu_custom_call.1} parent=1 // pred_check
      _
    $region91: #{tpu_custom_call.1} parent=1 // pred_check_branch
      %202 = sbr.rel (0) target = $region93
    $region92: #{tpu_custom_call.1} parent=1 // pred_region
      %203 = dma.done [#allocation6], 16
    $region93: #{tpu_custom_call.1} parent=1 // pred_fallthru
      _
    // Predicated region
    $region94: #{tpu_custom_call.1} parent=1 // pred_check
      _
    $region95: #{tpu_custom_call.1} parent=1 // pred_check_branch
      %205 = sbr.rel (0) target = $region97
    $region96: #{tpu_custom_call.1} parent=1 // pred_region
      %206 = dma.done [#allocation9], 16
    $region97: #{tpu_custom_call.1} parent=1 // pred_fallthru
      _
    // Predicated region
    $region98: #{tpu_custom_call.1} parent=1 // pred_check
      _
    $region99: #{tpu_custom_call.1} parent=1 // pred_check_branch
      %208 = sbr.rel (0) target = $region101
    $region100: #{tpu_custom_call.1} parent=1 // pred_region
      %209 = dma.done [#allocation9], 32
    $region101: #{tpu_custom_call.1} parent=1 // pred_fallthru
      _
    // Predicated region
    $region102: #{tpu_custom_call.1} parent=1 // pred_check
      _
    $region103: #{tpu_custom_call.1} parent=1 // pred_check_branch
      %211 = sbr.rel (0) target = $region105
    $region104: #{tpu_custom_call.1} parent=1 // pred_region
      %212 = dma.done [#allocation12], 32
    $region105: #{tpu_custom_call.1} parent=1 // pred_fallthru
      _
    // Predicated region
    $region106: #{tpu_custom_call.1} parent=1 // pred_check
      _
    $region107: #{tpu_custom_call.1} parent=1 // pred_check_branch
      %214 = sbr.rel (0) target = $region109
    $region108: #{tpu_custom_call.1} parent=1 // pred_region
      %215 = dma.done [#allocation12], 32
    $region109: #{tpu_custom_call.1} parent=1 // pred_fallthru
      _
    // Predicated region
    $region110: #{tpu_custom_call.1} parent=1 // pred_check
      _
    $region111: #{tpu_custom_call.1} parent=1 // pred_check_branch
      %217 = sbr.rel (0) target = $region113
    $region112: #{tpu_custom_call.1} parent=1 // pred_region
      %218 = dma.done [#allocation15], 32
    $region113: #{tpu_custom_call.1} parent=1 // pred_fallthru
      _
    // Predicated region
    $region114: #{tpu_custom_call.1} parent=1 // pred_check
      _
    $region115: #{tpu_custom_call.1} parent=1 // pred_check_branch
      %220 = sbr.rel (0) target = $region117
    $region116: #{tpu_custom_call.1} parent=1 // pred_region
      %221 = dma.done [#allocation15], 32
    $region117: #{tpu_custom_call.1} parent=1 // pred_fallthru
      _
    // Predicated region
    $region118: #{tpu_custom_call.1} parent=1 // pred_check
      _
    $region119: #{tpu_custom_call.1} parent=1 // pred_check_branch
      %223 = sbr.rel (0) target = $region121
    $region120: #{tpu_custom_call.1} parent=1 // pred_region
      %224 = dma.done [#allocation18], 32
    $region121: #{tpu_custom_call.1} parent=1 // pred_fallthru
      _
    // Predicated region
    $region122: #{tpu_custom_call.1} parent=1 // pred_check
      _
    $region123: #{tpu_custom_call.1} parent=1 // pred_check_branch
      %226 = sbr.rel (0) target = $region125
    $region124: #{tpu_custom_call.1} parent=1 // pred_region
      %227 = dma.done [#allocation18], 32
    $region125: #{tpu_custom_call.1} parent=1 // pred_fallthru
      _
    // Predicated region
    $region126: #{tpu_custom_call.1} parent=1 // pred_check
      _
    $region127: #{tpu_custom_call.1} parent=1 // pred_check_branch
      %229 = sbr.rel (0) target = $region129
    $region128: #{tpu_custom_call.1} parent=1 // pred_region
      %230 = dma.done [#allocation21], 32
    $region129: #{tpu_custom_call.1} parent=1 // pred_fallthru
      _
    // Predicated region
    $region130: #{tpu_custom_call.1} parent=1 // pred_check
      _
    $region131: #{tpu_custom_call.1} parent=1 // pred_check_branch
      %232 = sbr.rel (0) target = $region133
    $region132: #{tpu_custom_call.1} parent=1 // pred_region
      %233 = dma.done [#allocation21], 16
    $region133: #{tpu_custom_call.1} parent=1 // pred_fallthru
      _
    %v234 = vld [vmem:[#allocation2] sm:$0xff]
    %v235 = vld [vmem:[#allocation2 + $0x8] sm:$0xff]
    %v236 = vld [vmem:[#allocation5] sm:$0x3]
    %v237 = vld [vmem:[#allocation7] sm:$0x1]
    %v238 = vld [vmem:[#allocation8] sm:$0x1]
    %vm239 = vcmask 261120
    %v240 = vsel %vm239, %v234, 0.0
    %241 = vadd.xlane.f32.xlu0 %v240
    %v242 = vpop.xlane.xlu0 %241
    %v243 = vsel %vm239, %v235, 0.0
    %244 = vadd.xlane.f32.xlu0 %v243
    %v245 = vpop.xlane.xlu0 %244
    %v246 = vrcp.pop 32.0
    %v247 = vmul.f32 %v242, %v246
    %v248 = vmul.f32 %v245, %v246
    %v249 = vsub.f32 %v234, %v247
    %v250 = vsub.f32 %v235, %v248
    %v251 = vmul.f32 %v249, %v249
    %v252 = vmul.f32 %v250, %v250
    %v253 = vsel %vm239, %v251, 0.0
    %254 = vadd.xlane.f32.xlu0 %v253
    %v255 = vpop.xlane.xlu0 %254
    %v256 = vsel %vm239, %v252, 0.0
    %257 = vadd.xlane.f32.xlu0 %v256
    %v258 = vpop.xlane.xlu0 %257
    %v259 = vmul.f32 %v255, %v246
    %v260 = vmul.f32 %v258, %v246
    %v261 = vadd.f32 %v259, 1e-12
    %v262 = vadd.f32 %v260, 1e-12
    %v263 = vrsqrt.pop %v261
    %v264 = vrsqrt.pop %v262
    %v265 = vmul.f32 %v249, %v263
    %v266 = vmul.f32 %v250, %v264
    %v268 = vlaneseq
    %v269 = vshrl.u32 %v268, 7
    %v270 = vsub.s32 0, %v269
    %v271 = vrot.slane %v237, %v270
    %v273 = vmul.f32 %v265, %v271
    %v274 = vmul.f32 %v266, %v271
    %v276 = vlaneseq
    %v277 = vshrl.u32 %v276, 7
    %v278 = vsub.s32 0, %v277
    %v279 = vrot.slane %v238, %v278
    %v281 = vadd.f32 %v273, %v279
    %v282 = vadd.f32 %v274, %v279
    %v283 = vld [vmem:[%s4] sm:$0xff]
    %v284 = vld [vmem:[%s4 + $0x8] sm:$0xff]
    %v285 = vld [vmem:[%s4 + $0x10] sm:$0xff]
    %v286 = vld [vmem:[%s4 + $0x18] sm:$0xff]
    %v287 = vld [vmem:[#allocation10] sm:$0x1]
    %v289 = vlaneseq
    %v290 = vshrl.u32 %v289, 7
    %v291 = vsub.s32 0, %v290
    %v292 = vrot.slane %v287, %v291
    %v295 = vsel %vm239, %v281, 0
    %v298 = vsel %vm239, %v282, 0
    %300 = vmatprep.subr.mxu0 0.0
    %301 = vmatpush1.msra.mxu0 %v283
    %302 = vmatprep.subr.mxu0 0.0
    %303 = vmatpush1.msra.mxu0 %v284
    %304 = vmatprep.subr.mxu0 0.0
    %305 = vmatpush1.msra.mxu0 %v285
    %306 = vmatprep.subr.mxu0 0.0
    %307 = vmatpush1.msra.mxu0 %v286
    %308 = vmatprep.subr.mxu0 0.0
    %309 = vmatpush1.msra.mxu0 0.0
    %310 = vmatprep.subr.mxu0 0.0
    %311 = vmatpush1.msra.mxu0 0.0
    %312 = vmatprep.subr.mxu0 0.0
    %313 = vmatpush1.msra.mxu0 0.0
    %314 = vmatprep.subr.mxu0 0.0
    %315 = vmatpush1.msra.mxu0 0.0
    %316 = vmatprep.subr.mxu0 0.0
    %317 = vmatpush1.msra.mxu0 0.0
    %318 = vmatprep.subr.mxu0 0.0
    %319 = vmatpush1.msra.mxu0 0.0
    %320 = vmatprep.subr.mxu0 0.0
    %321 = vmatpush1.msra.mxu0 0.0
    %322 = vmatprep.subr.mxu0 0.0
    %323 = vmatpush1.msra.mxu0 0.0
    %324 = vmatprep.subr.mxu0 0.0
    %325 = vmatpush1.msra.mxu0 0.0
    %326 = vmatprep.subr.mxu0 0.0
    %327 = vmatpush1.msra.mxu0 0.0
    %328 = vmatprep.subr.mxu0 0.0
    %329 = vmatpush1.msra.mxu0 0.0
    %330 = vmatprep.subr.mxu0 0.0
    %331 = vmatpush1.msra.mxu0 0.0
    %332 = vmatprep.subr.mxu0 0.0
    %333 = vmatpush1.msra.mxu0 0.0
    %334 = vmatprep.subr.mxu0 0.0
    %335 = vmatpush1.msra.mxu0 0.0
    %336 = vmatprep.subr.mxu0 0.0
    %337 = vmatpush1.msra.mxu0 0.0
    %338 = vmatprep.subr.mxu0 0.0
    %339 = vmatpush1.msra.mxu0 0.0
    %340 = vmatprep.subr.mxu0 0.0
    %341 = vmatpush1.msra.mxu0 0.0
    %342 = vmatprep.subr.mxu0 0.0
    %343 = vmatpush1.msra.mxu0 0.0
    %344 = vmatprep.subr.mxu0 0.0
    %345 = vmatpush1.msra.mxu0 0.0
    %346 = vmatprep.subr.mxu0 0.0
    %347 = vmatpush1.msra.mxu0 0.0
    %348 = vmatprep.subr.mxu0 0.0
    %349 = vmatpush1.msra.mxu0 0.0
    %350 = vmatprep.subr.mxu0 0.0
    %351 = vmatpush1.msra.mxu0 0.0
    %352 = vmatprep.subr.mxu0 0.0
    %353 = vmatpush1.msra.mxu0 0.0
    %354 = vmatprep.subr.mxu0 0.0
    %355 = vmatpush1.msra.mxu0 0.0
    %356 = vmatprep.subr.mxu0 0.0
    %357 = vmatpush1.msra.mxu0 0.0
    %358 = vmatprep.subr.mxu0 0.0
    %359 = vmatpush1.msra.mxu0 0.0
    %360 = vmatprep.subr.mxu0 0.0
    %361 = vmatpush1.msra.mxu0 0.0
    %362 = vmatprep.subr.mxu0 0.0
    %363 = vmatpush1.msra.mxu0 0.0
    %364 = vmatprep.mubr.f32.mxu0 0.0
    %365 = vmatmul.mubr.f32.gmra.mrb[0].mxu0 %v295
    %v366 = vpop.f32.mrb[0].mxu0
    %v367 = vadd.f32 %v292, %v366
    %v368 = vpop.f32.mrb[0].mxu0
    %369 = vmatprep.mubr.f32.mxu0 0.0
    %370 = vmatmul.mubr.f32.gmra.mrb[0].mxu0 %v298
    %v371 = vpop.f32.mrb[0].mxu0
    %v372 = vadd.f32 %v292, %v371
    %v373 = vpop.f32.mrb[0].mxu0
    %374 = vdwg.mxu0
    %376 = vrot.lane.b32.xlu0 %v367, 96
    %v377 = vpop.permute.xlu0 %376
    %vm378 = vcmask 64512
    %v379 = vsel %vm378, %v367, 0
    %v381 = vsel %vm378, %v377, 0
    %383 = vmatprep.subr.mxu0 0.0
    %384 = vmatpush1.xpose.msra.mxu0 %v381
    %385 = vmatprep.subr.mxu0 0.0
    %386 = vmatpush1.xpose.msra.mxu0 0.0
    %387 = vmatprep.subr.mxu0 0.0
    %388 = vmatpush1.xpose.msra.mxu0 0.0
    %389 = vmatprep.subr.mxu0 0.0
    %390 = vmatpush1.xpose.msra.mxu0 0.0
    %391 = vmatprep.subr.mxu0 0.0
    %392 = vmatpush1.xpose.msra.mxu0 0.0
    %393 = vmatprep.subr.mxu0 0.0
    %394 = vmatpush1.xpose.msra.mxu0 0.0
    %395 = vmatprep.subr.mxu0 0.0
    %396 = vmatpush1.xpose.msra.mxu0 0.0
    %397 = vmatprep.subr.mxu0 0.0
    %398 = vmatpush1.xpose.msra.mxu0 0.0
    %399 = vmatprep.subr.mxu0 0.0
    %400 = vmatpush1.xpose.msra.mxu0 0.0
    %401 = vmatprep.subr.mxu0 0.0
    %402 = vmatpush1.xpose.msra.mxu0 0.0
    %403 = vmatprep.subr.mxu0 0.0
    %404 = vmatpush1.xpose.msra.mxu0 0.0
    %405 = vmatprep.subr.mxu0 0.0
    %406 = vmatpush1.xpose.msra.mxu0 0.0
    %407 = vmatprep.subr.mxu0 0.0
    %408 = vmatpush1.xpose.msra.mxu0 0.0
    %409 = vmatprep.subr.mxu0 0.0
    %410 = vmatpush1.xpose.msra.mxu0 0.0
    %411 = vmatprep.subr.mxu0 0.0
    %412 = vmatpush1.xpose.msra.mxu0 0.0
    %413 = vmatprep.subr.mxu0 0.0
    %414 = vmatpush1.xpose.msra.mxu0 0.0
    %415 = vmatprep.subr.mxu0 0.0
    %416 = vmatpush1.xpose.msra.mxu0 0.0
    %417 = vmatprep.subr.mxu0 0.0
    %418 = vmatpush1.xpose.msra.mxu0 0.0
    %419 = vmatprep.subr.mxu0 0.0
    %420 = vmatpush1.xpose.msra.mxu0 0.0
    %421 = vmatprep.subr.mxu0 0.0
    %422 = vmatpush1.xpose.msra.mxu0 0.0
    %423 = vmatprep.subr.mxu0 0.0
    %424 = vmatpush1.xpose.msra.mxu0 0.0
    %425 = vmatprep.subr.mxu0 0.0
    %426 = vmatpush1.xpose.msra.mxu0 0.0
    %427 = vmatprep.subr.mxu0 0.0
    %428 = vmatpush1.xpose.msra.mxu0 0.0
    %429 = vmatprep.subr.mxu0 0.0
    %430 = vmatpush1.xpose.msra.mxu0 0.0
    %431 = vmatprep.subr.mxu0 0.0
    %432 = vmatpush1.xpose.msra.mxu0 0.0
    %433 = vmatprep.subr.mxu0 0.0
    %434 = vmatpush1.xpose.msra.mxu0 0.0
    %435 = vmatprep.subr.mxu0 0.0
    %436 = vmatpush1.xpose.msra.mxu0 0.0
    %437 = vmatprep.subr.mxu0 0.0
    %438 = vmatpush1.xpose.msra.mxu0 0.0
    %439 = vmatprep.subr.mxu0 0.0
    %440 = vmatpush1.xpose.msra.mxu0 0.0
    %441 = vmatprep.subr.mxu0 0.0
    %442 = vmatpush1.xpose.msra.mxu0 0.0
    %443 = vmatprep.subr.mxu0 0.0
    %444 = vmatpush1.xpose.msra.mxu0 0.0
    %445 = vmatprep.subr.mxu0 0.0
    %446 = vmatpush1.xpose.msra.mxu0 0.0
    %447 = vmatprep.mubr.f32.mxu0 0.0
    %448 = vmatmul.mubr.f32.gmra.mrb[0].mxu0 %v379
    %v449 = vpop.f32.mrb[0].mxu0
    %v450 = vadd.f32 0.0, %v449
    %v451 = vpop.f32.mrb[0].mxu0
    %452 = vdwg.mxu0
    %v453 = vmul.f32 %v450, 0.35355338
    %v454 = vlaneseq
    %v455 = vshrl.u32 %v454, 7
    %v456 = vsub.s32 0, %v455
    %v457 = vrot.slane %v236, %v456
    %v458 = vadd.f32 %v453, %v457
    %v459 = vsel %vm378, %v458, -inf
    %460 = vmax.xlane.f32.xlu0 %v459
    %v461 = vpop.xlane.xlu0 %460
    %v462 = vsub.f32 %v458, %v461
    %v463 = vmul.f32 %v462, 1.442695
    %v464 = vpow.pop %v463
    %v465 = vsel %vm378, %v464, 0.0
    %466 = vadd.xlane.f32.xlu0 %v465
    %v467 = vpop.xlane.xlu0 %466
    %v468 = vrcp.pop %v467
    %v469 = vmul.f32 %v464, %v468
    %470 = vrot.lane.b32.xlu0 %v367, 64
    %v471 = vpop.permute.xlu0 %470
    %v474 = vsel %vm378, %v469, 0
    %476 = vmatprep.subr.mxu0 0.0
    %477 = vmatpush1.msra.mxu0 %v471
    %478 = vmatprep.subr.mxu0 0.0
    %479 = vmatpush1.msra.mxu0 0.0
    %480 = vmatprep.subr.mxu0 0.0
    %481 = vmatpush1.msra.mxu0 0.0
    %482 = vmatprep.subr.mxu0 0.0
    %483 = vmatpush1.msra.mxu0 0.0
    %484 = vmatprep.subr.mxu0 0.0
    %485 = vmatpush1.msra.mxu0 0.0
    %486 = vmatprep.subr.mxu0 0.0
    %487 = vmatpush1.msra.mxu0 0.0
    %488 = vmatprep.subr.mxu0 0.0
    %489 = vmatpush1.msra.mxu0 0.0
    %490 = vmatprep.subr.mxu0 0.0
    %491 = vmatpush1.msra.mxu0 0.0
    %492 = vmatprep.subr.mxu0 0.0
    %493 = vmatpush1.msra.mxu0 0.0
    %494 = vmatprep.subr.mxu0 0.0
    %495 = vmatpush1.msra.mxu0 0.0
    %496 = vmatprep.subr.mxu0 0.0
    %497 = vmatpush1.msra.mxu0 0.0
    %498 = vmatprep.subr.mxu0 0.0
    %499 = vmatpush1.msra.mxu0 0.0
    %500 = vmatprep.subr.mxu0 0.0
    %501 = vmatpush1.msra.mxu0 0.0
    %502 = vmatprep.subr.mxu0 0.0
    %503 = vmatpush1.msra.mxu0 0.0
    %504 = vmatprep.subr.mxu0 0.0
    %505 = vmatpush1.msra.mxu0 0.0
    %506 = vmatprep.subr.mxu0 0.0
    %507 = vmatpush1.msra.mxu0 0.0
    %508 = vmatprep.subr.mxu0 0.0
    %509 = vmatpush1.msra.mxu0 0.0
    %510 = vmatprep.subr.mxu0 0.0
    %511 = vmatpush1.msra.mxu0 0.0
    %512 = vmatprep.subr.mxu0 0.0
    %513 = vmatpush1.msra.mxu0 0.0
    %514 = vmatprep.subr.mxu0 0.0
    %515 = vmatpush1.msra.mxu0 0.0
    %516 = vmatprep.subr.mxu0 0.0
    %517 = vmatpush1.msra.mxu0 0.0
    %518 = vmatprep.subr.mxu0 0.0
    %519 = vmatpush1.msra.mxu0 0.0
    %520 = vmatprep.subr.mxu0 0.0
    %521 = vmatpush1.msra.mxu0 0.0
    %522 = vmatprep.subr.mxu0 0.0
    %523 = vmatpush1.msra.mxu0 0.0
    %524 = vmatprep.subr.mxu0 0.0
    %525 = vmatpush1.msra.mxu0 0.0
    %526 = vmatprep.subr.mxu0 0.0
    %527 = vmatpush1.msra.mxu0 0.0
    %528 = vmatprep.subr.mxu0 0.0
    %529 = vmatpush1.msra.mxu0 0.0
    %530 = vmatprep.subr.mxu0 0.0
    %531 = vmatpush1.msra.mxu0 0.0
    %532 = vmatprep.subr.mxu0 0.0
    %533 = vmatpush1.msra.mxu0 0.0
    %534 = vmatprep.subr.mxu0 0.0
    %535 = vmatpush1.msra.mxu0 0.0
    %536 = vmatprep.subr.mxu0 0.0
    %537 = vmatpush1.msra.mxu0 0.0
    %538 = vmatprep.subr.mxu0 0.0
    %539 = vmatpush1.msra.mxu0 0.0
    %540 = vmatprep.mubr.f32.mxu0 0.0
    %541 = vmatmul.mubr.f32.gmra.mrb[0].mxu0 %v474
    %v542 = vpop.f32.mrb[0].mxu0
    %v543 = vadd.f32 0.0, %v542
    %v544 = vpop.f32.mrb[0].mxu0
    %545 = vdwg.mxu0
    %546 = vrot.lane.b32.xlu0 %v367, 120
    %v547 = vpop.permute.xlu0 %546
    %548 = vrot.lane.b32.xlu0 %v367, 88
    %v549 = vpop.permute.xlu0 %548
    %v550 = vsel %vm378, %v547, 0
    %v552 = vsel %vm378, %v549, 0
    %554 = vmatprep.subr.mxu0 0.0
    %555 = vmatpush1.xpose.msra.mxu0 %v552
    %556 = vmatprep.subr.mxu0 0.0
    %557 = vmatpush1.xpose.msra.mxu0 0.0
    %558 = vmatprep.subr.mxu0 0.0
    %559 = vmatpush1.xpose.msra.mxu0 0.0
    %560 = vmatprep.subr.mxu0 0.0
    %561 = vmatpush1.xpose.msra.mxu0 0.0
    %562 = vmatprep.subr.mxu0 0.0
    %563 = vmatpush1.xpose.msra.mxu0 0.0
    %564 = vmatprep.subr.mxu0 0.0
    %565 = vmatpush1.xpose.msra.mxu0 0.0
    %566 = vmatprep.subr.mxu0 0.0
    %567 = vmatpush1.xpose.msra.mxu0 0.0
    %568 = vmatprep.subr.mxu0 0.0
    %569 = vmatpush1.xpose.msra.mxu0 0.0
    %570 = vmatprep.subr.mxu0 0.0
    %571 = vmatpush1.xpose.msra.mxu0 0.0
    %572 = vmatprep.subr.mxu0 0.0
    %573 = vmatpush1.xpose.msra.mxu0 0.0
    %574 = vmatprep.subr.mxu0 0.0
    %575 = vmatpush1.xpose.msra.mxu0 0.0
    %576 = vmatprep.subr.mxu0 0.0
    %577 = vmatpush1.xpose.msra.mxu0 0.0
    %578 = vmatprep.subr.mxu0 0.0
    %579 = vmatpush1.xpose.msra.mxu0 0.0
    %580 = vmatprep.subr.mxu0 0.0
    %581 = vmatpush1.xpose.msra.mxu0 0.0
    %582 = vmatprep.subr.mxu0 0.0
    %583 = vmatpush1.xpose.msra.mxu0 0.0
    %584 = vmatprep.subr.mxu0 0.0
    %585 = vmatpush1.xpose.msra.mxu0 0.0
    %586 = vmatprep.subr.mxu0 0.0
    %587 = vmatpush1.xpose.msra.mxu0 0.0
    %588 = vmatprep.subr.mxu0 0.0
    %589 = vmatpush1.xpose.msra.mxu0 0.0
    %590 = vmatprep.subr.mxu0 0.0
    %591 = vmatpush1.xpose.msra.mxu0 0.0
    %592 = vmatprep.subr.mxu0 0.0
    %593 = vmatpush1.xpose.msra.mxu0 0.0
    %594 = vmatprep.subr.mxu0 0.0
    %595 = vmatpush1.xpose.msra.mxu0 0.0
    %596 = vmatprep.subr.mxu0 0.0
    %597 = vmatpush1.xpose.msra.mxu0 0.0
    %598 = vmatprep.subr.mxu0 0.0
    %599 = vmatpush1.xpose.msra.mxu0 0.0
    %600 = vmatprep.subr.mxu0 0.0
    %601 = vmatpush1.xpose.msra.mxu0 0.0
    %602 = vmatprep.subr.mxu0 0.0
    %603 = vmatpush1.xpose.msra.mxu0 0.0
    %604 = vmatprep.subr.mxu0 0.0
    %605 = vmatpush1.xpose.msra.mxu0 0.0
    %606 = vmatprep.subr.mxu0 0.0
    %607 = vmatpush1.xpose.msra.mxu0 0.0
    %608 = vmatprep.subr.mxu0 0.0
    %609 = vmatpush1.xpose.msra.mxu0 0.0
    %610 = vmatprep.subr.mxu0 0.0
    %611 = vmatpush1.xpose.msra.mxu0 0.0
    %612 = vmatprep.subr.mxu0 0.0
    %613 = vmatpush1.xpose.msra.mxu0 0.0
    %614 = vmatprep.subr.mxu0 0.0
    %615 = vmatpush1.xpose.msra.mxu0 0.0
    %616 = vmatprep.subr.mxu0 0.0
    %617 = vmatpush1.xpose.msra.mxu0 0.0
    %618 = vmatprep.mubr.f32.mxu0 0.0
    %619 = vmatmul.mubr.f32.gmra.mrb[0].mxu0 %v550
    %v620 = vpop.f32.mrb[0].mxu0
    %v621 = vadd.f32 0.0, %v620
    %v622 = vpop.f32.mrb[0].mxu0
    %623 = vdwg.mxu0
    %v624 = vmul.f32 %v621, 0.35355338
    %v625 = vadd.f32 %v624, %v457
    %v626 = vsel %vm378, %v625, -inf
    %627 = vmax.xlane.f32.xlu0 %v626
    %v628 = vpop.xlane.xlu0 %627
    %v629 = vsub.f32 %v625, %v628
    %v630 = vmul.f32 %v629, 1.442695
    %v631 = vpow.pop %v630
    %v632 = vsel %vm378, %v631, 0.0
    %633 = vadd.xlane.f32.xlu0 %v632
    %v634 = vpop.xlane.xlu0 %633
    %v635 = vrcp.pop %v634
    %v636 = vmul.f32 %v631, %v635
    %637 = vrot.lane.b32.xlu0 %v367, 56
    %v638 = vpop.permute.xlu0 %637
    %v641 = vsel %vm378, %v636, 0
    %643 = vmatprep.subr.mxu0 0.0
    %644 = vmatpush1.msra.mxu0 %v638
    %645 = vmatprep.subr.mxu0 0.0
    %646 = vmatpush1.msra.mxu0 0.0
    %647 = vmatprep.subr.mxu0 0.0
    %648 = vmatpush1.msra.mxu0 0.0
    %649 = vmatprep.subr.mxu0 0.0
    %650 = vmatpush1.msra.mxu0 0.0
    %651 = vmatprep.subr.mxu0 0.0
    %652 = vmatpush1.msra.mxu0 0.0
    %653 = vmatprep.subr.mxu0 0.0
    %654 = vmatpush1.msra.mxu0 0.0
    %655 = vmatprep.subr.mxu0 0.0
    %656 = vmatpush1.msra.mxu0 0.0
    %657 = vmatprep.subr.mxu0 0.0
    %658 = vmatpush1.msra.mxu0 0.0
    %659 = vmatprep.subr.mxu0 0.0
    %660 = vmatpush1.msra.mxu0 0.0
    %661 = vmatprep.subr.mxu0 0.0
    %662 = vmatpush1.msra.mxu0 0.0
    %663 = vmatprep.subr.mxu0 0.0
    %664 = vmatpush1.msra.mxu0 0.0
    %665 = vmatprep.subr.mxu0 0.0
    %666 = vmatpush1.msra.mxu0 0.0
    %667 = vmatprep.subr.mxu0 0.0
    %668 = vmatpush1.msra.mxu0 0.0
    %669 = vmatprep.subr.mxu0 0.0
    %670 = vmatpush1.msra.mxu0 0.0
    %671 = vmatprep.subr.mxu0 0.0
    %672 = vmatpush1.msra.mxu0 0.0
    %673 = vmatprep.subr.mxu0 0.0
    %674 = vmatpush1.msra.mxu0 0.0
    %675 = vmatprep.subr.mxu0 0.0
    %676 = vmatpush1.msra.mxu0 0.0
    %677 = vmatprep.subr.mxu0 0.0
    %678 = vmatpush1.msra.mxu0 0.0
    %679 = vmatprep.subr.mxu0 0.0
    %680 = vmatpush1.msra.mxu0 0.0
    %681 = vmatprep.subr.mxu0 0.0
    %682 = vmatpush1.msra.mxu0 0.0
    %683 = vmatprep.subr.mxu0 0.0
    %684 = vmatpush1.msra.mxu0 0.0
    %685 = vmatprep.subr.mxu0 0.0
    %686 = vmatpush1.msra.mxu0 0.0
    %687 = vmatprep.subr.mxu0 0.0
    %688 = vmatpush1.msra.mxu0 0.0
    %689 = vmatprep.subr.mxu0 0.0
    %690 = vmatpush1.msra.mxu0 0.0
    %691 = vmatprep.subr.mxu0 0.0
    %692 = vmatpush1.msra.mxu0 0.0
    %693 = vmatprep.subr.mxu0 0.0
    %694 = vmatpush1.msra.mxu0 0.0
    %695 = vmatprep.subr.mxu0 0.0
    %696 = vmatpush1.msra.mxu0 0.0
    %697 = vmatprep.subr.mxu0 0.0
    %698 = vmatpush1.msra.mxu0 0.0
    %699 = vmatprep.subr.mxu0 0.0
    %700 = vmatpush1.msra.mxu0 0.0
    %701 = vmatprep.subr.mxu0 0.0
    %702 = vmatpush1.msra.mxu0 0.0
    %703 = vmatprep.subr.mxu0 0.0
    %704 = vmatpush1.msra.mxu0 0.0
    %705 = vmatprep.subr.mxu0 0.0
    %706 = vmatpush1.msra.mxu0 0.0
    %707 = vmatprep.mubr.f32.mxu0 0.0
    %708 = vmatmul.mubr.f32.gmra.mrb[0].mxu0 %v641
    %v709 = vpop.f32.mrb[0].mxu0
    %v710 = vadd.f32 0.0, %v709
    %v711 = vpop.f32.mrb[0].mxu0
    %712 = vdwg.mxu0
    %713 = vrot.lane.b32.xlu0 %v367, 112
    %v714 = vpop.permute.xlu0 %713
    %715 = vrot.lane.b32.xlu0 %v367, 80
    %v716 = vpop.permute.xlu0 %715
    %v717 = vsel %vm378, %v714, 0
    %v719 = vsel %vm378, %v716, 0
    %721 = vmatprep.subr.mxu0 0.0
    %722 = vmatpush1.xpose.msra.mxu0 %v719
    %723 = vmatprep.subr.mxu0 0.0
    %724 = vmatpush1.xpose.msra.mxu0 0.0
    %725 = vmatprep.subr.mxu0 0.0
    %726 = vmatpush1.xpose.msra.mxu0 0.0
    %727 = vmatprep.subr.mxu0 0.0
    %728 = vmatpush1.xpose.msra.mxu0 0.0
    %729 = vmatprep.subr.mxu0 0.0
    %730 = vmatpush1.xpose.msra.mxu0 0.0
    %731 = vmatprep.subr.mxu0 0.0
    %732 = vmatpush1.xpose.msra.mxu0 0.0
    %733 = vmatprep.subr.mxu0 0.0
    %734 = vmatpush1.xpose.msra.mxu0 0.0
    %735 = vmatprep.subr.mxu0 0.0
    %736 = vmatpush1.xpose.msra.mxu0 0.0
    %737 = vmatprep.subr.mxu0 0.0
    %738 = vmatpush1.xpose.msra.mxu0 0.0
    %739 = vmatprep.subr.mxu0 0.0
    %740 = vmatpush1.xpose.msra.mxu0 0.0
    %741 = vmatprep.subr.mxu0 0.0
    %742 = vmatpush1.xpose.msra.mxu0 0.0
    %743 = vmatprep.subr.mxu0 0.0
    %744 = vmatpush1.xpose.msra.mxu0 0.0
    %745 = vmatprep.subr.mxu0 0.0
    %746 = vmatpush1.xpose.msra.mxu0 0.0
    %747 = vmatprep.subr.mxu0 0.0
    %748 = vmatpush1.xpose.msra.mxu0 0.0
    %749 = vmatprep.subr.mxu0 0.0
    %750 = vmatpush1.xpose.msra.mxu0 0.0
    %751 = vmatprep.subr.mxu0 0.0
    %752 = vmatpush1.xpose.msra.mxu0 0.0
    %753 = vmatprep.subr.mxu0 0.0
    %754 = vmatpush1.xpose.msra.mxu0 0.0
    %755 = vmatprep.subr.mxu0 0.0
    %756 = vmatpush1.xpose.msra.mxu0 0.0
    %757 = vmatprep.subr.mxu0 0.0
    %758 = vmatpush1.xpose.msra.mxu0 0.0
    %759 = vmatprep.subr.mxu0 0.0
    %760 = vmatpush1.xpose.msra.mxu0 0.0
    %761 = vmatprep.subr.mxu0 0.0
    %762 = vmatpush1.xpose.msra.mxu0 0.0
    %763 = vmatprep.subr.mxu0 0.0
    %764 = vmatpush1.xpose.msra.mxu0 0.0
    %765 = vmatprep.subr.mxu0 0.0
    %766 = vmatpush1.xpose.msra.mxu0 0.0
    %767 = vmatprep.subr.mxu0 0.0
    %768 = vmatpush1.xpose.msra.mxu0 0.0
    %769 = vmatprep.subr.mxu0 0.0
    %770 = vmatpush1.xpose.msra.mxu0 0.0
    %771 = vmatprep.subr.mxu0 0.0
    %772 = vmatpush1.xpose.msra.mxu0 0.0
    %773 = vmatprep.subr.mxu0 0.0
    %774 = vmatpush1.xpose.msra.mxu0 0.0
    %775 = vmatprep.subr.mxu0 0.0
    %776 = vmatpush1.xpose.msra.mxu0 0.0
    %777 = vmatprep.subr.mxu0 0.0
    %778 = vmatpush1.xpose.msra.mxu0 0.0
    %779 = vmatprep.subr.mxu0 0.0
    %780 = vmatpush1.xpose.msra.mxu0 0.0
    %781 = vmatprep.subr.mxu0 0.0
    %782 = vmatpush1.xpose.msra.mxu0 0.0
    %783 = vmatprep.subr.mxu0 0.0
    %784 = vmatpush1.xpose.msra.mxu0 0.0
    %785 = vmatprep.mubr.f32.mxu0 0.0
    %786 = vmatmul.mubr.f32.gmra.mrb[0].mxu0 %v717
    %v787 = vpop.f32.mrb[0].mxu0
    %v788 = vadd.f32 0.0, %v787
    %v789 = vpop.f32.mrb[0].mxu0
    %790 = vdwg.mxu0
    %v791 = vmul.f32 %v788, 0.35355338
    %v792 = vadd.f32 %v791, %v457
    %v793 = vsel %vm378, %v792, -inf
    %794 = vmax.xlane.f32.xlu0 %v793
    %v795 = vpop.xlane.xlu0 %794
    %v796 = vsub.f32 %v792, %v795
    %v797 = vmul.f32 %v796, 1.442695
    %v798 = vpow.pop %v797
    %v799 = vsel %vm378, %v798, 0.0
    %800 = vadd.xlane.f32.xlu0 %v799
    %v801 = vpop.xlane.xlu0 %800
    %v802 = vrcp.pop %v801
    %v803 = vmul.f32 %v798, %v802
    %804 = vrot.lane.b32.xlu0 %v367, 48
    %v805 = vpop.permute.xlu0 %804
    %v808 = vsel %vm378, %v803, 0
    %810 = vmatprep.subr.mxu0 0.0
    %811 = vmatpush1.msra.mxu0 %v805
    %812 = vmatprep.subr.mxu0 0.0
    %813 = vmatpush1.msra.mxu0 0.0
    %814 = vmatprep.subr.mxu0 0.0
    %815 = vmatpush1.msra.mxu0 0.0
    %816 = vmatprep.subr.mxu0 0.0
    %817 = vmatpush1.msra.mxu0 0.0
    %818 = vmatprep.subr.mxu0 0.0
    %819 = vmatpush1.msra.mxu0 0.0
    %820 = vmatprep.subr.mxu0 0.0
    %821 = vmatpush1.msra.mxu0 0.0
    %822 = vmatprep.subr.mxu0 0.0
    %823 = vmatpush1.msra.mxu0 0.0
    %824 = vmatprep.subr.mxu0 0.0
    %825 = vmatpush1.msra.mxu0 0.0
    %826 = vmatprep.subr.mxu0 0.0
    %827 = vmatpush1.msra.mxu0 0.0
    %828 = vmatprep.subr.mxu0 0.0
    %829 = vmatpush1.msra.mxu0 0.0
    %830 = vmatprep.subr.mxu0 0.0
    %831 = vmatpush1.msra.mxu0 0.0
    %832 = vmatprep.subr.mxu0 0.0
    %833 = vmatpush1.msra.mxu0 0.0
    %834 = vmatprep.subr.mxu0 0.0
    %835 = vmatpush1.msra.mxu0 0.0
    %836 = vmatprep.subr.mxu0 0.0
    %837 = vmatpush1.msra.mxu0 0.0
    %838 = vmatprep.subr.mxu0 0.0
    %839 = vmatpush1.msra.mxu0 0.0
    %840 = vmatprep.subr.mxu0 0.0
    %841 = vmatpush1.msra.mxu0 0.0
    %842 = vmatprep.subr.mxu0 0.0
    %843 = vmatpush1.msra.mxu0 0.0
    %844 = vmatprep.subr.mxu0 0.0
    %845 = vmatpush1.msra.mxu0 0.0
    %846 = vmatprep.subr.mxu0 0.0
    %847 = vmatpush1.msra.mxu0 0.0
    %848 = vmatprep.subr.mxu0 0.0
    %849 = vmatpush1.msra.mxu0 0.0
    %850 = vmatprep.subr.mxu0 0.0
    %851 = vmatpush1.msra.mxu0 0.0
    %852 = vmatprep.subr.mxu0 0.0
    %853 = vmatpush1.msra.mxu0 0.0
    %854 = vmatprep.subr.mxu0 0.0
    %855 = vmatpush1.msra.mxu0 0.0
    %856 = vmatprep.subr.mxu0 0.0
    %857 = vmatpush1.msra.mxu0 0.0
    %858 = vmatprep.subr.mxu0 0.0
    %859 = vmatpush1.msra.mxu0 0.0
    %860 = vmatprep.subr.mxu0 0.0
    %861 = vmatpush1.msra.mxu0 0.0
    %862 = vmatprep.subr.mxu0 0.0
    %863 = vmatpush1.msra.mxu0 0.0
    %864 = vmatprep.subr.mxu0 0.0
    %865 = vmatpush1.msra.mxu0 0.0
    %866 = vmatprep.subr.mxu0 0.0
    %867 = vmatpush1.msra.mxu0 0.0
    %868 = vmatprep.subr.mxu0 0.0
    %869 = vmatpush1.msra.mxu0 0.0
    %870 = vmatprep.subr.mxu0 0.0
    %871 = vmatpush1.msra.mxu0 0.0
    %872 = vmatprep.subr.mxu0 0.0
    %873 = vmatpush1.msra.mxu0 0.0
    %874 = vmatprep.mubr.f32.mxu0 0.0
    %875 = vmatmul.mubr.f32.gmra.mrb[0].mxu0 %v808
    %v876 = vpop.f32.mrb[0].mxu0
    %v877 = vadd.f32 0.0, %v876
    %v878 = vpop.f32.mrb[0].mxu0
    %879 = vdwg.mxu0
    %880 = vrot.lane.b32.xlu0 %v367, 104
    %v881 = vpop.permute.xlu0 %880
    %882 = vrot.lane.b32.xlu0 %v367, 72
    %v883 = vpop.permute.xlu0 %882
    %v884 = vsel %vm378, %v881, 0
    %v886 = vsel %vm378, %v883, 0
    %888 = vmatprep.subr.mxu0 0.0
    %889 = vmatpush1.xpose.msra.mxu0 %v886
    %890 = vmatprep.subr.mxu0 0.0
    %891 = vmatpush1.xpose.msra.mxu0 0.0
    %892 = vmatprep.subr.mxu0 0.0
    %893 = vmatpush1.xpose.msra.mxu0 0.0
    %894 = vmatprep.subr.mxu0 0.0
    %895 = vmatpush1.xpose.msra.mxu0 0.0
    %896 = vmatprep.subr.mxu0 0.0
    %897 = vmatpush1.xpose.msra.mxu0 0.0
    %898 = vmatprep.subr.mxu0 0.0
    %899 = vmatpush1.xpose.msra.mxu0 0.0
    %900 = vmatprep.subr.mxu0 0.0
    %901 = vmatpush1.xpose.msra.mxu0 0.0
    %902 = vmatprep.subr.mxu0 0.0
    %903 = vmatpush1.xpose.msra.mxu0 0.0
    %904 = vmatprep.subr.mxu0 0.0
    %905 = vmatpush1.xpose.msra.mxu0 0.0
    %906 = vmatprep.subr.mxu0 0.0
    %907 = vmatpush1.xpose.msra.mxu0 0.0
    %908 = vmatprep.subr.mxu0 0.0
    %909 = vmatpush1.xpose.msra.mxu0 0.0
    %910 = vmatprep.subr.mxu0 0.0
    %911 = vmatpush1.xpose.msra.mxu0 0.0
    %912 = vmatprep.subr.mxu0 0.0
    %913 = vmatpush1.xpose.msra.mxu0 0.0
    %914 = vmatprep.subr.mxu0 0.0
    %915 = vmatpush1.xpose.msra.mxu0 0.0
    %916 = vmatprep.subr.mxu0 0.0
    %917 = vmatpush1.xpose.msra.mxu0 0.0
    %918 = vmatprep.subr.mxu0 0.0
    %919 = vmatpush1.xpose.msra.mxu0 0.0
    %920 = vmatprep.subr.mxu0 0.0
    %921 = vmatpush1.xpose.msra.mxu0 0.0
    %922 = vmatprep.subr.mxu0 0.0
    %923 = vmatpush1.xpose.msra.mxu0 0.0
    %924 = vmatprep.subr.mxu0 0.0
    %925 = vmatpush1.xpose.msra.mxu0 0.0
    %926 = vmatprep.subr.mxu0 0.0
    %927 = vmatpush1.xpose.msra.mxu0 0.0
    %928 = vmatprep.subr.mxu0 0.0
    %929 = vmatpush1.xpose.msra.mxu0 0.0
    %930 = vmatprep.subr.mxu0 0.0
    %931 = vmatpush1.xpose.msra.mxu0 0.0
    %932 = vmatprep.subr.mxu0 0.0
    %933 = vmatpush1.xpose.msra.mxu0 0.0
    %934 = vmatprep.subr.mxu0 0.0
    %935 = vmatpush1.xpose.msra.mxu0 0.0
    %936 = vmatprep.subr.mxu0 0.0
    %937 = vmatpush1.xpose.msra.mxu0 0.0
    %938 = vmatprep.subr.mxu0 0.0
    %939 = vmatpush1.xpose.msra.mxu0 0.0
    %940 = vmatprep.subr.mxu0 0.0
    %941 = vmatpush1.xpose.msra.mxu0 0.0
    %942 = vmatprep.subr.mxu0 0.0
    %943 = vmatpush1.xpose.msra.mxu0 0.0
    %944 = vmatprep.subr.mxu0 0.0
    %945 = vmatpush1.xpose.msra.mxu0 0.0
    %946 = vmatprep.subr.mxu0 0.0
    %947 = vmatpush1.xpose.msra.mxu0 0.0
    %948 = vmatprep.subr.mxu0 0.0
    %949 = vmatpush1.xpose.msra.mxu0 0.0
    %950 = vmatprep.subr.mxu0 0.0
    %951 = vmatpush1.xpose.msra.mxu0 0.0
    %952 = vmatprep.mubr.f32.mxu0 0.0
    %953 = vmatmul.mubr.f32.gmra.mrb[0].mxu0 %v884
    %v954 = vpop.f32.mrb[0].mxu0
    %v955 = vadd.f32 0.0, %v954
    %v956 = vpop.f32.mrb[0].mxu0
    %957 = vdwg.mxu0
    %v958 = vmul.f32 %v955, 0.35355338
    %v959 = vadd.f32 %v958, %v457
    %v960 = vsel %vm378, %v959, -inf
    %961 = vmax.xlane.f32.xlu0 %v960
    %v962 = vpop.xlane.xlu0 %961
    %v963 = vsub.f32 %v959, %v962
    %v964 = vmul.f32 %v963, 1.442695
    %v965 = vpow.pop %v964
    %v966 = vsel %vm378, %v965, 0.0
    %967 = vadd.xlane.f32.xlu0 %v966
    %v968 = vpop.xlane.xlu0 %967
    %v969 = vrcp.pop %v968
    %v970 = vmul.f32 %v965, %v969
    %971 = vrot.lane.b32.xlu0 %v367, 40
    %v972 = vpop.permute.xlu0 %971
    %v975 = vsel %vm378, %v970, 0
    %977 = vmatprep.subr.mxu0 0.0
    %978 = vmatpush1.msra.mxu0 %v972
    %979 = vmatprep.subr.mxu0 0.0
    %980 = vmatpush1.msra.mxu0 0.0
    %981 = vmatprep.subr.mxu0 0.0
    %982 = vmatpush1.msra.mxu0 0.0
    %983 = vmatprep.subr.mxu0 0.0
    %984 = vmatpush1.msra.mxu0 0.0
    %985 = vmatprep.subr.mxu0 0.0
    %986 = vmatpush1.msra.mxu0 0.0
    %987 = vmatprep.subr.mxu0 0.0
    %988 = vmatpush1.msra.mxu0 0.0
    %989 = vmatprep.subr.mxu0 0.0
    %990 = vmatpush1.msra.mxu0 0.0
    %991 = vmatprep.subr.mxu0 0.0
    %992 = vmatpush1.msra.mxu0 0.0
    %993 = vmatprep.subr.mxu0 0.0
    %994 = vmatpush1.msra.mxu0 0.0
    %995 = vmatprep.subr.mxu0 0.0
    %996 = vmatpush1.msra.mxu0 0.0
    %997 = vmatprep.subr.mxu0 0.0
    %998 = vmatpush1.msra.mxu0 0.0
    %999 = vmatprep.subr.mxu0 0.0
    %1000 = vmatpush1.msra.mxu0 0.0
    %1001 = vmatprep.subr.mxu0 0.0
    %1002 = vmatpush1.msra.mxu0 0.0
    %1003 = vmatprep.subr.mxu0 0.0
    %1004 = vmatpush1.msra.mxu0 0.0
    %1005 = vmatprep.subr.mxu0 0.0
    %1006 = vmatpush1.msra.mxu0 0.0
    %1007 = vmatprep.subr.mxu0 0.0
    %1008 = vmatpush1.msra.mxu0 0.0
    %1009 = vmatprep.subr.mxu0 0.0
    %1010 = vmatpush1.msra.mxu0 0.0
    %1011 = vmatprep.subr.mxu0 0.0
    %1012 = vmatpush1.msra.mxu0 0.0
    %1013 = vmatprep.subr.mxu0 0.0
    %1014 = vmatpush1.msra.mxu0 0.0
    %1015 = vmatprep.subr.mxu0 0.0
    %1016 = vmatpush1.msra.mxu0 0.0
    %1017 = vmatprep.subr.mxu0 0.0
    %1018 = vmatpush1.msra.mxu0 0.0
    %1019 = vmatprep.subr.mxu0 0.0
    %1020 = vmatpush1.msra.mxu0 0.0
    %1021 = vmatprep.subr.mxu0 0.0
    %1022 = vmatpush1.msra.mxu0 0.0
    %1023 = vmatprep.subr.mxu0 0.0
    %1024 = vmatpush1.msra.mxu0 0.0
    %1025 = vmatprep.subr.mxu0 0.0
    %1026 = vmatpush1.msra.mxu0 0.0
    %1027 = vmatprep.subr.mxu0 0.0
    %1028 = vmatpush1.msra.mxu0 0.0
    %1029 = vmatprep.subr.mxu0 0.0
    %1030 = vmatpush1.msra.mxu0 0.0
    %1031 = vmatprep.subr.mxu0 0.0
    %1032 = vmatpush1.msra.mxu0 0.0
    %1033 = vmatprep.subr.mxu0 0.0
    %1034 = vmatpush1.msra.mxu0 0.0
    %1035 = vmatprep.subr.mxu0 0.0
    %1036 = vmatpush1.msra.mxu0 0.0
    %1037 = vmatprep.subr.mxu0 0.0
    %1038 = vmatpush1.msra.mxu0 0.0
    %1039 = vmatprep.subr.mxu0 0.0
    %1040 = vmatpush1.msra.mxu0 0.0
    %1041 = vmatprep.mubr.f32.mxu0 0.0
    %1042 = vmatmul.mubr.f32.gmra.mrb[0].mxu0 %v975
    %v1043 = vpop.f32.mrb[0].mxu0
    %v1044 = vadd.f32 0.0, %v1043
    %v1045 = vpop.f32.mrb[0].mxu0
    %1046 = vdwg.mxu0
    %1048 = vrot.lane.b32.xlu0 %v710, 8
    %v1049 = vpop.permute.xlu0 %1048
    %1052 = vrot.lane.b32.xlu0 %v877, 16
    %v1053 = vpop.permute.xlu0 %1052
    %1056 = vrot.lane.b32.xlu0 %v1044, 24
    %v1057 = vpop.permute.xlu0 %1056
    %v1059 = vsel %vm378, %v543, %v1049
    %vm1060 = vcmask 130048
    %v1061 = vsel %vm1060, %v1059, %v1053
    %vm1062 = vcmask 195584
    %v1063 = vsel %vm1062, %v1061, %v1057
    %1065 = vrot.lane.b32.xlu0 %v372, 96
    %v1066 = vpop.permute.xlu0 %1065
    %v1067 = vsel %vm378, %v372, 0
    %v1069 = vsel %vm378, %v1066, 0
    %1071 = vmatprep.subr.mxu0 0.0
    %1072 = vmatpush1.xpose.msra.mxu0 %v1069
    %1073 = vmatprep.subr.mxu0 0.0
    %1074 = vmatpush1.xpose.msra.mxu0 0.0
    %1075 = vmatprep.subr.mxu0 0.0
    %1076 = vmatpush1.xpose.msra.mxu0 0.0
    %1077 = vmatprep.subr.mxu0 0.0
    %1078 = vmatpush1.xpose.msra.mxu0 0.0
    %1079 = vmatprep.subr.mxu0 0.0
    %1080 = vmatpush1.xpose.msra.mxu0 0.0
    %1081 = vmatprep.subr.mxu0 0.0
    %1082 = vmatpush1.xpose.msra.mxu0 0.0
    %1083 = vmatprep.subr.mxu0 0.0
    %1084 = vmatpush1.xpose.msra.mxu0 0.0
    %1085 = vmatprep.subr.mxu0 0.0
    %1086 = vmatpush1.xpose.msra.mxu0 0.0
    %1087 = vmatprep.subr.mxu0 0.0
    %1088 = vmatpush1.xpose.msra.mxu0 0.0
    %1089 = vmatprep.subr.mxu0 0.0
    %1090 = vmatpush1.xpose.msra.mxu0 0.0
    %1091 = vmatprep.subr.mxu0 0.0
    %1092 = vmatpush1.xpose.msra.mxu0 0.0
    %1093 = vmatprep.subr.mxu0 0.0
    %1094 = vmatpush1.xpose.msra.mxu0 0.0
    %1095 = vmatprep.subr.mxu0 0.0
    %1096 = vmatpush1.xpose.msra.mxu0 0.0
    %1097 = vmatprep.subr.mxu0 0.0
    %1098 = vmatpush1.xpose.msra.mxu0 0.0
    %1099 = vmatprep.subr.mxu0 0.0
    %1100 = vmatpush1.xpose.msra.mxu0 0.0
    %1101 = vmatprep.subr.mxu0 0.0
    %1102 = vmatpush1.xpose.msra.mxu0 0.0
    %1103 = vmatprep.subr.mxu0 0.0
    %1104 = vmatpush1.xpose.msra.mxu0 0.0
    %1105 = vmatprep.subr.mxu0 0.0
    %1106 = vmatpush1.xpose.msra.mxu0 0.0
    %1107 = vmatprep.subr.mxu0 0.0
    %1108 = vmatpush1.xpose.msra.mxu0 0.0
    %1109 = vmatprep.subr.mxu0 0.0
    %1110 = vmatpush1.xpose.msra.mxu0 0.0
    %1111 = vmatprep.subr.mxu0 0.0
    %1112 = vmatpush1.xpose.msra.mxu0 0.0
    %1113 = vmatprep.subr.mxu0 0.0
    %1114 = vmatpush1.xpose.msra.mxu0 0.0
    %1115 = vmatprep.subr.mxu0 0.0
    %1116 = vmatpush1.xpose.msra.mxu0 0.0
    %1117 = vmatprep.subr.mxu0 0.0
    %1118 = vmatpush1.xpose.msra.mxu0 0.0
    %1119 = vmatprep.subr.mxu0 0.0
    %1120 = vmatpush1.xpose.msra.mxu0 0.0
    %1121 = vmatprep.subr.mxu0 0.0
    %1122 = vmatpush1.xpose.msra.mxu0 0.0
    %1123 = vmatprep.subr.mxu0 0.0
    %1124 = vmatpush1.xpose.msra.mxu0 0.0
    %1125 = vmatprep.subr.mxu0 0.0
    %1126 = vmatpush1.xpose.msra.mxu0 0.0
    %1127 = vmatprep.subr.mxu0 0.0
    %1128 = vmatpush1.xpose.msra.mxu0 0.0
    %1129 = vmatprep.subr.mxu0 0.0
    %1130 = vmatpush1.xpose.msra.mxu0 0.0
    %1131 = vmatprep.subr.mxu0 0.0
    %1132 = vmatpush1.xpose.msra.mxu0 0.0
    %1133 = vmatprep.subr.mxu0 0.0
    %1134 = vmatpush1.xpose.msra.mxu0 0.0
    %1135 = vmatprep.mubr.f32.mxu0 0.0
    %1136 = vmatmul.mubr.f32.gmra.mrb[0].mxu0 %v1067
    %v1137 = vpop.f32.mrb[0].mxu0
    %v1138 = vadd.f32 0.0, %v1137
    %v1139 = vpop.f32.mrb[0].mxu0
    %1140 = vdwg.mxu0
    %v1141 = vmul.f32 %v1138, 0.35355338
    %v1142 = vlaneseq
    %v1143 = vshrl.u32 %v1142, 7
    %v1144 = vsub.s32 1, %v1143
    %v1145 = vrot.slane %v236, %v1144
    %v1146 = vadd.f32 %v1141, %v1145
    %v1147 = vsel %vm378, %v1146, -inf
    %1148 = vmax.xlane.f32.xlu0 %v1147
    %v1149 = vpop.xlane.xlu0 %1148
    %v1150 = vsub.f32 %v1146, %v1149
    %v1151 = vmul.f32 %v1150, 1.442695
    %v1152 = vpow.pop %v1151
    %v1153 = vsel %vm378, %v1152, 0.0
    %1154 = vadd.xlane.f32.xlu0 %v1153
    %v1155 = vpop.xlane.xlu0 %1154
    %v1156 = vrcp.pop %v1155
    %v1157 = vmul.f32 %v1152, %v1156
    %1158 = vrot.lane.b32.xlu0 %v372, 64
    %v1159 = vpop.permute.xlu0 %1158
    %v1162 = vsel %vm378, %v1157, 0
    %1164 = vmatprep.subr.mxu0 0.0
    %1165 = vmatpush1.msra.mxu0 %v1159
    %1166 = vmatprep.subr.mxu0 0.0
    %1167 = vmatpush1.msra.mxu0 0.0
    %1168 = vmatprep.subr.mxu0 0.0
    %1169 = vmatpush1.msra.mxu0 0.0
    %1170 = vmatprep.subr.mxu0 0.0
    %1171 = vmatpush1.msra.mxu0 0.0
    %1172 = vmatprep.subr.mxu0 0.0
    %1173 = vmatpush1.msra.mxu0 0.0
    %1174 = vmatprep.subr.mxu0 0.0
    %1175 = vmatpush1.msra.mxu0 0.0
    %1176 = vmatprep.subr.mxu0 0.0
    %1177 = vmatpush1.msra.mxu0 0.0
    %1178 = vmatprep.subr.mxu0 0.0
    %1179 = vmatpush1.msra.mxu0 0.0
    %1180 = vmatprep.subr.mxu0 0.0
    %1181 = vmatpush1.msra.mxu0 0.0
    %1182 = vmatprep.subr.mxu0 0.0
    %1183 = vmatpush1.msra.mxu0 0.0
    %1184 = vmatprep.subr.mxu0 0.0
    %1185 = vmatpush1.msra.mxu0 0.0
    %1186 = vmatprep.subr.mxu0 0.0
    %1187 = vmatpush1.msra.mxu0 0.0
    %1188 = vmatprep.subr.mxu0 0.0
    %1189 = vmatpush1.msra.mxu0 0.0
    %1190 = vmatprep.subr.mxu0 0.0
    %1191 = vmatpush1.msra.mxu0 0.0
    %1192 = vmatprep.subr.mxu0 0.0
    %1193 = vmatpush1.msra.mxu0 0.0
    %1194 = vmatprep.subr.mxu0 0.0
    %1195 = vmatpush1.msra.mxu0 0.0
    %1196 = vmatprep.subr.mxu0 0.0
    %1197 = vmatpush1.msra.mxu0 0.0
    %1198 = vmatprep.subr.mxu0 0.0
    %1199 = vmatpush1.msra.mxu0 0.0
    %1200 = vmatprep.subr.mxu0 0.0
    %1201 = vmatpush1.msra.mxu0 0.0
    %1202 = vmatprep.subr.mxu0 0.0
    %1203 = vmatpush1.msra.mxu0 0.0
    %1204 = vmatprep.subr.mxu0 0.0
    %1205 = vmatpush1.msra.mxu0 0.0
    %1206 = vmatprep.subr.mxu0 0.0
    %1207 = vmatpush1.msra.mxu0 0.0
    %1208 = vmatprep.subr.mxu0 0.0
    %1209 = vmatpush1.msra.mxu0 0.0
    %1210 = vmatprep.subr.mxu0 0.0
    %1211 = vmatpush1.msra.mxu0 0.0
    %1212 = vmatprep.subr.mxu0 0.0
    %1213 = vmatpush1.msra.mxu0 0.0
    %1214 = vmatprep.subr.mxu0 0.0
    %1215 = vmatpush1.msra.mxu0 0.0
    %1216 = vmatprep.subr.mxu0 0.0
    %1217 = vmatpush1.msra.mxu0 0.0
    %1218 = vmatprep.subr.mxu0 0.0
    %1219 = vmatpush1.msra.mxu0 0.0
    %1220 = vmatprep.subr.mxu0 0.0
    %1221 = vmatpush1.msra.mxu0 0.0
    %1222 = vmatprep.subr.mxu0 0.0
    %1223 = vmatpush1.msra.mxu0 0.0
    %1224 = vmatprep.subr.mxu0 0.0
    %1225 = vmatpush1.msra.mxu0 0.0
    %1226 = vmatprep.subr.mxu0 0.0
    %1227 = vmatpush1.msra.mxu0 0.0
    %1228 = vmatprep.mubr.f32.mxu0 0.0
    %1229 = vmatmul.mubr.f32.gmra.mrb[0].mxu0 %v1162
    %v1230 = vpop.f32.mrb[0].mxu0
    %v1231 = vadd.f32 0.0, %v1230
    %v1232 = vpop.f32.mrb[0].mxu0
    %1233 = vdwg.mxu0
    %1234 = vrot.lane.b32.xlu0 %v372, 120
    %v1235 = vpop.permute.xlu0 %1234
    %1236 = vrot.lane.b32.xlu0 %v372, 88
    %v1237 = vpop.permute.xlu0 %1236
    %v1238 = vsel %vm378, %v1235, 0
    %v1240 = vsel %vm378, %v1237, 0
    %1242 = vmatprep.subr.mxu0 0.0
    %1243 = vmatpush1.xpose.msra.mxu0 %v1240
    %1244 = vmatprep.subr.mxu0 0.0
    %1245 = vmatpush1.xpose.msra.mxu0 0.0
    %1246 = vmatprep.subr.mxu0 0.0
    %1247 = vmatpush1.xpose.msra.mxu0 0.0
    %1248 = vmatprep.subr.mxu0 0.0
    %1249 = vmatpush1.xpose.msra.mxu0 0.0
    %1250 = vmatprep.subr.mxu0 0.0
    %1251 = vmatpush1.xpose.msra.mxu0 0.0
    %1252 = vmatprep.subr.mxu0 0.0
    %1253 = vmatpush1.xpose.msra.mxu0 0.0
    %1254 = vmatprep.subr.mxu0 0.0
    %1255 = vmatpush1.xpose.msra.mxu0 0.0
    %1256 = vmatprep.subr.mxu0 0.0
    %1257 = vmatpush1.xpose.msra.mxu0 0.0
    %1258 = vmatprep.subr.mxu0 0.0
    %1259 = vmatpush1.xpose.msra.mxu0 0.0
    %1260 = vmatprep.subr.mxu0 0.0
    %1261 = vmatpush1.xpose.msra.mxu0 0.0
    %1262 = vmatprep.subr.mxu0 0.0
    %1263 = vmatpush1.xpose.msra.mxu0 0.0
    %1264 = vmatprep.subr.mxu0 0.0
    %1265 = vmatpush1.xpose.msra.mxu0 0.0
    %1266 = vmatprep.subr.mxu0 0.0
    %1267 = vmatpush1.xpose.msra.mxu0 0.0
    %1268 = vmatprep.subr.mxu0 0.0
    %1269 = vmatpush1.xpose.msra.mxu0 0.0
    %1270 = vmatprep.subr.mxu0 0.0
    %1271 = vmatpush1.xpose.msra.mxu0 0.0
    %1272 = vmatprep.subr.mxu0 0.0
    %1273 = vmatpush1.xpose.msra.mxu0 0.0
    %1274 = vmatprep.subr.mxu0 0.0
    %1275 = vmatpush1.xpose.msra.mxu0 0.0
    %1276 = vmatprep.subr.mxu0 0.0
    %1277 = vmatpush1.xpose.msra.mxu0 0.0
    %1278 = vmatprep.subr.mxu0 0.0
    %1279 = vmatpush1.xpose.msra.mxu0 0.0
    %1280 = vmatprep.subr.mxu0 0.0
    %1281 = vmatpush1.xpose.msra.mxu0 0.0
    %1282 = vmatprep.subr.mxu0 0.0
    %1283 = vmatpush1.xpose.msra.mxu0 0.0
    %1284 = vmatprep.subr.mxu0 0.0
    %1285 = vmatpush1.xpose.msra.mxu0 0.0
    %1286 = vmatprep.subr.mxu0 0.0
    %1287 = vmatpush1.xpose.msra.mxu0 0.0
    %1288 = vmatprep.subr.mxu0 0.0
    %1289 = vmatpush1.xpose.msra.mxu0 0.0
    %1290 = vmatprep.subr.mxu0 0.0
    %1291 = vmatpush1.xpose.msra.mxu0 0.0
    %1292 = vmatprep.subr.mxu0 0.0
    %1293 = vmatpush1.xpose.msra.mxu0 0.0
    %1294 = vmatprep.subr.mxu0 0.0
    %1295 = vmatpush1.xpose.msra.mxu0 0.0
    %1296 = vmatprep.subr.mxu0 0.0
    %1297 = vmatpush1.xpose.msra.mxu0 0.0
    %1298 = vmatprep.subr.mxu0 0.0
    %1299 = vmatpush1.xpose.msra.mxu0 0.0
    %1300 = vmatprep.subr.mxu0 0.0
    %1301 = vmatpush1.xpose.msra.mxu0 0.0
    %1302 = vmatprep.subr.mxu0 0.0
    %1303 = vmatpush1.xpose.msra.mxu0 0.0
    %1304 = vmatprep.subr.mxu0 0.0
    %1305 = vmatpush1.xpose.msra.mxu0 0.0
    %1306 = vmatprep.mubr.f32.mxu0 0.0
    %1307 = vmatmul.mubr.f32.gmra.mrb[0].mxu0 %v1238
    %v1308 = vpop.f32.mrb[0].mxu0
    %v1309 = vadd.f32 0.0, %v1308
    %v1310 = vpop.f32.mrb[0].mxu0
    %1311 = vdwg.mxu0
    %v1312 = vmul.f32 %v1309, 0.35355338
    %v1313 = vadd.f32 %v1312, %v1145
    %v1314 = vsel %vm378, %v1313, -inf
    %1315 = vmax.xlane.f32.xlu0 %v1314
    %v1316 = vpop.xlane.xlu0 %1315
    %v1317 = vsub.f32 %v1313, %v1316
    %v1318 = vmul.f32 %v1317, 1.442695
    %v1319 = vpow.pop %v1318
    %v1320 = vsel %vm378, %v1319, 0.0
    %1321 = vadd.xlane.f32.xlu0 %v1320
    %v1322 = vpop.xlane.xlu0 %1321
    %v1323 = vrcp.pop %v1322
    %v1324 = vmul.f32 %v1319, %v1323
    %1325 = vrot.lane.b32.xlu0 %v372, 56
    %v1326 = vpop.permute.xlu0 %1325
    %v1329 = vsel %vm378, %v1324, 0
    %1331 = vmatprep.subr.mxu0 0.0
    %1332 = vmatpush1.msra.mxu0 %v1326
    %1333 = vmatprep.subr.mxu0 0.0
    %1334 = vmatpush1.msra.mxu0 0.0
    %1335 = vmatprep.subr.mxu0 0.0
    %1336 = vmatpush1.msra.mxu0 0.0
    %1337 = vmatprep.subr.mxu0 0.0
    %1338 = vmatpush1.msra.mxu0 0.0
    %1339 = vmatprep.subr.mxu0 0.0
    %1340 = vmatpush1.msra.mxu0 0.0
    %1341 = vmatprep.subr.mxu0 0.0
    %1342 = vmatpush1.msra.mxu0 0.0
    %1343 = vmatprep.subr.mxu0 0.0
    %1344 = vmatpush1.msra.mxu0 0.0
    %1345 = vmatprep.subr.mxu0 0.0
    %1346 = vmatpush1.msra.mxu0 0.0
    %1347 = vmatprep.subr.mxu0 0.0
    %1348 = vmatpush1.msra.mxu0 0.0
    %1349 = vmatprep.subr.mxu0 0.0
    %1350 = vmatpush1.msra.mxu0 0.0
    %1351 = vmatprep.subr.mxu0 0.0
    %1352 = vmatpush1.msra.mxu0 0.0
    %1353 = vmatprep.subr.mxu0 0.0
    %1354 = vmatpush1.msra.mxu0 0.0
    %1355 = vmatprep.subr.mxu0 0.0
    %1356 = vmatpush1.msra.mxu0 0.0
    %1357 = vmatprep.subr.mxu0 0.0
    %1358 = vmatpush1.msra.mxu0 0.0
    %1359 = vmatprep.subr.mxu0 0.0
    %1360 = vmatpush1.msra.mxu0 0.0
    %1361 = vmatprep.subr.mxu0 0.0
    %1362 = vmatpush1.msra.mxu0 0.0
    %1363 = vmatprep.subr.mxu0 0.0
    %1364 = vmatpush1.msra.mxu0 0.0
    %1365 = vmatprep.subr.mxu0 0.0
    %1366 = vmatpush1.msra.mxu0 0.0
    %1367 = vmatprep.subr.mxu0 0.0
    %1368 = vmatpush1.msra.mxu0 0.0
    %1369 = vmatprep.subr.mxu0 0.0
    %1370 = vmatpush1.msra.mxu0 0.0
    %1371 = vmatprep.subr.mxu0 0.0
    %1372 = vmatpush1.msra.mxu0 0.0
    %1373 = vmatprep.subr.mxu0 0.0
    %1374 = vmatpush1.msra.mxu0 0.0
    %1375 = vmatprep.subr.mxu0 0.0
    %1376 = vmatpush1.msra.mxu0 0.0
    %1377 = vmatprep.subr.mxu0 0.0
    %1378 = vmatpush1.msra.mxu0 0.0
    %1379 = vmatprep.subr.mxu0 0.0
    %1380 = vmatpush1.msra.mxu0 0.0
    %1381 = vmatprep.subr.mxu0 0.0
    %1382 = vmatpush1.msra.mxu0 0.0
    %1383 = vmatprep.subr.mxu0 0.0
    %1384 = vmatpush1.msra.mxu0 0.0
    %1385 = vmatprep.subr.mxu0 0.0
    %1386 = vmatpush1.msra.mxu0 0.0
    %1387 = vmatprep.subr.mxu0 0.0
    %1388 = vmatpush1.msra.mxu0 0.0
    %1389 = vmatprep.subr.mxu0 0.0
    %1390 = vmatpush1.msra.mxu0 0.0
    %1391 = vmatprep.subr.mxu0 0.0
    %1392 = vmatpush1.msra.mxu0 0.0
    %1393 = vmatprep.subr.mxu0 0.0
    %1394 = vmatpush1.msra.mxu0 0.0
    %1395 = vmatprep.mubr.f32.mxu0 0.0
    %1396 = vmatmul.mubr.f32.gmra.mrb[0].mxu0 %v1329
    %v1397 = vpop.f32.mrb[0].mxu0
    %v1398 = vadd.f32 0.0, %v1397
    %v1399 = vpop.f32.mrb[0].mxu0
    %1400 = vdwg.mxu0
    %1401 = vrot.lane.b32.xlu0 %v372, 112
    %v1402 = vpop.permute.xlu0 %1401
    %1403 = vrot.lane.b32.xlu0 %v372, 80
    %v1404 = vpop.permute.xlu0 %1403
    %v1405 = vsel %vm378, %v1402, 0
    %v1407 = vsel %vm378, %v1404, 0
    %1409 = vmatprep.subr.mxu0 0.0
    %1410 = vmatpush1.xpose.msra.mxu0 %v1407
    %1411 = vmatprep.subr.mxu0 0.0
    %1412 = vmatpush1.xpose.msra.mxu0 0.0
    %1413 = vmatprep.subr.mxu0 0.0
    %1414 = vmatpush1.xpose.msra.mxu0 0.0
    %1415 = vmatprep.subr.mxu0 0.0
    %1416 = vmatpush1.xpose.msra.mxu0 0.0
    %1417 = vmatprep.subr.mxu0 0.0
    %1418 = vmatpush1.xpose.msra.mxu0 0.0
    %1419 = vmatprep.subr.mxu0 0.0
    %1420 = vmatpush1.xpose.msra.mxu0 0.0
    %1421 = vmatprep.subr.mxu0 0.0
    %1422 = vmatpush1.xpose.msra.mxu0 0.0
    %1423 = vmatprep.subr.mxu0 0.0
    %1424 = vmatpush1.xpose.msra.mxu0 0.0
    %1425 = vmatprep.subr.mxu0 0.0
    %1426 = vmatpush1.xpose.msra.mxu0 0.0
    %1427 = vmatprep.subr.mxu0 0.0
    %1428 = vmatpush1.xpose.msra.mxu0 0.0
    %1429 = vmatprep.subr.mxu0 0.0
    %1430 = vmatpush1.xpose.msra.mxu0 0.0
    %1431 = vmatprep.subr.mxu0 0.0
    %1432 = vmatpush1.xpose.msra.mxu0 0.0
    %1433 = vmatprep.subr.mxu0 0.0
    %1434 = vmatpush1.xpose.msra.mxu0 0.0
    %1435 = vmatprep.subr.mxu0 0.0
    %1436 = vmatpush1.xpose.msra.mxu0 0.0
    %1437 = vmatprep.subr.mxu0 0.0
    %1438 = vmatpush1.xpose.msra.mxu0 0.0
    %1439 = vmatprep.subr.mxu0 0.0
    %1440 = vmatpush1.xpose.msra.mxu0 0.0
    %1441 = vmatprep.subr.mxu0 0.0
    %1442 = vmatpush1.xpose.msra.mxu0 0.0
    %1443 = vmatprep.subr.mxu0 0.0
    %1444 = vmatpush1.xpose.msra.mxu0 0.0
    %1445 = vmatprep.subr.mxu0 0.0
    %1446 = vmatpush1.xpose.msra.mxu0 0.0
    %1447 = vmatprep.subr.mxu0 0.0
    %1448 = vmatpush1.xpose.msra.mxu0 0.0
    %1449 = vmatprep.subr.mxu0 0.0
    %1450 = vmatpush1.xpose.msra.mxu0 0.0
    %1451 = vmatprep.subr.mxu0 0.0
    %1452 = vmatpush1.xpose.msra.mxu0 0.0
    %1453 = vmatprep.subr.mxu0 0.0
    %1454 = vmatpush1.xpose.msra.mxu0 0.0
    %1455 = vmatprep.subr.mxu0 0.0
    %1456 = vmatpush1.xpose.msra.mxu0 0.0
    %1457 = vmatprep.subr.mxu0 0.0
    %1458 = vmatpush1.xpose.msra.mxu0 0.0
    %1459 = vmatprep.subr.mxu0 0.0
    %1460 = vmatpush1.xpose.msra.mxu0 0.0
    %1461 = vmatprep.subr.mxu0 0.0
    %1462 = vmatpush1.xpose.msra.mxu0 0.0
    %1463 = vmatprep.subr.mxu0 0.0
    %1464 = vmatpush1.xpose.msra.mxu0 0.0
    %1465 = vmatprep.subr.mxu0 0.0
    %1466 = vmatpush1.xpose.msra.mxu0 0.0
    %1467 = vmatprep.subr.mxu0 0.0
    %1468 = vmatpush1.xpose.msra.mxu0 0.0
    %1469 = vmatprep.subr.mxu0 0.0
    %1470 = vmatpush1.xpose.msra.mxu0 0.0
    %1471 = vmatprep.subr.mxu0 0.0
    %1472 = vmatpush1.xpose.msra.mxu0 0.0
    %1473 = vmatprep.mubr.f32.mxu0 0.0
    %1474 = vmatmul.mubr.f32.gmra.mrb[0].mxu0 %v1405
    %v1475 = vpop.f32.mrb[0].mxu0
    %v1476 = vadd.f32 0.0, %v1475
    %v1477 = vpop.f32.mrb[0].mxu0
    %1478 = vdwg.mxu0
    %v1479 = vmul.f32 %v1476, 0.35355338
    %v1480 = vadd.f32 %v1479, %v1145
    %v1481 = vsel %vm378, %v1480, -inf
    %1482 = vmax.xlane.f32.xlu0 %v1481
    %v1483 = vpop.xlane.xlu0 %1482
    %v1484 = vsub.f32 %v1480, %v1483
    %v1485 = vmul.f32 %v1484, 1.442695
    %v1486 = vpow.pop %v1485
    %v1487 = vsel %vm378, %v1486, 0.0
    %1488 = vadd.xlane.f32.xlu0 %v1487
    %v1489 = vpop.xlane.xlu0 %1488
    %v1490 = vrcp.pop %v1489
    %v1491 = vmul.f32 %v1486, %v1490
    %1492 = vrot.lane.b32.xlu0 %v372, 48
    %v1493 = vpop.permute.xlu0 %1492
    %v1496 = vsel %vm378, %v1491, 0
    %1498 = vmatprep.subr.mxu0 0.0
    %1499 = vmatpush1.msra.mxu0 %v1493
    %1500 = vmatprep.subr.mxu0 0.0
    %1501 = vmatpush1.msra.mxu0 0.0
    %1502 = vmatprep.subr.mxu0 0.0
    %1503 = vmatpush1.msra.mxu0 0.0
    %1504 = vmatprep.subr.mxu0 0.0
    %1505 = vmatpush1.msra.mxu0 0.0
    %1506 = vmatprep.subr.mxu0 0.0
    %1507 = vmatpush1.msra.mxu0 0.0
    %1508 = vmatprep.subr.mxu0 0.0
    %1509 = vmatpush1.msra.mxu0 0.0
    %1510 = vmatprep.subr.mxu0 0.0
    %1511 = vmatpush1.msra.mxu0 0.0
    %1512 = vmatprep.subr.mxu0 0.0
    %1513 = vmatpush1.msra.mxu0 0.0
    %1514 = vmatprep.subr.mxu0 0.0
    %1515 = vmatpush1.msra.mxu0 0.0
    %1516 = vmatprep.subr.mxu0 0.0
    %1517 = vmatpush1.msra.mxu0 0.0
    %1518 = vmatprep.subr.mxu0 0.0
    %1519 = vmatpush1.msra.mxu0 0.0
    %1520 = vmatprep.subr.mxu0 0.0
    %1521 = vmatpush1.msra.mxu0 0.0
    %1522 = vmatprep.subr.mxu0 0.0
    %1523 = vmatpush1.msra.mxu0 0.0
    %1524 = vmatprep.subr.mxu0 0.0
    %1525 = vmatpush1.msra.mxu0 0.0
    %1526 = vmatprep.subr.mxu0 0.0
    %1527 = vmatpush1.msra.mxu0 0.0
    %1528 = vmatprep.subr.mxu0 0.0
    %1529 = vmatpush1.msra.mxu0 0.0
    %1530 = vmatprep.subr.mxu0 0.0
    %1531 = vmatpush1.msra.mxu0 0.0
    %1532 = vmatprep.subr.mxu0 0.0
    %1533 = vmatpush1.msra.mxu0 0.0
    %1534 = vmatprep.subr.mxu0 0.0
    %1535 = vmatpush1.msra.mxu0 0.0
    %1536 = vmatprep.subr.mxu0 0.0
    %1537 = vmatpush1.msra.mxu0 0.0
    %1538 = vmatprep.subr.mxu0 0.0
    %1539 = vmatpush1.msra.mxu0 0.0
    %1540 = vmatprep.subr.mxu0 0.0
    %1541 = vmatpush1.msra.mxu0 0.0
    %1542 = vmatprep.subr.mxu0 0.0
    %1543 = vmatpush1.msra.mxu0 0.0
    %1544 = vmatprep.subr.mxu0 0.0
    %1545 = vmatpush1.msra.mxu0 0.0
    %1546 = vmatprep.subr.mxu0 0.0
    %1547 = vmatpush1.msra.mxu0 0.0
    %1548 = vmatprep.subr.mxu0 0.0
    %1549 = vmatpush1.msra.mxu0 0.0
    %1550 = vmatprep.subr.mxu0 0.0
    %1551 = vmatpush1.msra.mxu0 0.0
    %1552 = vmatprep.subr.mxu0 0.0
    %1553 = vmatpush1.msra.mxu0 0.0
    %1554 = vmatprep.subr.mxu0 0.0
    %1555 = vmatpush1.msra.mxu0 0.0
    %1556 = vmatprep.subr.mxu0 0.0
    %1557 = vmatpush1.msra.mxu0 0.0
    %1558 = vmatprep.subr.mxu0 0.0
    %1559 = vmatpush1.msra.mxu0 0.0
    %1560 = vmatprep.subr.mxu0 0.0
    %1561 = vmatpush1.msra.mxu0 0.0
    %1562 = vmatprep.mubr.f32.mxu0 0.0
    %1563 = vmatmul.mubr.f32.gmra.mrb[0].mxu0 %v1496
    %v1564 = vpop.f32.mrb[0].mxu0
    %v1565 = vadd.f32 0.0, %v1564
    %v1566 = vpop.f32.mrb[0].mxu0
    %1567 = vdwg.mxu0
    %1568 = vrot.lane.b32.xlu0 %v372, 104
    %v1569 = vpop.permute.xlu0 %1568
    %1570 = vrot.lane.b32.xlu0 %v372, 72
    %v1571 = vpop.permute.xlu0 %1570
    %v1572 = vsel %vm378, %v1569, 0
    %v1574 = vsel %vm378, %v1571, 0
    %1576 = vmatprep.subr.mxu0 0.0
    %1577 = vmatpush1.xpose.msra.mxu0 %v1574
    %1578 = vmatprep.subr.mxu0 0.0
    %1579 = vmatpush1.xpose.msra.mxu0 0.0
    %1580 = vmatprep.subr.mxu0 0.0
    %1581 = vmatpush1.xpose.msra.mxu0 0.0
    %1582 = vmatprep.subr.mxu0 0.0
    %1583 = vmatpush1.xpose.msra.mxu0 0.0
    %1584 = vmatprep.subr.mxu0 0.0
    %1585 = vmatpush1.xpose.msra.mxu0 0.0
    %1586 = vmatprep.subr.mxu0 0.0
    %1587 = vmatpush1.xpose.msra.mxu0 0.0
    %1588 = vmatprep.subr.mxu0 0.0
    %1589 = vmatpush1.xpose.msra.mxu0 0.0
    %1590 = vmatprep.subr.mxu0 0.0
    %1591 = vmatpush1.xpose.msra.mxu0 0.0
    %1592 = vmatprep.subr.mxu0 0.0
    %1593 = vmatpush1.xpose.msra.mxu0 0.0
    %1594 = vmatprep.subr.mxu0 0.0
    %1595 = vmatpush1.xpose.msra.mxu0 0.0
    %1596 = vmatprep.subr.mxu0 0.0
    %1597 = vmatpush1.xpose.msra.mxu0 0.0
    %1598 = vmatprep.subr.mxu0 0.0
    %1599 = vmatpush1.xpose.msra.mxu0 0.0
    %1600 = vmatprep.subr.mxu0 0.0
    %1601 = vmatpush1.xpose.msra.mxu0 0.0
    %1602 = vmatprep.subr.mxu0 0.0
    %1603 = vmatpush1.xpose.msra.mxu0 0.0
    %1604 = vmatprep.subr.mxu0 0.0
    %1605 = vmatpush1.xpose.msra.mxu0 0.0
    %1606 = vmatprep.subr.mxu0 0.0
    %1607 = vmatpush1.xpose.msra.mxu0 0.0
    %1608 = vmatprep.subr.mxu0 0.0
    %1609 = vmatpush1.xpose.msra.mxu0 0.0
    %1610 = vmatprep.subr.mxu0 0.0
    %1611 = vmatpush1.xpose.msra.mxu0 0.0
    %1612 = vmatprep.subr.mxu0 0.0
    %1613 = vmatpush1.xpose.msra.mxu0 0.0
    %1614 = vmatprep.subr.mxu0 0.0
    %1615 = vmatpush1.xpose.msra.mxu0 0.0
    %1616 = vmatprep.subr.mxu0 0.0
    %1617 = vmatpush1.xpose.msra.mxu0 0.0
    %1618 = vmatprep.subr.mxu0 0.0
    %1619 = vmatpush1.xpose.msra.mxu0 0.0
    %1620 = vmatprep.subr.mxu0 0.0
    %1621 = vmatpush1.xpose.msra.mxu0 0.0
    %1622 = vmatprep.subr.mxu0 0.0
    %1623 = vmatpush1.xpose.msra.mxu0 0.0
    %1624 = vmatprep.subr.mxu0 0.0
    %1625 = vmatpush1.xpose.msra.mxu0 0.0
    %1626 = vmatprep.subr.mxu0 0.0
    %1627 = vmatpush1.xpose.msra.mxu0 0.0
    %1628 = vmatprep.subr.mxu0 0.0
    %1629 = vmatpush1.xpose.msra.mxu0 0.0
    %1630 = vmatprep.subr.mxu0 0.0
    %1631 = vmatpush1.xpose.msra.mxu0 0.0
    %1632 = vmatprep.subr.mxu0 0.0
    %1633 = vmatpush1.xpose.msra.mxu0 0.0
    %1634 = vmatprep.subr.mxu0 0.0
    %1635 = vmatpush1.xpose.msra.mxu0 0.0
    %1636 = vmatprep.subr.mxu0 0.0
    %1637 = vmatpush1.xpose.msra.mxu0 0.0
    %1638 = vmatprep.subr.mxu0 0.0
    %1639 = vmatpush1.xpose.msra.mxu0 0.0
    %1640 = vmatprep.mubr.f32.mxu0 0.0
    %1641 = vmatmul.mubr.f32.gmra.mrb[0].mxu0 %v1572
    %v1642 = vpop.f32.mrb[0].mxu0
    %v1643 = vadd.f32 0.0, %v1642
    %v1644 = vpop.f32.mrb[0].mxu0
    %1645 = vdwg.mxu0
    %v1646 = vmul.f32 %v1643, 0.35355338
    %v1647 = vadd.f32 %v1646, %v1145
    %v1648 = vsel %vm378, %v1647, -inf
    %1649 = vmax.xlane.f32.xlu0 %v1648
    %v1650 = vpop.xlane.xlu0 %1649
    %v1651 = vsub.f32 %v1647, %v1650
    %v1652 = vmul.f32 %v1651, 1.442695
    %v1653 = vpow.pop %v1652
    %v1654 = vsel %vm378, %v1653, 0.0
    %1655 = vadd.xlane.f32.xlu0 %v1654
    %v1656 = vpop.xlane.xlu0 %1655
    %v1657 = vrcp.pop %v1656
    %v1658 = vmul.f32 %v1653, %v1657
    %1659 = vrot.lane.b32.xlu0 %v372, 40
    %v1660 = vpop.permute.xlu0 %1659
    %v1663 = vsel %vm378, %v1658, 0
    %1665 = vmatprep.subr.mxu0 0.0
    %1666 = vmatpush1.msra.mxu0 %v1660
    %1667 = vmatprep.subr.mxu0 0.0
    %1668 = vmatpush1.msra.mxu0 0.0
    %1669 = vmatprep.subr.mxu0 0.0
    %1670 = vmatpush1.msra.mxu0 0.0
    %1671 = vmatprep.subr.mxu0 0.0
    %1672 = vmatpush1.msra.mxu0 0.0
    %1673 = vmatprep.subr.mxu0 0.0
    %1674 = vmatpush1.msra.mxu0 0.0
    %1675 = vmatprep.subr.mxu0 0.0
    %1676 = vmatpush1.msra.mxu0 0.0
    %1677 = vmatprep.subr.mxu0 0.0
    %1678 = vmatpush1.msra.mxu0 0.0
    %1679 = vmatprep.subr.mxu0 0.0
    %1680 = vmatpush1.msra.mxu0 0.0
    %1681 = vmatprep.subr.mxu0 0.0
    %1682 = vmatpush1.msra.mxu0 0.0
    %1683 = vmatprep.subr.mxu0 0.0
    %1684 = vmatpush1.msra.mxu0 0.0
    %1685 = vmatprep.subr.mxu0 0.0
    %1686 = vmatpush1.msra.mxu0 0.0
    %1687 = vmatprep.subr.mxu0 0.0
    %1688 = vmatpush1.msra.mxu0 0.0
    %1689 = vmatprep.subr.mxu0 0.0
    %1690 = vmatpush1.msra.mxu0 0.0
    %1691 = vmatprep.subr.mxu0 0.0
    %1692 = vmatpush1.msra.mxu0 0.0
    %1693 = vmatprep.subr.mxu0 0.0
    %1694 = vmatpush1.msra.mxu0 0.0
    %1695 = vmatprep.subr.mxu0 0.0
    %1696 = vmatpush1.msra.mxu0 0.0
    %1697 = vmatprep.subr.mxu0 0.0
    %1698 = vmatpush1.msra.mxu0 0.0
    %1699 = vmatprep.subr.mxu0 0.0
    %1700 = vmatpush1.msra.mxu0 0.0
    %1701 = vmatprep.subr.mxu0 0.0
    %1702 = vmatpush1.msra.mxu0 0.0
    %1703 = vmatprep.subr.mxu0 0.0
    %1704 = vmatpush1.msra.mxu0 0.0
    %1705 = vmatprep.subr.mxu0 0.0
    %1706 = vmatpush1.msra.mxu0 0.0
    %1707 = vmatprep.subr.mxu0 0.0
    %1708 = vmatpush1.msra.mxu0 0.0
    %1709 = vmatprep.subr.mxu0 0.0
    %1710 = vmatpush1.msra.mxu0 0.0
    %1711 = vmatprep.subr.mxu0 0.0
    %1712 = vmatpush1.msra.mxu0 0.0
    %1713 = vmatprep.subr.mxu0 0.0
    %1714 = vmatpush1.msra.mxu0 0.0
    %1715 = vmatprep.subr.mxu0 0.0
    %1716 = vmatpush1.msra.mxu0 0.0
    %1717 = vmatprep.subr.mxu0 0.0
    %1718 = vmatpush1.msra.mxu0 0.0
    %1719 = vmatprep.subr.mxu0 0.0
    %1720 = vmatpush1.msra.mxu0 0.0
    %1721 = vmatprep.subr.mxu0 0.0
    %1722 = vmatpush1.msra.mxu0 0.0
    %1723 = vmatprep.subr.mxu0 0.0
    %1724 = vmatpush1.msra.mxu0 0.0
    %1725 = vmatprep.subr.mxu0 0.0
    %1726 = vmatpush1.msra.mxu0 0.0
    %1727 = vmatprep.subr.mxu0 0.0
    %1728 = vmatpush1.msra.mxu0 0.0
    %1729 = vmatprep.mubr.f32.mxu0 0.0
    %1730 = vmatmul.mubr.f32.gmra.mrb[0].mxu0 %v1663
    %v1731 = vpop.f32.mrb[0].mxu0
    %v1732 = vadd.f32 0.0, %v1731
    %v1733 = vpop.f32.mrb[0].mxu0
    %1734 = vdwg.mxu0
    %1736 = vrot.lane.b32.xlu0 %v1398, 8
    %v1737 = vpop.permute.xlu0 %1736
    %1740 = vrot.lane.b32.xlu0 %v1565, 16
    %v1741 = vpop.permute.xlu0 %1740
    %1744 = vrot.lane.b32.xlu0 %v1732, 24
    %v1745 = vpop.permute.xlu0 %1744
    %v1747 = vsel %vm378, %v1231, %v1737
    %v1748 = vsel %vm1060, %v1747, %v1741
    %v1749 = vsel %vm1062, %v1748, %v1745
    %v1750 = vld [vmem:[%s6] sm:$0xff]
    %v1751 = vld [vmem:[%s6 + $0x8] sm:$0xff]
    %v1752 = vld [vmem:[%s6 + $0x10] sm:$0xff]
    %v1753 = vld [vmem:[%s6 + $0x18] sm:$0xff]
    %v1754 = vld [vmem:[#allocation11] sm:$0x1]
    %v1756 = vlaneseq
    %v1757 = vshrl.u32 %v1756, 7
    %v1758 = vsub.s32 0, %v1757
    %v1759 = vrot.slane %v1754, %v1758
    %v1762 = vsel %vm239, %v1063, 0
    %v1765 = vsel %vm239, %v1749, 0
    %1767 = vmatprep.subr.mxu0 0.0
    %1768 = vmatpush1.msra.mxu0 %v1750
    %1769 = vmatprep.subr.mxu0 0.0
    %1770 = vmatpush1.msra.mxu0 %v1751
    %1771 = vmatprep.subr.mxu0 0.0
    %1772 = vmatpush1.msra.mxu0 %v1752
    %1773 = vmatprep.subr.mxu0 0.0
    %1774 = vmatpush1.msra.mxu0 %v1753
    %1775 = vmatprep.subr.mxu0 0.0
    %1776 = vmatpush1.msra.mxu0 0.0
    %1777 = vmatprep.subr.mxu0 0.0
    %1778 = vmatpush1.msra.mxu0 0.0
    %1779 = vmatprep.subr.mxu0 0.0
    %1780 = vmatpush1.msra.mxu0 0.0
    %1781 = vmatprep.subr.mxu0 0.0
    %1782 = vmatpush1.msra.mxu0 0.0
    %1783 = vmatprep.subr.mxu0 0.0
    %1784 = vmatpush1.msra.mxu0 0.0
    %1785 = vmatprep.subr.mxu0 0.0
    %1786 = vmatpush1.msra.mxu0 0.0
    %1787 = vmatprep.subr.mxu0 0.0
    %1788 = vmatpush1.msra.mxu0 0.0
    %1789 = vmatprep.subr.mxu0 0.0
    %1790 = vmatpush1.msra.mxu0 0.0
    %1791 = vmatprep.subr.mxu0 0.0
    %1792 = vmatpush1.msra.mxu0 0.0
    %1793 = vmatprep.subr.mxu0 0.0
    %1794 = vmatpush1.msra.mxu0 0.0
    %1795 = vmatprep.subr.mxu0 0.0
    %1796 = vmatpush1.msra.mxu0 0.0
    %1797 = vmatprep.subr.mxu0 0.0
    %1798 = vmatpush1.msra.mxu0 0.0
    %1799 = vmatprep.subr.mxu0 0.0
    %1800 = vmatpush1.msra.mxu0 0.0
    %1801 = vmatprep.subr.mxu0 0.0
    %1802 = vmatpush1.msra.mxu0 0.0
    %1803 = vmatprep.subr.mxu0 0.0
    %1804 = vmatpush1.msra.mxu0 0.0
    %1805 = vmatprep.subr.mxu0 0.0
    %1806 = vmatpush1.msra.mxu0 0.0
    %1807 = vmatprep.subr.mxu0 0.0
    %1808 = vmatpush1.msra.mxu0 0.0
    %1809 = vmatprep.subr.mxu0 0.0
    %1810 = vmatpush1.msra.mxu0 0.0
    %1811 = vmatprep.subr.mxu0 0.0
    %1812 = vmatpush1.msra.mxu0 0.0
    %1813 = vmatprep.subr.mxu0 0.0
    %1814 = vmatpush1.msra.mxu0 0.0
    %1815 = vmatprep.subr.mxu0 0.0
    %1816 = vmatpush1.msra.mxu0 0.0
    %1817 = vmatprep.subr.mxu0 0.0
    %1818 = vmatpush1.msra.mxu0 0.0
    %1819 = vmatprep.subr.mxu0 0.0
    %1820 = vmatpush1.msra.mxu0 0.0
    %1821 = vmatprep.subr.mxu0 0.0
    %1822 = vmatpush1.msra.mxu0 0.0
    %1823 = vmatprep.subr.mxu0 0.0
    %1824 = vmatpush1.msra.mxu0 0.0
    %1825 = vmatprep.subr.mxu0 0.0
    %1826 = vmatpush1.msra.mxu0 0.0
    %1827 = vmatprep.subr.mxu0 0.0
    %1828 = vmatpush1.msra.mxu0 0.0
    %1829 = vmatprep.subr.mxu0 0.0
    %1830 = vmatpush1.msra.mxu0 0.0
    %1831 = vmatprep.mubr.f32.mxu0 0.0
    %1832 = vmatmul.mubr.f32.gmra.mrb[0].mxu0 %v1762
    %v1833 = vpop.f32.mrb[0].mxu0
    %v1834 = vadd.f32 %v1759, %v1833
    %v1835 = vpop.f32.mrb[0].mxu0
    %1836 = vmatprep.mubr.f32.mxu0 0.0
    %1837 = vmatmul.mubr.f32.gmra.mrb[0].mxu0 %v1765
    %v1838 = vpop.f32.mrb[0].mxu0
    %v1839 = vadd.f32 %v1759, %v1838
    %v1840 = vpop.f32.mrb[0].mxu0
    %1841 = vdwg.mxu0
    %v1842 = vadd.f32 %v281, %v1834
    %v1843 = vadd.f32 %v282, %v1839
    %v1844 = vld [vmem:[#allocation13] sm:$0x1]
    %v1845 = vld [vmem:[#allocation14] sm:$0x1]
    %v1846 = vsel %vm239, %v1842, 0.0
    %1847 = vadd.xlane.f32.xlu0 %v1846
    %v1848 = vpop.xlane.xlu0 %1847
    %v1849 = vsel %vm239, %v1843, 0.0
    %1850 = vadd.xlane.f32.xlu0 %v1849
    %v1851 = vpop.xlane.xlu0 %1850
    %v1852 = vmul.f32 %v1848, %v246
    %v1853 = vmul.f32 %v1851, %v246
    %v1854 = vsub.f32 %v1842, %v1852
    %v1855 = vsub.f32 %v1843, %v1853
    %v1856 = vmul.f32 %v1854, %v1854
    %v1857 = vmul.f32 %v1855, %v1855
    %v1858 = vsel %vm239, %v1856, 0.0
    %1859 = vadd.xlane.f32.xlu0 %v1858
    %v1860 = vpop.xlane.xlu0 %1859
    %v1861 = vsel %vm239, %v1857, 0.0
    %1862 = vadd.xlane.f32.xlu0 %v1861
    %v1863 = vpop.xlane.xlu0 %1862
    %v1864 = vmul.f32 %v1860, %v246
    %v1865 = vmul.f32 %v1863, %v246
    %v1866 = vadd.f32 %v1864, 1e-12
    %v1867 = vadd.f32 %v1865, 1e-12
    %v1868 = vrsqrt.pop %v1866
    %v1869 = vrsqrt.pop %v1867
    %v1870 = vmul.f32 %v1854, %v1868
    %v1871 = vmul.f32 %v1855, %v1869
    %v1873 = vlaneseq
    %v1874 = vshrl.u32 %v1873, 7
    %v1875 = vsub.s32 0, %v1874
    %v1876 = vrot.slane %v1844, %v1875
    %v1878 = vmul.f32 %v1870, %v1876
    %v1879 = vmul.f32 %v1871, %v1876
    %v1881 = vlaneseq
    %v1882 = vshrl.u32 %v1881, 7
    %v1883 = vsub.s32 0, %v1882
    %v1884 = vrot.slane %v1845, %v1883
    %v1886 = vadd.f32 %v1878, %v1884
    %v1887 = vadd.f32 %v1879, %v1884
    %v1888 = vld [vmem:[%s10] sm:$0xff]
    %v1889 = vld [vmem:[%s10 + $0x8] sm:$0xff]
    %v1890 = vld [vmem:[%s10 + $0x10] sm:$0xff]
    %v1891 = vld [vmem:[%s10 + $0x18] sm:$0xff]
    %v1892 = vld [vmem:[#allocation16] sm:$0x1]
    %v1894 = vlaneseq
    %v1895 = vshrl.u32 %v1894, 7
    %v1896 = vsub.s32 0, %v1895
    %v1897 = vrot.slane %v1892, %v1896
    %v1900 = vsel %vm239, %v1886, 0
    %v1903 = vsel %vm239, %v1887, 0
    %1905 = vmatprep.subr.mxu0 0.0
    %1906 = vmatpush1.msra.mxu0 %v1888
    %1907 = vmatprep.subr.mxu0 0.0
    %1908 = vmatpush1.msra.mxu0 %v1889
    %1909 = vmatprep.subr.mxu0 0.0
    %1910 = vmatpush1.msra.mxu0 %v1890
    %1911 = vmatprep.subr.mxu0 0.0
    %1912 = vmatpush1.msra.mxu0 %v1891
    %1913 = vmatprep.subr.mxu0 0.0
    %1914 = vmatpush1.msra.mxu0 0.0
    %1915 = vmatprep.subr.mxu0 0.0
    %1916 = vmatpush1.msra.mxu0 0.0
    %1917 = vmatprep.subr.mxu0 0.0
    %1918 = vmatpush1.msra.mxu0 0.0
    %1919 = vmatprep.subr.mxu0 0.0
    %1920 = vmatpush1.msra.mxu0 0.0
    %1921 = vmatprep.subr.mxu0 0.0
    %1922 = vmatpush1.msra.mxu0 0.0
    %1923 = vmatprep.subr.mxu0 0.0
    %1924 = vmatpush1.msra.mxu0 0.0
    %1925 = vmatprep.subr.mxu0 0.0
    %1926 = vmatpush1.msra.mxu0 0.0
    %1927 = vmatprep.subr.mxu0 0.0
    %1928 = vmatpush1.msra.mxu0 0.0
    %1929 = vmatprep.subr.mxu0 0.0
    %1930 = vmatpush1.msra.mxu0 0.0
    %1931 = vmatprep.subr.mxu0 0.0
    %1932 = vmatpush1.msra.mxu0 0.0
    %1933 = vmatprep.subr.mxu0 0.0
    %1934 = vmatpush1.msra.mxu0 0.0
    %1935 = vmatprep.subr.mxu0 0.0
    %1936 = vmatpush1.msra.mxu0 0.0
    %1937 = vmatprep.subr.mxu0 0.0
    %1938 = vmatpush1.msra.mxu0 0.0
    %1939 = vmatprep.subr.mxu0 0.0
    %1940 = vmatpush1.msra.mxu0 0.0
    %1941 = vmatprep.subr.mxu0 0.0
    %1942 = vmatpush1.msra.mxu0 0.0
    %1943 = vmatprep.subr.mxu0 0.0
    %1944 = vmatpush1.msra.mxu0 0.0
    %1945 = vmatprep.subr.mxu0 0.0
    %1946 = vmatpush1.msra.mxu0 0.0
    %1947 = vmatprep.subr.mxu0 0.0
    %1948 = vmatpush1.msra.mxu0 0.0
    %1949 = vmatprep.subr.mxu0 0.0
    %1950 = vmatpush1.msra.mxu0 0.0
    %1951 = vmatprep.subr.mxu0 0.0
    %1952 = vmatpush1.msra.mxu0 0.0
    %1953 = vmatprep.subr.mxu0 0.0
    %1954 = vmatpush1.msra.mxu0 0.0
    %1955 = vmatprep.subr.mxu0 0.0
    %1956 = vmatpush1.msra.mxu0 0.0
    %1957 = vmatprep.subr.mxu0 0.0
    %1958 = vmatpush1.msra.mxu0 0.0
    %1959 = vmatprep.subr.mxu0 0.0
    %1960 = vmatpush1.msra.mxu0 0.0
    %1961 = vmatprep.subr.mxu0 0.0
    %1962 = vmatpush1.msra.mxu0 0.0
    %1963 = vmatprep.subr.mxu0 0.0
    %1964 = vmatpush1.msra.mxu0 0.0
    %1965 = vmatprep.subr.mxu0 0.0
    %1966 = vmatpush1.msra.mxu0 0.0
    %1967 = vmatprep.subr.mxu0 0.0
    %1968 = vmatpush1.msra.mxu0 0.0
    %1969 = vmatprep.mubr.f32.mxu0 0.0
    %1970 = vmatmul.mubr.f32.gmra.mrb[0].mxu0 %v1900
    %v1971 = vpop.f32.mrb[0].mxu0
    %v1972 = vadd.f32 %v1897, %v1971
    %v1973 = vpop.f32.mrb[0].mxu0
    %1974 = vmatprep.mubr.f32.mxu0 0.0
    %1975 = vmatmul.mubr.f32.gmra.mrb[0].mxu0 %v1903
    %v1976 = vpop.f32.mrb[0].mxu0
    %v1977 = vadd.f32 %v1897, %v1976
    %v1978 = vpop.f32.mrb[0].mxu0
    %1979 = vdwg.mxu0
    %v1980 = vmul.f32 %v1972, %v1972
    %v1981 = vmul.f32 %v1977, %v1977
    %v1982 = vmul.f32 %v1972, %v1980
    %v1983 = vmul.f32 %v1977, %v1981
    %v1984 = vmul.f32 %v1982, 0.044715
    %v1985 = vmul.f32 %v1983, 0.044715
    %v1986 = vadd.f32 %v1972, %v1984
    %v1987 = vadd.f32 %v1977, %v1985
    %v1988 = vmul.f32 %v1986, 0.7978846
    %v1989 = vmul.f32 %v1987, 0.7978846
    %v1990 = vtanh.pop %v1988
    %v1991 = vtanh.pop %v1989
    %v1992 = vadd.f32 %v1990, 1.0
    %v1993 = vadd.f32 %v1991, 1.0
    %v1994 = vmul.f32 %v1992, 0.5
    %v1995 = vmul.f32 %v1993, 0.5
    %v1996 = vmul.f32 %v1972, %v1994
    %v1997 = vmul.f32 %v1977, %v1995
    %v1998 = vld [vmem:[%s12] sm:$0xff]
    %v1999 = vld [vmem:[%s12 + $0x8] sm:$0xff]
    %v2000 = vld [vmem:[%s12 + $0x10] sm:$0xff]
    %v2001 = vld [vmem:[%s12 + $0x18] sm:$0xff]
    %v2002 = vld [vmem:[%s12 + $0x20] sm:$0xff]
    %v2003 = vld [vmem:[%s12 + $0x28] sm:$0xff]
    %v2004 = vld [vmem:[%s12 + $0x30] sm:$0xff]
    %v2005 = vld [vmem:[%s12 + $0x38] sm:$0xff]
    %v2006 = vld [vmem:[#allocation17] sm:$0x1]
    %v2008 = vlaneseq
    %v2009 = vshrl.u32 %v2008, 7
    %v2010 = vsub.s32 0, %v2009
    %v2011 = vrot.slane %v2006, %v2010
    %vm2013 = vcmask 523264
    %v2015 = vsel %vm2013, %v1996, 0
    %v2018 = vsel %vm2013, %v1997, 0
    %2020 = vmatprep.subr.mxu0 0.0
    %2021 = vmatpush1.msra.mxu0 %v1998
    %2022 = vmatprep.subr.mxu0 0.0
    %2023 = vmatpush1.msra.mxu0 %v1999
    %2024 = vmatprep.subr.mxu0 0.0
    %2025 = vmatpush1.msra.mxu0 %v2000
    %2026 = vmatprep.subr.mxu0 0.0
    %2027 = vmatpush1.msra.mxu0 %v2001
    %2028 = vmatprep.subr.mxu0 0.0
    %2029 = vmatpush1.msra.mxu0 %v2002
    %2030 = vmatprep.subr.mxu0 0.0
    %2031 = vmatpush1.msra.mxu0 %v2003
    %2032 = vmatprep.subr.mxu0 0.0
    %2033 = vmatpush1.msra.mxu0 %v2004
    %2034 = vmatprep.subr.mxu0 0.0
    %2035 = vmatpush1.msra.mxu0 %v2005
    %2036 = vmatprep.subr.mxu0 0.0
    %2037 = vmatpush1.msra.mxu0 0.0
    %2038 = vmatprep.subr.mxu0 0.0
    %2039 = vmatpush1.msra.mxu0 0.0
    %2040 = vmatprep.subr.mxu0 0.0
    %2041 = vmatpush1.msra.mxu0 0.0
    %2042 = vmatprep.subr.mxu0 0.0
    %2043 = vmatpush1.msra.mxu0 0.0
    %2044 = vmatprep.subr.mxu0 0.0
    %2045 = vmatpush1.msra.mxu0 0.0
    %2046 = vmatprep.subr.mxu0 0.0
    %2047 = vmatpush1.msra.mxu0 0.0
    %2048 = vmatprep.subr.mxu0 0.0
    %2049 = vmatpush1.msra.mxu0 0.0
    %2050 = vmatprep.subr.mxu0 0.0
    %2051 = vmatpush1.msra.mxu0 0.0
    %2052 = vmatprep.subr.mxu0 0.0
    %2053 = vmatpush1.msra.mxu0 0.0
    %2054 = vmatprep.subr.mxu0 0.0
    %2055 = vmatpush1.msra.mxu0 0.0
    %2056 = vmatprep.subr.mxu0 0.0
    %2057 = vmatpush1.msra.mxu0 0.0
    %2058 = vmatprep.subr.mxu0 0.0
    %2059 = vmatpush1.msra.mxu0 0.0
    %2060 = vmatprep.subr.mxu0 0.0
    %2061 = vmatpush1.msra.mxu0 0.0
    %2062 = vmatprep.subr.mxu0 0.0
    %2063 = vmatpush1.msra.mxu0 0.0
    %2064 = vmatprep.subr.mxu0 0.0
    %2065 = vmatpush1.msra.mxu0 0.0
    %2066 = vmatprep.subr.mxu0 0.0
    %2067 = vmatpush1.msra.mxu0 0.0
    %2068 = vmatprep.subr.mxu0 0.0
    %2069 = vmatpush1.msra.mxu0 0.0
    %2070 = vmatprep.subr.mxu0 0.0
    %2071 = vmatpush1.msra.mxu0 0.0
    %2072 = vmatprep.subr.mxu0 0.0
    %2073 = vmatpush1.msra.mxu0 0.0
    %2074 = vmatprep.subr.mxu0 0.0
    %2075 = vmatpush1.msra.mxu0 0.0
    %2076 = vmatprep.subr.mxu0 0.0
    %2077 = vmatpush1.msra.mxu0 0.0
    %2078 = vmatprep.subr.mxu0 0.0
    %2079 = vmatpush1.msra.mxu0 0.0
    %2080 = vmatprep.subr.mxu0 0.0
    %2081 = vmatpush1.msra.mxu0 0.0
    %2082 = vmatprep.subr.mxu0 0.0
    %2083 = vmatpush1.msra.mxu0 0.0
    %2084 = vmatprep.mubr.f32.mxu0 0.0
    %2085 = vmatmul.mubr.f32.gmra.mrb[0].mxu0 %v2015
    %v2086 = vpop.f32.mrb[0].mxu0
    %v2087 = vadd.f32 %v2011, %v2086
    %v2088 = vpop.f32.mrb[0].mxu0
    %2089 = vmatprep.mubr.f32.mxu0 0.0
    %2090 = vmatmul.mubr.f32.gmra.mrb[0].mxu0 %v2018
    %v2091 = vpop.f32.mrb[0].mxu0
    %v2092 = vadd.f32 %v2011, %v2091
    %v2093 = vpop.f32.mrb[0].mxu0
    %2094 = vdwg.mxu0
    %v2095 = vadd.f32 %v1886, %v2087
    %v2096 = vadd.f32 %v1887, %v2092
    %v2097 = vld [vmem:[#allocation19] sm:$0x1]
    %v2098 = vld [vmem:[#allocation20] sm:$0x1]
    %v2099 = vsel %vm239, %v2095, 0.0
    %2100 = vadd.xlane.f32.xlu0 %v2099
    %v2101 = vpop.xlane.xlu0 %2100
    %v2102 = vsel %vm239, %v2096, 0.0
    %2103 = vadd.xlane.f32.xlu0 %v2102
    %v2104 = vpop.xlane.xlu0 %2103
    %v2105 = vmul.f32 %v2101, %v246
    %v2106 = vmul.f32 %v2104, %v246
    %v2107 = vsub.f32 %v2095, %v2105
    %v2108 = vsub.f32 %v2096, %v2106
    %v2109 = vmul.f32 %v2107, %v2107
    %v2110 = vmul.f32 %v2108, %v2108
    %v2111 = vsel %vm239, %v2109, 0.0
    %2112 = vadd.xlane.f32.xlu0 %v2111
    %v2113 = vpop.xlane.xlu0 %2112
    %v2114 = vsel %vm239, %v2110, 0.0
    %2115 = vadd.xlane.f32.xlu0 %v2114
    %v2116 = vpop.xlane.xlu0 %2115
    %v2117 = vmul.f32 %v2113, %v246
    %v2118 = vmul.f32 %v2116, %v246
    %v2119 = vadd.f32 %v2117, 1e-12
    %v2120 = vadd.f32 %v2118, 1e-12
    %v2121 = vrsqrt.pop %v2119
    %v2122 = vrsqrt.pop %v2120
    %v2123 = vmul.f32 %v2107, %v2121
    %v2124 = vmul.f32 %v2108, %v2122
    %v2126 = vlaneseq
    %v2127 = vshrl.u32 %v2126, 7
    %v2128 = vsub.s32 0, %v2127
    %v2129 = vrot.slane %v2097, %v2128
    %v2131 = vmul.f32 %v2123, %v2129
    %v2132 = vmul.f32 %v2124, %v2129
    %v2134 = vlaneseq
    %v2135 = vshrl.u32 %v2134, 7
    %v2136 = vsub.s32 0, %v2135
    %v2137 = vrot.slane %v2098, %v2136
    %v2139 = vadd.f32 %v2131, %v2137
    %v2140 = vadd.f32 %v2132, %v2137
    %s2141 = scalar_lea.vmem %s4, 32
    %v2142 = vld [vmem:[%s2141] sm:$0xff]
    %v2143 = vld [vmem:[%s2141 + $0x8] sm:$0xff]
    %v2144 = vld [vmem:[%s2141 + $0x10] sm:$0xff]
    %v2145 = vld [vmem:[%s2141 + $0x18] sm:$0xff]
    %s2146 = scalar_lea.vmem [#allocation10], 1
    %v2147 = vld [vmem:[%s2146] sm:$0x1]
    %v2149 = vlaneseq
    %v2150 = vshrl.u32 %v2149, 7
    %v2151 = vsub.s32 0, %v2150
    %v2152 = vrot.slane %v2147, %v2151
    %v2155 = vsel %vm239, %v2139, 0
    %v2158 = vsel %vm239, %v2140, 0
    %2160 = vmatprep.subr.mxu0 0.0
    %2161 = vmatpush1.msra.mxu0 %v2142
    %2162 = vmatprep.subr.mxu0 0.0
    %2163 = vmatpush1.msra.mxu0 %v2143
    %2164 = vmatprep.subr.mxu0 0.0
    %2165 = vmatpush1.msra.mxu0 %v2144
    %2166 = vmatprep.subr.mxu0 0.0
    %2167 = vmatpush1.msra.mxu0 %v2145
    %2168 = vmatprep.subr.mxu0 0.0
    %2169 = vmatpush1.msra.mxu0 0.0
    %2170 = vmatprep.subr.mxu0 0.0
    %2171 = vmatpush1.msra.mxu0 0.0
    %2172 = vmatprep.subr.mxu0 0.0
    %2173 = vmatpush1.msra.mxu0 0.0
    %2174 = vmatprep.subr.mxu0 0.0
    %2175 = vmatpush1.msra.mxu0 0.0
    %2176 = vmatprep.subr.mxu0 0.0
    %2177 = vmatpush1.msra.mxu0 0.0
    %2178 = vmatprep.subr.mxu0 0.0
    %2179 = vmatpush1.msra.mxu0 0.0
    %2180 = vmatprep.subr.mxu0 0.0
    %2181 = vmatpush1.msra.mxu0 0.0
    %2182 = vmatprep.subr.mxu0 0.0
    %2183 = vmatpush1.msra.mxu0 0.0
    %2184 = vmatprep.subr.mxu0 0.0
    %2185 = vmatpush1.msra.mxu0 0.0
    %2186 = vmatprep.subr.mxu0 0.0
    %2187 = vmatpush1.msra.mxu0 0.0
    %2188 = vmatprep.subr.mxu0 0.0
    %2189 = vmatpush1.msra.mxu0 0.0
    %2190 = vmatprep.subr.mxu0 0.0
    %2191 = vmatpush1.msra.mxu0 0.0
    %2192 = vmatprep.subr.mxu0 0.0
    %2193 = vmatpush1.msra.mxu0 0.0
    %2194 = vmatprep.subr.mxu0 0.0
    %2195 = vmatpush1.msra.mxu0 0.0
    %2196 = vmatprep.subr.mxu0 0.0
    %2197 = vmatpush1.msra.mxu0 0.0
    %2198 = vmatprep.subr.mxu0 0.0
    %2199 = vmatpush1.msra.mxu0 0.0
    %2200 = vmatprep.subr.mxu0 0.0
    %2201 = vmatpush1.msra.mxu0 0.0
    %2202 = vmatprep.subr.mxu0 0.0
    %2203 = vmatpush1.msra.mxu0 0.0
    %2204 = vmatprep.subr.mxu0 0.0
    %2205 = vmatpush1.msra.mxu0 0.0
    %2206 = vmatprep.subr.mxu0 0.0
    %2207 = vmatpush1.msra.mxu0 0.0
    %2208 = vmatprep.subr.mxu0 0.0
    %2209 = vmatpush1.msra.mxu0 0.0
    %2210 = vmatprep.subr.mxu0 0.0
    %2211 = vmatpush1.msra.mxu0 0.0
    %2212 = vmatprep.subr.mxu0 0.0
    %2213 = vmatpush1.msra.mxu0 0.0
    %2214 = vmatprep.subr.mxu0 0.0
    %2215 = vmatpush1.msra.mxu0 0.0
    %2216 = vmatprep.subr.mxu0 0.0
    %2217 = vmatpush1.msra.mxu0 0.0
    %2218 = vmatprep.subr.mxu0 0.0
    %2219 = vmatpush1.msra.mxu0 0.0
    %2220 = vmatprep.subr.mxu0 0.0
    %2221 = vmatpush1.msra.mxu0 0.0
    %2222 = vmatprep.subr.mxu0 0.0
    %2223 = vmatpush1.msra.mxu0 0.0
    %2224 = vmatprep.mubr.f32.mxu0 0.0
    %2225 = vmatmul.mubr.f32.gmra.mrb[0].mxu0 %v2155
    %v2226 = vpop.f32.mrb[0].mxu0
    %v2227 = vadd.f32 %v2152, %v2226
    %v2228 = vpop.f32.mrb[0].mxu0
    %2229 = vmatprep.mubr.f32.mxu0 0.0
    %2230 = vmatmul.mubr.f32.gmra.mrb[0].mxu0 %v2158
    %v2231 = vpop.f32.mrb[0].mxu0
    %v2232 = vadd.f32 %v2152, %v2231
    %v2233 = vpop.f32.mrb[0].mxu0
    %2234 = vdwg.mxu0
    %2236 = vrot.lane.b32.xlu0 %v2227, 96
    %v2237 = vpop.permute.xlu0 %2236
    %v2238 = vsel %vm378, %v2227, 0
    %v2240 = vsel %vm378, %v2237, 0
    %2242 = vmatprep.subr.mxu0 0.0
    %2243 = vmatpush1.xpose.msra.mxu0 %v2240
    %2244 = vmatprep.subr.mxu0 0.0
    %2245 = vmatpush1.xpose.msra.mxu0 0.0
    %2246 = vmatprep.subr.mxu0 0.0
    %2247 = vmatpush1.xpose.msra.mxu0 0.0
    %2248 = vmatprep.subr.mxu0 0.0
    %2249 = vmatpush1.xpose.msra.mxu0 0.0
    %2250 = vmatprep.subr.mxu0 0.0
    %2251 = vmatpush1.xpose.msra.mxu0 0.0
    %2252 = vmatprep.subr.mxu0 0.0
    %2253 = vmatpush1.xpose.msra.mxu0 0.0
    %2254 = vmatprep.subr.mxu0 0.0
    %2255 = vmatpush1.xpose.msra.mxu0 0.0
    %2256 = vmatprep.subr.mxu0 0.0
    %2257 = vmatpush1.xpose.msra.mxu0 0.0
    %2258 = vmatprep.subr.mxu0 0.0
    %2259 = vmatpush1.xpose.msra.mxu0 0.0
    %2260 = vmatprep.subr.mxu0 0.0
    %2261 = vmatpush1.xpose.msra.mxu0 0.0
    %2262 = vmatprep.subr.mxu0 0.0
    %2263 = vmatpush1.xpose.msra.mxu0 0.0
    %2264 = vmatprep.subr.mxu0 0.0
    %2265 = vmatpush1.xpose.msra.mxu0 0.0
    %2266 = vmatprep.subr.mxu0 0.0
    %2267 = vmatpush1.xpose.msra.mxu0 0.0
    %2268 = vmatprep.subr.mxu0 0.0
    %2269 = vmatpush1.xpose.msra.mxu0 0.0
    %2270 = vmatprep.subr.mxu0 0.0
    %2271 = vmatpush1.xpose.msra.mxu0 0.0
    %2272 = vmatprep.subr.mxu0 0.0
    %2273 = vmatpush1.xpose.msra.mxu0 0.0
    %2274 = vmatprep.subr.mxu0 0.0
    %2275 = vmatpush1.xpose.msra.mxu0 0.0
    %2276 = vmatprep.subr.mxu0 0.0
    %2277 = vmatpush1.xpose.msra.mxu0 0.0
    %2278 = vmatprep.subr.mxu0 0.0
    %2279 = vmatpush1.xpose.msra.mxu0 0.0
    %2280 = vmatprep.subr.mxu0 0.0
    %2281 = vmatpush1.xpose.msra.mxu0 0.0
    %2282 = vmatprep.subr.mxu0 0.0
    %2283 = vmatpush1.xpose.msra.mxu0 0.0
    %2284 = vmatprep.subr.mxu0 0.0
    %2285 = vmatpush1.xpose.msra.mxu0 0.0
    %2286 = vmatprep.subr.mxu0 0.0
    %2287 = vmatpush1.xpose.msra.mxu0 0.0
    %2288 = vmatprep.subr.mxu0 0.0
    %2289 = vmatpush1.xpose.msra.mxu0 0.0
    %2290 = vmatprep.subr.mxu0 0.0
    %2291 = vmatpush1.xpose.msra.mxu0 0.0
    %2292 = vmatprep.subr.mxu0 0.0
    %2293 = vmatpush1.xpose.msra.mxu0 0.0
    %2294 = vmatprep.subr.mxu0 0.0
    %2295 = vmatpush1.xpose.msra.mxu0 0.0
    %2296 = vmatprep.subr.mxu0 0.0
    %2297 = vmatpush1.xpose.msra.mxu0 0.0
    %2298 = vmatprep.subr.mxu0 0.0
    %2299 = vmatpush1.xpose.msra.mxu0 0.0
    %2300 = vmatprep.subr.mxu0 0.0
    %2301 = vmatpush1.xpose.msra.mxu0 0.0
    %2302 = vmatprep.subr.mxu0 0.0
    %2303 = vmatpush1.xpose.msra.mxu0 0.0
    %2304 = vmatprep.subr.mxu0 0.0
    %2305 = vmatpush1.xpose.msra.mxu0 0.0
    %2306 = vmatprep.mubr.f32.mxu0 0.0
    %2307 = vmatmul.mubr.f32.gmra.mrb[0].mxu0 %v2238
    %v2308 = vpop.f32.mrb[0].mxu0
    %v2309 = vadd.f32 0.0, %v2308
    %v2310 = vpop.f32.mrb[0].mxu0
    %2311 = vdwg.mxu0
    %v2312 = vmul.f32 %v2309, 0.35355338
    %v2313 = vadd.f32 %v2312, %v457
    %v2314 = vsel %vm378, %v2313, -inf
    %2315 = vmax.xlane.f32.xlu0 %v2314
    %v2316 = vpop.xlane.xlu0 %2315
    %v2317 = vsub.f32 %v2313, %v2316
    %v2318 = vmul.f32 %v2317, 1.442695
    %v2319 = vpow.pop %v2318
    %v2320 = vsel %vm378, %v2319, 0.0
    %2321 = vadd.xlane.f32.xlu0 %v2320
    %v2322 = vpop.xlane.xlu0 %2321
    %v2323 = vrcp.pop %v2322
    %v2324 = vmul.f32 %v2319, %v2323
    %2325 = vrot.lane.b32.xlu0 %v2227, 64
    %v2326 = vpop.permute.xlu0 %2325
    %v2329 = vsel %vm378, %v2324, 0
    %2331 = vmatprep.subr.mxu0 0.0
    %2332 = vmatpush1.msra.mxu0 %v2326
    %2333 = vmatprep.subr.mxu0 0.0
    %2334 = vmatpush1.msra.mxu0 0.0
    %2335 = vmatprep.subr.mxu0 0.0
    %2336 = vmatpush1.msra.mxu0 0.0
    %2337 = vmatprep.subr.mxu0 0.0
    %2338 = vmatpush1.msra.mxu0 0.0
    %2339 = vmatprep.subr.mxu0 0.0
    %2340 = vmatpush1.msra.mxu0 0.0
    %2341 = vmatprep.subr.mxu0 0.0
    %2342 = vmatpush1.msra.mxu0 0.0
    %2343 = vmatprep.subr.mxu0 0.0
    %2344 = vmatpush1.msra.mxu0 0.0
    %2345 = vmatprep.subr.mxu0 0.0
    %2346 = vmatpush1.msra.mxu0 0.0
    %2347 = vmatprep.subr.mxu0 0.0
    %2348 = vmatpush1.msra.mxu0 0.0
    %2349 = vmatprep.subr.mxu0 0.0
    %2350 = vmatpush1.msra.mxu0 0.0
    %2351 = vmatprep.subr.mxu0 0.0
    %2352 = vmatpush1.msra.mxu0 0.0
    %2353 = vmatprep.subr.mxu0 0.0
    %2354 = vmatpush1.msra.mxu0 0.0
    %2355 = vmatprep.subr.mxu0 0.0
    %2356 = vmatpush1.msra.mxu0 0.0
    %2357 = vmatprep.subr.mxu0 0.0
    %2358 = vmatpush1.msra.mxu0 0.0
    %2359 = vmatprep.subr.mxu0 0.0
    %2360 = vmatpush1.msra.mxu0 0.0
    %2361 = vmatprep.subr.mxu0 0.0
    %2362 = vmatpush1.msra.mxu0 0.0
    %2363 = vmatprep.subr.mxu0 0.0
    %2364 = vmatpush1.msra.mxu0 0.0
    %2365 = vmatprep.subr.mxu0 0.0
    %2366 = vmatpush1.msra.mxu0 0.0
    %2367 = vmatprep.subr.mxu0 0.0
    %2368 = vmatpush1.msra.mxu0 0.0
    %2369 = vmatprep.subr.mxu0 0.0
    %2370 = vmatpush1.msra.mxu0 0.0
    %2371 = vmatprep.subr.mxu0 0.0
    %2372 = vmatpush1.msra.mxu0 0.0
    %2373 = vmatprep.subr.mxu0 0.0
    %2374 = vmatpush1.msra.mxu0 0.0
    %2375 = vmatprep.subr.mxu0 0.0
    %2376 = vmatpush1.msra.mxu0 0.0
    %2377 = vmatprep.subr.mxu0 0.0
    %2378 = vmatpush1.msra.mxu0 0.0
    %2379 = vmatprep.subr.mxu0 0.0
    %2380 = vmatpush1.msra.mxu0 0.0
    %2381 = vmatprep.subr.mxu0 0.0
    %2382 = vmatpush1.msra.mxu0 0.0
    %2383 = vmatprep.subr.mxu0 0.0
    %2384 = vmatpush1.msra.mxu0 0.0
    %2385 = vmatprep.subr.mxu0 0.0
    %2386 = vmatpush1.msra.mxu0 0.0
    %2387 = vmatprep.subr.mxu0 0.0
    %2388 = vmatpush1.msra.mxu0 0.0
    %2389 = vmatprep.subr.mxu0 0.0
    %2390 = vmatpush1.msra.mxu0 0.0
    %2391 = vmatprep.subr.mxu0 0.0
    %2392 = vmatpush1.msra.mxu0 0.0
    %2393 = vmatprep.subr.mxu0 0.0
    %2394 = vmatpush1.msra.mxu0 0.0
    %2395 = vmatprep.mubr.f32.mxu0 0.0
    %2396 = vmatmul.mubr.f32.gmra.mrb[0].mxu0 %v2329
    %v2397 = vpop.f32.mrb[0].mxu0
    %v2398 = vadd.f32 0.0, %v2397
    %v2399 = vpop.f32.mrb[0].mxu0
    %2400 = vdwg.mxu0
    %2401 = vrot.lane.b32.xlu0 %v2227, 120
    %v2402 = vpop.permute.xlu0 %2401
    %2403 = vrot.lane.b32.xlu0 %v2227, 88
    %v2404 = vpop.permute.xlu0 %2403
    %v2405 = vsel %vm378, %v2402, 0
    %v2407 = vsel %vm378, %v2404, 0
    %2409 = vmatprep.subr.mxu0 0.0
    %2410 = vmatpush1.xpose.msra.mxu0 %v2407
    %2411 = vmatprep.subr.mxu0 0.0
    %2412 = vmatpush1.xpose.msra.mxu0 0.0
    %2413 = vmatprep.subr.mxu0 0.0
    %2414 = vmatpush1.xpose.msra.mxu0 0.0
    %2415 = vmatprep.subr.mxu0 0.0
    %2416 = vmatpush1.xpose.msra.mxu0 0.0
    %2417 = vmatprep.subr.mxu0 0.0
    %2418 = vmatpush1.xpose.msra.mxu0 0.0
    %2419 = vmatprep.subr.mxu0 0.0
    %2420 = vmatpush1.xpose.msra.mxu0 0.0
    %2421 = vmatprep.subr.mxu0 0.0
    %2422 = vmatpush1.xpose.msra.mxu0 0.0
    %2423 = vmatprep.subr.mxu0 0.0
    %2424 = vmatpush1.xpose.msra.mxu0 0.0
    %2425 = vmatprep.subr.mxu0 0.0
    %2426 = vmatpush1.xpose.msra.mxu0 0.0
    %2427 = vmatprep.subr.mxu0 0.0
    %2428 = vmatpush1.xpose.msra.mxu0 0.0
    %2429 = vmatprep.subr.mxu0 0.0
    %2430 = vmatpush1.xpose.msra.mxu0 0.0
    %2431 = vmatprep.subr.mxu0 0.0
    %2432 = vmatpush1.xpose.msra.mxu0 0.0
    %2433 = vmatprep.subr.mxu0 0.0
    %2434 = vmatpush1.xpose.msra.mxu0 0.0
    %2435 = vmatprep.subr.mxu0 0.0
    %2436 = vmatpush1.xpose.msra.mxu0 0.0
    %2437 = vmatprep.subr.mxu0 0.0
    %2438 = vmatpush1.xpose.msra.mxu0 0.0
    %2439 = vmatprep.subr.mxu0 0.0
    %2440 = vmatpush1.xpose.msra.mxu0 0.0
    %2441 = vmatprep.subr.mxu0 0.0
    %2442 = vmatpush1.xpose.msra.mxu0 0.0
    %2443 = vmatprep.subr.mxu0 0.0
    %2444 = vmatpush1.xpose.msra.mxu0 0.0
    %2445 = vmatprep.subr.mxu0 0.0
    %2446 = vmatpush1.xpose.msra.mxu0 0.0
    %2447 = vmatprep.subr.mxu0 0.0
    %2448 = vmatpush1.xpose.msra.mxu0 0.0
    %2449 = vmatprep.subr.mxu0 0.0
    %2450 = vmatpush1.xpose.msra.mxu0 0.0
    %2451 = vmatprep.subr.mxu0 0.0
    %2452 = vmatpush1.xpose.msra.mxu0 0.0
    %2453 = vmatprep.subr.mxu0 0.0
    %2454 = vmatpush1.xpose.msra.mxu0 0.0
    %2455 = vmatprep.subr.mxu0 0.0
    %2456 = vmatpush1.xpose.msra.mxu0 0.0
    %2457 = vmatprep.subr.mxu0 0.0
    %2458 = vmatpush1.xpose.msra.mxu0 0.0
    %2459 = vmatprep.subr.mxu0 0.0
    %2460 = vmatpush1.xpose.msra.mxu0 0.0
    %2461 = vmatprep.subr.mxu0 0.0
    %2462 = vmatpush1.xpose.msra.mxu0 0.0
    %2463 = vmatprep.subr.mxu0 0.0
    %2464 = vmatpush1.xpose.msra.mxu0 0.0
    %2465 = vmatprep.subr.mxu0 0.0
    %2466 = vmatpush1.xpose.msra.mxu0 0.0
    %2467 = vmatprep.subr.mxu0 0.0
    %2468 = vmatpush1.xpose.msra.mxu0 0.0
    %2469 = vmatprep.subr.mxu0 0.0
    %2470 = vmatpush1.xpose.msra.mxu0 0.0
    %2471 = vmatprep.subr.mxu0 0.0
    %2472 = vmatpush1.xpose.msra.mxu0 0.0
    %2473 = vmatprep.mubr.f32.mxu0 0.0
    %2474 = vmatmul.mubr.f32.gmra.mrb[0].mxu0 %v2405
    %v2475 = vpop.f32.mrb[0].mxu0
    %v2476 = vadd.f32 0.0, %v2475
    %v2477 = vpop.f32.mrb[0].mxu0
    %2478 = vdwg.mxu0
    %v2479 = vmul.f32 %v2476, 0.35355338
    %v2480 = vadd.f32 %v2479, %v457
    %v2481 = vsel %vm378, %v2480, -inf
    %2482 = vmax.xlane.f32.xlu0 %v2481
    %v2483 = vpop.xlane.xlu0 %2482
    %v2484 = vsub.f32 %v2480, %v2483
    %v2485 = vmul.f32 %v2484, 1.442695
    %v2486 = vpow.pop %v2485
    %v2487 = vsel %vm378, %v2486, 0.0
    %2488 = vadd.xlane.f32.xlu0 %v2487
    %v2489 = vpop.xlane.xlu0 %2488
    %v2490 = vrcp.pop %v2489
    %v2491 = vmul.f32 %v2486, %v2490
    %2492 = vrot.lane.b32.xlu0 %v2227, 56
    %v2493 = vpop.permute.xlu0 %2492
    %v2496 = vsel %vm378, %v2491, 0
    %2498 = vmatprep.subr.mxu0 0.0
    %2499 = vmatpush1.msra.mxu0 %v2493
    %2500 = vmatprep.subr.mxu0 0.0
    %2501 = vmatpush1.msra.mxu0 0.0
    %2502 = vmatprep.subr.mxu0 0.0
    %2503 = vmatpush1.msra.mxu0 0.0
    %2504 = vmatprep.subr.mxu0 0.0
    %2505 = vmatpush1.msra.mxu0 0.0
    %2506 = vmatprep.subr.mxu0 0.0
    %2507 = vmatpush1.msra.mxu0 0.0
    %2508 = vmatprep.subr.mxu0 0.0
    %2509 = vmatpush1.msra.mxu0 0.0
    %2510 = vmatprep.subr.mxu0 0.0
    %2511 = vmatpush1.msra.mxu0 0.0
    %2512 = vmatprep.subr.mxu0 0.0
    %2513 = vmatpush1.msra.mxu0 0.0
    %2514 = vmatprep.subr.mxu0 0.0
    %2515 = vmatpush1.msra.mxu0 0.0
    %2516 = vmatprep.subr.mxu0 0.0
    %2517 = vmatpush1.msra.mxu0 0.0
    %2518 = vmatprep.subr.mxu0 0.0
    %2519 = vmatpush1.msra.mxu0 0.0
    %2520 = vmatprep.subr.mxu0 0.0
    %2521 = vmatpush1.msra.mxu0 0.0
    %2522 = vmatprep.subr.mxu0 0.0
    %2523 = vmatpush1.msra.mxu0 0.0
    %2524 = vmatprep.subr.mxu0 0.0
    %2525 = vmatpush1.msra.mxu0 0.0
    %2526 = vmatprep.subr.mxu0 0.0
    %2527 = vmatpush1.msra.mxu0 0.0
    %2528 = vmatprep.subr.mxu0 0.0
    %2529 = vmatpush1.msra.mxu0 0.0
    %2530 = vmatprep.subr.mxu0 0.0
    %2531 = vmatpush1.msra.mxu0 0.0
    %2532 = vmatprep.subr.mxu0 0.0
    %2533 = vmatpush1.msra.mxu0 0.0
    %2534 = vmatprep.subr.mxu0 0.0
    %2535 = vmatpush1.msra.mxu0 0.0
    %2536 = vmatprep.subr.mxu0 0.0
    %2537 = vmatpush1.msra.mxu0 0.0
    %2538 = vmatprep.subr.mxu0 0.0
    %2539 = vmatpush1.msra.mxu0 0.0
    %2540 = vmatprep.subr.mxu0 0.0
    %2541 = vmatpush1.msra.mxu0 0.0
    %2542 = vmatprep.subr.mxu0 0.0
    %2543 = vmatpush1.msra.mxu0 0.0
    %2544 = vmatprep.subr.mxu0 0.0
    %2545 = vmatpush1.msra.mxu0 0.0
    %2546 = vmatprep.subr.mxu0 0.0
    %2547 = vmatpush1.msra.mxu0 0.0
    %2548 = vmatprep.subr.mxu0 0.0
    %2549 = vmatpush1.msra.mxu0 0.0
    %2550 = vmatprep.subr.mxu0 0.0
    %2551 = vmatpush1.msra.mxu0 0.0
    %2552 = vmatprep.subr.mxu0 0.0
    %2553 = vmatpush1.msra.mxu0 0.0
    %2554 = vmatprep.subr.mxu0 0.0
    %2555 = vmatpush1.msra.mxu0 0.0
    %2556 = vmatprep.subr.mxu0 0.0
    %2557 = vmatpush1.msra.mxu0 0.0
    %2558 = vmatprep.subr.mxu0 0.0
    %2559 = vmatpush1.msra.mxu0 0.0
    %2560 = vmatprep.subr.mxu0 0.0
    %2561 = vmatpush1.msra.mxu0 0.0
    %2562 = vmatprep.mubr.f32.mxu0 0.0
    %2563 = vmatmul.mubr.f32.gmra.mrb[0].mxu0 %v2496
    %v2564 = vpop.f32.mrb[0].mxu0
    %v2565 = vadd.f32 0.0, %v2564
    %v2566 = vpop.f32.mrb[0].mxu0
    %2567 = vdwg.mxu0
    %2568 = vrot.lane.b32.xlu0 %v2227, 112
    %v2569 = vpop.permute.xlu0 %2568
    %2570 = vrot.lane.b32.xlu0 %v2227, 80
    %v2571 = vpop.permute.xlu0 %2570
    %v2572 = vsel %vm378, %v2569, 0
    %v2574 = vsel %vm378, %v2571, 0
    %2576 = vmatprep.subr.mxu0 0.0
    %2577 = vmatpush1.xpose.msra.mxu0 %v2574
    %2578 = vmatprep.subr.mxu0 0.0
    %2579 = vmatpush1.xpose.msra.mxu0 0.0
    %2580 = vmatprep.subr.mxu0 0.0
    %2581 = vmatpush1.xpose.msra.mxu0 0.0
    %2582 = vmatprep.subr.mxu0 0.0
    %2583 = vmatpush1.xpose.msra.mxu0 0.0
    %2584 = vmatprep.subr.mxu0 0.0
    %2585 = vmatpush1.xpose.msra.mxu0 0.0
    %2586 = vmatprep.subr.mxu0 0.0
    %2587 = vmatpush1.xpose.msra.mxu0 0.0
    %2588 = vmatprep.subr.mxu0 0.0
    %2589 = vmatpush1.xpose.msra.mxu0 0.0
    %2590 = vmatprep.subr.mxu0 0.0
    %2591 = vmatpush1.xpose.msra.mxu0 0.0
    %2592 = vmatprep.subr.mxu0 0.0
    %2593 = vmatpush1.xpose.msra.mxu0 0.0
    %2594 = vmatprep.subr.mxu0 0.0
    %2595 = vmatpush1.xpose.msra.mxu0 0.0
    %2596 = vmatprep.subr.mxu0 0.0
    %2597 = vmatpush1.xpose.msra.mxu0 0.0
    %2598 = vmatprep.subr.mxu0 0.0
    %2599 = vmatpush1.xpose.msra.mxu0 0.0
    %2600 = vmatprep.subr.mxu0 0.0
    %2601 = vmatpush1.xpose.msra.mxu0 0.0
    %2602 = vmatprep.subr.mxu0 0.0
    %2603 = vmatpush1.xpose.msra.mxu0 0.0
    %2604 = vmatprep.subr.mxu0 0.0
    %2605 = vmatpush1.xpose.msra.mxu0 0.0
    %2606 = vmatprep.subr.mxu0 0.0
    %2607 = vmatpush1.xpose.msra.mxu0 0.0
    %2608 = vmatprep.subr.mxu0 0.0
    %2609 = vmatpush1.xpose.msra.mxu0 0.0
    %2610 = vmatprep.subr.mxu0 0.0
    %2611 = vmatpush1.xpose.msra.mxu0 0.0
    %2612 = vmatprep.subr.mxu0 0.0
    %2613 = vmatpush1.xpose.msra.mxu0 0.0
    %2614 = vmatprep.subr.mxu0 0.0
    %2615 = vmatpush1.xpose.msra.mxu0 0.0
    %2616 = vmatprep.subr.mxu0 0.0
    %2617 = vmatpush1.xpose.msra.mxu0 0.0
    %2618 = vmatprep.subr.mxu0 0.0
    %2619 = vmatpush1.xpose.msra.mxu0 0.0
    %2620 = vmatprep.subr.mxu0 0.0
    %2621 = vmatpush1.xpose.msra.mxu0 0.0
    %2622 = vmatprep.subr.mxu0 0.0
    %2623 = vmatpush1.xpose.msra.mxu0 0.0
    %2624 = vmatprep.subr.mxu0 0.0
    %2625 = vmatpush1.xpose.msra.mxu0 0.0
    %2626 = vmatprep.subr.mxu0 0.0
    %2627 = vmatpush1.xpose.msra.mxu0 0.0
    %2628 = vmatprep.subr.mxu0 0.0
    %2629 = vmatpush1.xpose.msra.mxu0 0.0
    %2630 = vmatprep.subr.mxu0 0.0
    %2631 = vmatpush1.xpose.msra.mxu0 0.0
    %2632 = vmatprep.subr.mxu0 0.0
    %2633 = vmatpush1.xpose.msra.mxu0 0.0
    %2634 = vmatprep.subr.mxu0 0.0
    %2635 = vmatpush1.xpose.msra.mxu0 0.0
    %2636 = vmatprep.subr.mxu0 0.0
    %2637 = vmatpush1.xpose.msra.mxu0 0.0
    %2638 = vmatprep.subr.mxu0 0.0
    %2639 = vmatpush1.xpose.msra.mxu0 0.0
    %2640 = vmatprep.mubr.f32.mxu0 0.0
    %2641 = vmatmul.mubr.f32.gmra.mrb[0].mxu0 %v2572
    %v2642 = vpop.f32.mrb[0].mxu0
    %v2643 = vadd.f32 0.0, %v2642
    %v2644 = vpop.f32.mrb[0].mxu0
    %2645 = vdwg.mxu0
    %v2646 = vmul.f32 %v2643, 0.35355338
    %v2647 = vadd.f32 %v2646, %v457
    %v2648 = vsel %vm378, %v2647, -inf
    %2649 = vmax.xlane.f32.xlu0 %v2648
    %v2650 = vpop.xlane.xlu0 %2649
    %v2651 = vsub.f32 %v2647, %v2650
    %v2652 = vmul.f32 %v2651, 1.442695
    %v2653 = vpow.pop %v2652
    %v2654 = vsel %vm378, %v2653, 0.0
    %2655 = vadd.xlane.f32.xlu0 %v2654
    %v2656 = vpop.xlane.xlu0 %2655
    %v2657 = vrcp.pop %v2656
    %v2658 = vmul.f32 %v2653, %v2657
    %2659 = vrot.lane.b32.xlu0 %v2227, 48
    %v2660 = vpop.permute.xlu0 %2659
    %v2663 = vsel %vm378, %v2658, 0
    %2665 = vmatprep.subr.mxu0 0.0
    %2666 = vmatpush1.msra.mxu0 %v2660
    %2667 = vmatprep.subr.mxu0 0.0
    %2668 = vmatpush1.msra.mxu0 0.0
    %2669 = vmatprep.subr.mxu0 0.0
    %2670 = vmatpush1.msra.mxu0 0.0
    %2671 = vmatprep.subr.mxu0 0.0
    %2672 = vmatpush1.msra.mxu0 0.0
    %2673 = vmatprep.subr.mxu0 0.0
    %2674 = vmatpush1.msra.mxu0 0.0
    %2675 = vmatprep.subr.mxu0 0.0
    %2676 = vmatpush1.msra.mxu0 0.0
    %2677 = vmatprep.subr.mxu0 0.0
    %2678 = vmatpush1.msra.mxu0 0.0
    %2679 = vmatprep.subr.mxu0 0.0
    %2680 = vmatpush1.msra.mxu0 0.0
    %2681 = vmatprep.subr.mxu0 0.0
    %2682 = vmatpush1.msra.mxu0 0.0
    %2683 = vmatprep.subr.mxu0 0.0
    %2684 = vmatpush1.msra.mxu0 0.0
    %2685 = vmatprep.subr.mxu0 0.0
    %2686 = vmatpush1.msra.mxu0 0.0
    %2687 = vmatprep.subr.mxu0 0.0
    %2688 = vmatpush1.msra.mxu0 0.0
    %2689 = vmatprep.subr.mxu0 0.0
    %2690 = vmatpush1.msra.mxu0 0.0
    %2691 = vmatprep.subr.mxu0 0.0
    %2692 = vmatpush1.msra.mxu0 0.0
    %2693 = vmatprep.subr.mxu0 0.0
    %2694 = vmatpush1.msra.mxu0 0.0
    %2695 = vmatprep.subr.mxu0 0.0
    %2696 = vmatpush1.msra.mxu0 0.0
    %2697 = vmatprep.subr.mxu0 0.0
    %2698 = vmatpush1.msra.mxu0 0.0
    %2699 = vmatprep.subr.mxu0 0.0
    %2700 = vmatpush1.msra.mxu0 0.0
    %2701 = vmatprep.subr.mxu0 0.0
    %2702 = vmatpush1.msra.mxu0 0.0
    %2703 = vmatprep.subr.mxu0 0.0
    %2704 = vmatpush1.msra.mxu0 0.0
    %2705 = vmatprep.subr.mxu0 0.0
    %2706 = vmatpush1.msra.mxu0 0.0
    %2707 = vmatprep.subr.mxu0 0.0
    %2708 = vmatpush1.msra.mxu0 0.0
    %2709 = vmatprep.subr.mxu0 0.0
    %2710 = vmatpush1.msra.mxu0 0.0
    %2711 = vmatprep.subr.mxu0 0.0
    %2712 = vmatpush1.msra.mxu0 0.0
    %2713 = vmatprep.subr.mxu0 0.0
    %2714 = vmatpush1.msra.mxu0 0.0
    %2715 = vmatprep.subr.mxu0 0.0
    %2716 = vmatpush1.msra.mxu0 0.0
    %2717 = vmatprep.subr.mxu0 0.0
    %2718 = vmatpush1.msra.mxu0 0.0
    %2719 = vmatprep.subr.mxu0 0.0
    %2720 = vmatpush1.msra.mxu0 0.0
    %2721 = vmatprep.subr.mxu0 0.0
    %2722 = vmatpush1.msra.mxu0 0.0
    %2723 = vmatprep.subr.mxu0 0.0
    %2724 = vmatpush1.msra.mxu0 0.0
    %2725 = vmatprep.subr.mxu0 0.0
    %2726 = vmatpush1.msra.mxu0 0.0
    %2727 = vmatprep.subr.mxu0 0.0
    %2728 = vmatpush1.msra.mxu0 0.0
    %2729 = vmatprep.mubr.f32.mxu0 0.0
    %2730 = vmatmul.mubr.f32.gmra.mrb[0].mxu0 %v2663
    %v2731 = vpop.f32.mrb[0].mxu0
    %v2732 = vadd.f32 0.0, %v2731
    %v2733 = vpop.f32.mrb[0].mxu0
    %2734 = vdwg.mxu0
    %2735 = vrot.lane.b32.xlu0 %v2227, 104
    %v2736 = vpop.permute.xlu0 %2735
    %2737 = vrot.lane.b32.xlu0 %v2227, 72
    %v2738 = vpop.permute.xlu0 %2737
    %v2739 = vsel %vm378, %v2736, 0
    %v2741 = vsel %vm378, %v2738, 0
    %2743 = vmatprep.subr.mxu0 0.0
    %2744 = vmatpush1.xpose.msra.mxu0 %v2741
    %2745 = vmatprep.subr.mxu0 0.0
    %2746 = vmatpush1.xpose.msra.mxu0 0.0
    %2747 = vmatprep.subr.mxu0 0.0
    %2748 = vmatpush1.xpose.msra.mxu0 0.0
    %2749 = vmatprep.subr.mxu0 0.0
    %2750 = vmatpush1.xpose.msra.mxu0 0.0
    %2751 = vmatprep.subr.mxu0 0.0
    %2752 = vmatpush1.xpose.msra.mxu0 0.0
    %2753 = vmatprep.subr.mxu0 0.0
    %2754 = vmatpush1.xpose.msra.mxu0 0.0
    %2755 = vmatprep.subr.mxu0 0.0
    %2756 = vmatpush1.xpose.msra.mxu0 0.0
    %2757 = vmatprep.subr.mxu0 0.0
    %2758 = vmatpush1.xpose.msra.mxu0 0.0
    %2759 = vmatprep.subr.mxu0 0.0
    %2760 = vmatpush1.xpose.msra.mxu0 0.0
    %2761 = vmatprep.subr.mxu0 0.0
    %2762 = vmatpush1.xpose.msra.mxu0 0.0
    %2763 = vmatprep.subr.mxu0 0.0
    %2764 = vmatpush1.xpose.msra.mxu0 0.0
    %2765 = vmatprep.subr.mxu0 0.0
    %2766 = vmatpush1.xpose.msra.mxu0 0.0
    %2767 = vmatprep.subr.mxu0 0.0
    %2768 = vmatpush1.xpose.msra.mxu0 0.0
    %2769 = vmatprep.subr.mxu0 0.0
    %2770 = vmatpush1.xpose.msra.mxu0 0.0
    %2771 = vmatprep.subr.mxu0 0.0
    %2772 = vmatpush1.xpose.msra.mxu0 0.0
    %2773 = vmatprep.subr.mxu0 0.0
    %2774 = vmatpush1.xpose.msra.mxu0 0.0
    %2775 = vmatprep.subr.mxu0 0.0
    %2776 = vmatpush1.xpose.msra.mxu0 0.0
    %2777 = vmatprep.subr.mxu0 0.0
    %2778 = vmatpush1.xpose.msra.mxu0 0.0
    %2779 = vmatprep.subr.mxu0 0.0
    %2780 = vmatpush1.xpose.msra.mxu0 0.0
    %2781 = vmatprep.subr.mxu0 0.0
    %2782 = vmatpush1.xpose.msra.mxu0 0.0
    %2783 = vmatprep.subr.mxu0 0.0
    %2784 = vmatpush1.xpose.msra.mxu0 0.0
    %2785 = vmatprep.subr.mxu0 0.0
    %2786 = vmatpush1.xpose.msra.mxu0 0.0
    %2787 = vmatprep.subr.mxu0 0.0
    %2788 = vmatpush1.xpose.msra.mxu0 0.0
    %2789 = vmatprep.subr.mxu0 0.0
    %2790 = vmatpush1.xpose.msra.mxu0 0.0
    %2791 = vmatprep.subr.mxu0 0.0
    %2792 = vmatpush1.xpose.msra.mxu0 0.0
    %2793 = vmatprep.subr.mxu0 0.0
    %2794 = vmatpush1.xpose.msra.mxu0 0.0
    %2795 = vmatprep.subr.mxu0 0.0
    %2796 = vmatpush1.xpose.msra.mxu0 0.0
    %2797 = vmatprep.subr.mxu0 0.0
    %2798 = vmatpush1.xpose.msra.mxu0 0.0
    %2799 = vmatprep.subr.mxu0 0.0
    %2800 = vmatpush1.xpose.msra.mxu0 0.0
    %2801 = vmatprep.subr.mxu0 0.0
    %2802 = vmatpush1.xpose.msra.mxu0 0.0
    %2803 = vmatprep.subr.mxu0 0.0
    %2804 = vmatpush1.xpose.msra.mxu0 0.0
    %2805 = vmatprep.subr.mxu0 0.0
    %2806 = vmatpush1.xpose.msra.mxu0 0.0
    %2807 = vmatprep.mubr.f32.mxu0 0.0
    %2808 = vmatmul.mubr.f32.gmra.mrb[0].mxu0 %v2739
    %v2809 = vpop.f32.mrb[0].mxu0
    %v2810 = vadd.f32 0.0, %v2809
    %v2811 = vpop.f32.mrb[0].mxu0
    %2812 = vdwg.mxu0
    %v2813 = vmul.f32 %v2810, 0.35355338
    %v2814 = vadd.f32 %v2813, %v457
    %v2815 = vsel %vm378, %v2814, -inf
    %2816 = vmax.xlane.f32.xlu0 %v2815
    %v2817 = vpop.xlane.xlu0 %2816
    %v2818 = vsub.f32 %v2814, %v2817
    %v2819 = vmul.f32 %v2818, 1.442695
    %v2820 = vpow.pop %v2819
    %v2821 = vsel %vm378, %v2820, 0.0
    %2822 = vadd.xlane.f32.xlu0 %v2821
    %v2823 = vpop.xlane.xlu0 %2822
    %v2824 = vrcp.pop %v2823
    %v2825 = vmul.f32 %v2820, %v2824
    %2826 = vrot.lane.b32.xlu0 %v2227, 40
    %v2827 = vpop.permute.xlu0 %2826
    %v2830 = vsel %vm378, %v2825, 0
    %2832 = vmatprep.subr.mxu0 0.0
    %2833 = vmatpush1.msra.mxu0 %v2827
    %2834 = vmatprep.subr.mxu0 0.0
    %2835 = vmatpush1.msra.mxu0 0.0
    %2836 = vmatprep.subr.mxu0 0.0
    %2837 = vmatpush1.msra.mxu0 0.0
    %2838 = vmatprep.subr.mxu0 0.0
    %2839 = vmatpush1.msra.mxu0 0.0
    %2840 = vmatprep.subr.mxu0 0.0
    %2841 = vmatpush1.msra.mxu0 0.0
    %2842 = vmatprep.subr.mxu0 0.0
    %2843 = vmatpush1.msra.mxu0 0.0
    %2844 = vmatprep.subr.mxu0 0.0
    %2845 = vmatpush1.msra.mxu0 0.0
    %2846 = vmatprep.subr.mxu0 0.0
    %2847 = vmatpush1.msra.mxu0 0.0
    %2848 = vmatprep.subr.mxu0 0.0
    %2849 = vmatpush1.msra.mxu0 0.0
    %2850 = vmatprep.subr.mxu0 0.0
    %2851 = vmatpush1.msra.mxu0 0.0
    %2852 = vmatprep.subr.mxu0 0.0
    %2853 = vmatpush1.msra.mxu0 0.0
    %2854 = vmatprep.subr.mxu0 0.0
    %2855 = vmatpush1.msra.mxu0 0.0
    %2856 = vmatprep.subr.mxu0 0.0
    %2857 = vmatpush1.msra.mxu0 0.0
    %2858 = vmatprep.subr.mxu0 0.0
    %2859 = vmatpush1.msra.mxu0 0.0
    %2860 = vmatprep.subr.mxu0 0.0
    %2861 = vmatpush1.msra.mxu0 0.0
    %2862 = vmatprep.subr.mxu0 0.0
    %2863 = vmatpush1.msra.mxu0 0.0
    %2864 = vmatprep.subr.mxu0 0.0
    %2865 = vmatpush1.msra.mxu0 0.0
    %2866 = vmatprep.subr.mxu0 0.0
    %2867 = vmatpush1.msra.mxu0 0.0
    %2868 = vmatprep.subr.mxu0 0.0
    %2869 = vmatpush1.msra.mxu0 0.0
    %2870 = vmatprep.subr.mxu0 0.0
    %2871 = vmatpush1.msra.mxu0 0.0
    %2872 = vmatprep.subr.mxu0 0.0
    %2873 = vmatpush1.msra.mxu0 0.0
    %2874 = vmatprep.subr.mxu0 0.0
    %2875 = vmatpush1.msra.mxu0 0.0
    %2876 = vmatprep.subr.mxu0 0.0
    %2877 = vmatpush1.msra.mxu0 0.0
    %2878 = vmatprep.subr.mxu0 0.0
    %2879 = vmatpush1.msra.mxu0 0.0
    %2880 = vmatprep.subr.mxu0 0.0
    %2881 = vmatpush1.msra.mxu0 0.0
    %2882 = vmatprep.subr.mxu0 0.0
    %2883 = vmatpush1.msra.mxu0 0.0
    %2884 = vmatprep.subr.mxu0 0.0
    %2885 = vmatpush1.msra.mxu0 0.0
    %2886 = vmatprep.subr.mxu0 0.0
    %2887 = vmatpush1.msra.mxu0 0.0
    %2888 = vmatprep.subr.mxu0 0.0
    %2889 = vmatpush1.msra.mxu0 0.0
    %2890 = vmatprep.subr.mxu0 0.0
    %2891 = vmatpush1.msra.mxu0 0.0
    %2892 = vmatprep.subr.mxu0 0.0
    %2893 = vmatpush1.msra.mxu0 0.0
    %2894 = vmatprep.subr.mxu0 0.0
    %2895 = vmatpush1.msra.mxu0 0.0
    %2896 = vmatprep.mubr.f32.mxu0 0.0
    %2897 = vmatmul.mubr.f32.gmra.mrb[0].mxu0 %v2830
    %v2898 = vpop.f32.mrb[0].mxu0
    %v2899 = vadd.f32 0.0, %v2898
    %v2900 = vpop.f32.mrb[0].mxu0
    %2901 = vdwg.mxu0
    %2903 = vrot.lane.b32.xlu0 %v2565, 8
    %v2904 = vpop.permute.xlu0 %2903
    %2907 = vrot.lane.b32.xlu0 %v2732, 16
    %v2908 = vpop.permute.xlu0 %2907
    %2911 = vrot.lane.b32.xlu0 %v2899, 24
    %v2912 = vpop.permute.xlu0 %2911
    %v2914 = vsel %vm378, %v2398, %v2904
    %v2915 = vsel %vm1060, %v2914, %v2908
    %v2916 = vsel %vm1062, %v2915, %v2912
    %2918 = vrot.lane.b32.xlu0 %v2232, 96
    %v2919 = vpop.permute.xlu0 %2918
    %v2920 = vsel %vm378, %v2232, 0
    %v2922 = vsel %vm378, %v2919, 0
    %2924 = vmatprep.subr.mxu0 0.0
    %2925 = vmatpush1.xpose.msra.mxu0 %v2922
    %2926 = vmatprep.subr.mxu0 0.0
    %2927 = vmatpush1.xpose.msra.mxu0 0.0
    %2928 = vmatprep.subr.mxu0 0.0
    %2929 = vmatpush1.xpose.msra.mxu0 0.0
    %2930 = vmatprep.subr.mxu0 0.0
    %2931 = vmatpush1.xpose.msra.mxu0 0.0
    %2932 = vmatprep.subr.mxu0 0.0
    %2933 = vmatpush1.xpose.msra.mxu0 0.0
    %2934 = vmatprep.subr.mxu0 0.0
    %2935 = vmatpush1.xpose.msra.mxu0 0.0
    %2936 = vmatprep.subr.mxu0 0.0
    %2937 = vmatpush1.xpose.msra.mxu0 0.0
    %2938 = vmatprep.subr.mxu0 0.0
    %2939 = vmatpush1.xpose.msra.mxu0 0.0
    %2940 = vmatprep.subr.mxu0 0.0
    %2941 = vmatpush1.xpose.msra.mxu0 0.0
    %2942 = vmatprep.subr.mxu0 0.0
    %2943 = vmatpush1.xpose.msra.mxu0 0.0
    %2944 = vmatprep.subr.mxu0 0.0
    %2945 = vmatpush1.xpose.msra.mxu0 0.0
    %2946 = vmatprep.subr.mxu0 0.0
    %2947 = vmatpush1.xpose.msra.mxu0 0.0
    %2948 = vmatprep.subr.mxu0 0.0
    %2949 = vmatpush1.xpose.msra.mxu0 0.0
    %2950 = vmatprep.subr.mxu0 0.0
    %2951 = vmatpush1.xpose.msra.mxu0 0.0
    %2952 = vmatprep.subr.mxu0 0.0
    %2953 = vmatpush1.xpose.msra.mxu0 0.0
    %2954 = vmatprep.subr.mxu0 0.0
    %2955 = vmatpush1.xpose.msra.mxu0 0.0
    %2956 = vmatprep.subr.mxu0 0.0
    %2957 = vmatpush1.xpose.msra.mxu0 0.0
    %2958 = vmatprep.subr.mxu0 0.0
    %2959 = vmatpush1.xpose.msra.mxu0 0.0
    %2960 = vmatprep.subr.mxu0 0.0
    %2961 = vmatpush1.xpose.msra.mxu0 0.0
    %2962 = vmatprep.subr.mxu0 0.0
    %2963 = vmatpush1.xpose.msra.mxu0 0.0
    %2964 = vmatprep.subr.mxu0 0.0
    %2965 = vmatpush1.xpose.msra.mxu0 0.0
    %2966 = vmatprep.subr.mxu0 0.0
    %2967 = vmatpush1.xpose.msra.mxu0 0.0
    %2968 = vmatprep.subr.mxu0 0.0
    %2969 = vmatpush1.xpose.msra.mxu0 0.0
    %2970 = vmatprep.subr.mxu0 0.0
    %2971 = vmatpush1.xpose.msra.mxu0 0.0
    %2972 = vmatprep.subr.mxu0 0.0
    %2973 = vmatpush1.xpose.msra.mxu0 0.0
    %2974 = vmatprep.subr.mxu0 0.0
    %2975 = vmatpush1.xpose.msra.mxu0 0.0
    %2976 = vmatprep.subr.mxu0 0.0
    %2977 = vmatpush1.xpose.msra.mxu0 0.0
    %2978 = vmatprep.subr.mxu0 0.0
    %2979 = vmatpush1.xpose.msra.mxu0 0.0
    %2980 = vmatprep.subr.mxu0 0.0
    %2981 = vmatpush1.xpose.msra.mxu0 0.0
    %2982 = vmatprep.subr.mxu0 0.0
    %2983 = vmatpush1.xpose.msra.mxu0 0.0
    %2984 = vmatprep.subr.mxu0 0.0
    %2985 = vmatpush1.xpose.msra.mxu0 0.0
    %2986 = vmatprep.subr.mxu0 0.0
    %2987 = vmatpush1.xpose.msra.mxu0 0.0
    %2988 = vmatprep.mubr.f32.mxu0 0.0
    %2989 = vmatmul.mubr.f32.gmra.mrb[0].mxu0 %v2920
    %v2990 = vpop.f32.mrb[0].mxu0
    %v2991 = vadd.f32 0.0, %v2990
    %v2992 = vpop.f32.mrb[0].mxu0
    %2993 = vdwg.mxu0
    %v2994 = vmul.f32 %v2991, 0.35355338
    %v2995 = vadd.f32 %v2994, %v1145
    %v2996 = vsel %vm378, %v2995, -inf
    %2997 = vmax.xlane.f32.xlu0 %v2996
    %v2998 = vpop.xlane.xlu0 %2997
    %v2999 = vsub.f32 %v2995, %v2998
    %v3000 = vmul.f32 %v2999, 1.442695
    %v3001 = vpow.pop %v3000
    %v3002 = vsel %vm378, %v3001, 0.0
    %3003 = vadd.xlane.f32.xlu0 %v3002
    %v3004 = vpop.xlane.xlu0 %3003
    %v3005 = vrcp.pop %v3004
    %v3006 = vmul.f32 %v3001, %v3005
    %3007 = vrot.lane.b32.xlu0 %v2232, 64
    %v3008 = vpop.permute.xlu0 %3007
    %v3011 = vsel %vm378, %v3006, 0
    %3013 = vmatprep.subr.mxu0 0.0
    %3014 = vmatpush1.msra.mxu0 %v3008
    %3015 = vmatprep.subr.mxu0 0.0
    %3016 = vmatpush1.msra.mxu0 0.0
    %3017 = vmatprep.subr.mxu0 0.0
    %3018 = vmatpush1.msra.mxu0 0.0
    %3019 = vmatprep.subr.mxu0 0.0
    %3020 = vmatpush1.msra.mxu0 0.0
    %3021 = vmatprep.subr.mxu0 0.0
    %3022 = vmatpush1.msra.mxu0 0.0
    %3023 = vmatprep.subr.mxu0 0.0
    %3024 = vmatpush1.msra.mxu0 0.0
    %3025 = vmatprep.subr.mxu0 0.0
    %3026 = vmatpush1.msra.mxu0 0.0
    %3027 = vmatprep.subr.mxu0 0.0
    %3028 = vmatpush1.msra.mxu0 0.0
    %3029 = vmatprep.subr.mxu0 0.0
    %3030 = vmatpush1.msra.mxu0 0.0
    %3031 = vmatprep.subr.mxu0 0.0
    %3032 = vmatpush1.msra.mxu0 0.0
    %3033 = vmatprep.subr.mxu0 0.0
    %3034 = vmatpush1.msra.mxu0 0.0
    %3035 = vmatprep.subr.mxu0 0.0
    %3036 = vmatpush1.msra.mxu0 0.0
    %3037 = vmatprep.subr.mxu0 0.0
    %3038 = vmatpush1.msra.mxu0 0.0
    %3039 = vmatprep.subr.mxu0 0.0
    %3040 = vmatpush1.msra.mxu0 0.0
    %3041 = vmatprep.subr.mxu0 0.0
    %3042 = vmatpush1.msra.mxu0 0.0
    %3043 = vmatprep.subr.mxu0 0.0
    %3044 = vmatpush1.msra.mxu0 0.0
    %3045 = vmatprep.subr.mxu0 0.0
    %3046 = vmatpush1.msra.mxu0 0.0
    %3047 = vmatprep.subr.mxu0 0.0
    %3048 = vmatpush1.msra.mxu0 0.0
    %3049 = vmatprep.subr.mxu0 0.0
    %3050 = vmatpush1.msra.mxu0 0.0
    %3051 = vmatprep.subr.mxu0 0.0
    %3052 = vmatpush1.msra.mxu0 0.0
    %3053 = vmatprep.subr.mxu0 0.0
    %3054 = vmatpush1.msra.mxu0 0.0
    %3055 = vmatprep.subr.mxu0 0.0
    %3056 = vmatpush1.msra.mxu0 0.0
    %3057 = vmatprep.subr.mxu0 0.0
    %3058 = vmatpush1.msra.mxu0 0.0
    %3059 = vmatprep.subr.mxu0 0.0
    %3060 = vmatpush1.msra.mxu0 0.0
    %3061 = vmatprep.subr.mxu0 0.0
    %3062 = vmatpush1.msra.mxu0 0.0
    %3063 = vmatprep.subr.mxu0 0.0
    %3064 = vmatpush1.msra.mxu0 0.0
    %3065 = vmatprep.subr.mxu0 0.0
    %3066 = vmatpush1.msra.mxu0 0.0
    %3067 = vmatprep.subr.mxu0 0.0
    %3068 = vmatpush1.msra.mxu0 0.0
    %3069 = vmatprep.subr.mxu0 0.0
    %3070 = vmatpush1.msra.mxu0 0.0
    %3071 = vmatprep.subr.mxu0 0.0
    %3072 = vmatpush1.msra.mxu0 0.0
    %3073 = vmatprep.subr.mxu0 0.0
    %3074 = vmatpush1.msra.mxu0 0.0
    %3075 = vmatprep.subr.mxu0 0.0
    %3076 = vmatpush1.msra.mxu0 0.0
    %3077 = vmatprep.mubr.f32.mxu0 0.0
    %3078 = vmatmul.mubr.f32.gmra.mrb[0].mxu0 %v3011
    %v3079 = vpop.f32.mrb[0].mxu0
    %v3080 = vadd.f32 0.0, %v3079
    %v3081 = vpop.f32.mrb[0].mxu0
    %3082 = vdwg.mxu0
    %3083 = vrot.lane.b32.xlu0 %v2232, 120
    %v3084 = vpop.permute.xlu0 %3083
    %3085 = vrot.lane.b32.xlu0 %v2232, 88
    %v3086 = vpop.permute.xlu0 %3085
    %v3087 = vsel %vm378, %v3084, 0
    %v3089 = vsel %vm378, %v3086, 0
    %3091 = vmatprep.subr.mxu0 0.0
    %3092 = vmatpush1.xpose.msra.mxu0 %v3089
    %3093 = vmatprep.subr.mxu0 0.0
    %3094 = vmatpush1.xpose.msra.mxu0 0.0
    %3095 = vmatprep.subr.mxu0 0.0
    %3096 = vmatpush1.xpose.msra.mxu0 0.0
    %3097 = vmatprep.subr.mxu0 0.0
    %3098 = vmatpush1.xpose.msra.mxu0 0.0
    %3099 = vmatprep.subr.mxu0 0.0
    %3100 = vmatpush1.xpose.msra.mxu0 0.0
    %3101 = vmatprep.subr.mxu0 0.0
    %3102 = vmatpush1.xpose.msra.mxu0 0.0
    %3103 = vmatprep.subr.mxu0 0.0
    %3104 = vmatpush1.xpose.msra.mxu0 0.0
    %3105 = vmatprep.subr.mxu0 0.0
    %3106 = vmatpush1.xpose.msra.mxu0 0.0
    %3107 = vmatprep.subr.mxu0 0.0
    %3108 = vmatpush1.xpose.msra.mxu0 0.0
    %3109 = vmatprep.subr.mxu0 0.0
    %3110 = vmatpush1.xpose.msra.mxu0 0.0
    %3111 = vmatprep.subr.mxu0 0.0
    %3112 = vmatpush1.xpose.msra.mxu0 0.0
    %3113 = vmatprep.subr.mxu0 0.0
    %3114 = vmatpush1.xpose.msra.mxu0 0.0
    %3115 = vmatprep.subr.mxu0 0.0
    %3116 = vmatpush1.xpose.msra.mxu0 0.0
    %3117 = vmatprep.subr.mxu0 0.0
    %3118 = vmatpush1.xpose.msra.mxu0 0.0
    %3119 = vmatprep.subr.mxu0 0.0
    %3120 = vmatpush1.xpose.msra.mxu0 0.0
    %3121 = vmatprep.subr.mxu0 0.0
    %3122 = vmatpush1.xpose.msra.mxu0 0.0
    %3123 = vmatprep.subr.mxu0 0.0
    %3124 = vmatpush1.xpose.msra.mxu0 0.0
    %3125 = vmatprep.subr.mxu0 0.0
    %3126 = vmatpush1.xpose.msra.mxu0 0.0
    %3127 = vmatprep.subr.mxu0 0.0
    %3128 = vmatpush1.xpose.msra.mxu0 0.0
    %3129 = vmatprep.subr.mxu0 0.0
    %3130 = vmatpush1.xpose.msra.mxu0 0.0
    %3131 = vmatprep.subr.mxu0 0.0
    %3132 = vmatpush1.xpose.msra.mxu0 0.0
    %3133 = vmatprep.subr.mxu0 0.0
    %3134 = vmatpush1.xpose.msra.mxu0 0.0
    %3135 = vmatprep.subr.mxu0 0.0
    %3136 = vmatpush1.xpose.msra.mxu0 0.0
    %3137 = vmatprep.subr.mxu0 0.0
    %3138 = vmatpush1.xpose.msra.mxu0 0.0
    %3139 = vmatprep.subr.mxu0 0.0
    %3140 = vmatpush1.xpose.msra.mxu0 0.0
    %3141 = vmatprep.subr.mxu0 0.0
    %3142 = vmatpush1.xpose.msra.mxu0 0.0
    %3143 = vmatprep.subr.mxu0 0.0
    %3144 = vmatpush1.xpose.msra.mxu0 0.0
    %3145 = vmatprep.subr.mxu0 0.0
    %3146 = vmatpush1.xpose.msra.mxu0 0.0
    %3147 = vmatprep.subr.mxu0 0.0
    %3148 = vmatpush1.xpose.msra.mxu0 0.0
    %3149 = vmatprep.subr.mxu0 0.0
    %3150 = vmatpush1.xpose.msra.mxu0 0.0
    %3151 = vmatprep.subr.mxu0 0.0
    %3152 = vmatpush1.xpose.msra.mxu0 0.0
    %3153 = vmatprep.subr.mxu0 0.0
    %3154 = vmatpush1.xpose.msra.mxu0 0.0
    %3155 = vmatprep.mubr.f32.mxu0 0.0
    %3156 = vmatmul.mubr.f32.gmra.mrb[0].mxu0 %v3087
    %v3157 = vpop.f32.mrb[0].mxu0
    %v3158 = vadd.f32 0.0, %v3157
    %v3159 = vpop.f32.mrb[0].mxu0
    %3160 = vdwg.mxu0
    %v3161 = vmul.f32 %v3158, 0.35355338
    %v3162 = vadd.f32 %v3161, %v1145
    %v3163 = vsel %vm378, %v3162, -inf
    %3164 = vmax.xlane.f32.xlu0 %v3163
    %v3165 = vpop.xlane.xlu0 %3164
    %v3166 = vsub.f32 %v3162, %v3165
    %v3167 = vmul.f32 %v3166, 1.442695
    %v3168 = vpow.pop %v3167
    %v3169 = vsel %vm378, %v3168, 0.0
    %3170 = vadd.xlane.f32.xlu0 %v3169
    %v3171 = vpop.xlane.xlu0 %3170
    %v3172 = vrcp.pop %v3171
    %v3173 = vmul.f32 %v3168, %v3172
    %3174 = vrot.lane.b32.xlu0 %v2232, 56
    %v3175 = vpop.permute.xlu0 %3174
    %v3178 = vsel %vm378, %v3173, 0
    %3180 = vmatprep.subr.mxu0 0.0
    %3181 = vmatpush1.msra.mxu0 %v3175
    %3182 = vmatprep.subr.mxu0 0.0
    %3183 = vmatpush1.msra.mxu0 0.0
    %3184 = vmatprep.subr.mxu0 0.0
    %3185 = vmatpush1.msra.mxu0 0.0
    %3186 = vmatprep.subr.mxu0 0.0
    %3187 = vmatpush1.msra.mxu0 0.0
    %3188 = vmatprep.subr.mxu0 0.0
    %3189 = vmatpush1.msra.mxu0 0.0
    %3190 = vmatprep.subr.mxu0 0.0
    %3191 = vmatpush1.msra.mxu0 0.0
    %3192 = vmatprep.subr.mxu0 0.0
    %3193 = vmatpush1.msra.mxu0 0.0
    %3194 = vmatprep.subr.mxu0 0.0
    %3195 = vmatpush1.msra.mxu0 0.0
    %3196 = vmatprep.subr.mxu0 0.0
    %3197 = vmatpush1.msra.mxu0 0.0
    %3198 = vmatprep.subr.mxu0 0.0
    %3199 = vmatpush1.msra.mxu0 0.0
    %3200 = vmatprep.subr.mxu0 0.0
    %3201 = vmatpush1.msra.mxu0 0.0
    %3202 = vmatprep.subr.mxu0 0.0
    %3203 = vmatpush1.msra.mxu0 0.0
    %3204 = vmatprep.subr.mxu0 0.0
    %3205 = vmatpush1.msra.mxu0 0.0
    %3206 = vmatprep.subr.mxu0 0.0
    %3207 = vmatpush1.msra.mxu0 0.0
    %3208 = vmatprep.subr.mxu0 0.0
    %3209 = vmatpush1.msra.mxu0 0.0
    %3210 = vmatprep.subr.mxu0 0.0
    %3211 = vmatpush1.msra.mxu0 0.0
    %3212 = vmatprep.subr.mxu0 0.0
    %3213 = vmatpush1.msra.mxu0 0.0
    %3214 = vmatprep.subr.mxu0 0.0
    %3215 = vmatpush1.msra.mxu0 0.0
    %3216 = vmatprep.subr.mxu0 0.0
    %3217 = vmatpush1.msra.mxu0 0.0
    %3218 = vmatprep.subr.mxu0 0.0
    %3219 = vmatpush1.msra.mxu0 0.0
    %3220 = vmatprep.subr.mxu0 0.0
    %3221 = vmatpush1.msra.mxu0 0.0
    %3222 = vmatprep.subr.mxu0 0.0
    %3223 = vmatpush1.msra.mxu0 0.0
    %3224 = vmatprep.subr.mxu0 0.0
    %3225 = vmatpush1.msra.mxu0 0.0
    %3226 = vmatprep.subr.mxu0 0.0
    %3227 = vmatpush1.msra.mxu0 0.0
    %3228 = vmatprep.subr.mxu0 0.0
    %3229 = vmatpush1.msra.mxu0 0.0
    %3230 = vmatprep.subr.mxu0 0.0
    %3231 = vmatpush1.msra.mxu0 0.0
    %3232 = vmatprep.subr.mxu0 0.0
    %3233 = vmatpush1.msra.mxu0 0.0
    %3234 = vmatprep.subr.mxu0 0.0
    %3235 = vmatpush1.msra.mxu0 0.0
    %3236 = vmatprep.subr.mxu0 0.0
    %3237 = vmatpush1.msra.mxu0 0.0
    %3238 = vmatprep.subr.mxu0 0.0
    %3239 = vmatpush1.msra.mxu0 0.0
    %3240 = vmatprep.subr.mxu0 0.0
    %3241 = vmatpush1.msra.mxu0 0.0
    %3242 = vmatprep.subr.mxu0 0.0
    %3243 = vmatpush1.msra.mxu0 0.0
    %3244 = vmatprep.mubr.f32.mxu0 0.0
    %3245 = vmatmul.mubr.f32.gmra.mrb[0].mxu0 %v3178
    %v3246 = vpop.f32.mrb[0].mxu0
    %v3247 = vadd.f32 0.0, %v3246
    %v3248 = vpop.f32.mrb[0].mxu0
    %3249 = vdwg.mxu0
    %3250 = vrot.lane.b32.xlu0 %v2232, 112
    %v3251 = vpop.permute.xlu0 %3250
    %3252 = vrot.lane.b32.xlu0 %v2232, 80
    %v3253 = vpop.permute.xlu0 %3252
    %v3254 = vsel %vm378, %v3251, 0
    %v3256 = vsel %vm378, %v3253, 0
    %3258 = vmatprep.subr.mxu0 0.0
    %3259 = vmatpush1.xpose.msra.mxu0 %v3256
    %3260 = vmatprep.subr.mxu0 0.0
    %3261 = vmatpush1.xpose.msra.mxu0 0.0
    %3262 = vmatprep.subr.mxu0 0.0
    %3263 = vmatpush1.xpose.msra.mxu0 0.0
    %3264 = vmatprep.subr.mxu0 0.0
    %3265 = vmatpush1.xpose.msra.mxu0 0.0
    %3266 = vmatprep.subr.mxu0 0.0
    %3267 = vmatpush1.xpose.msra.mxu0 0.0
    %3268 = vmatprep.subr.mxu0 0.0
    %3269 = vmatpush1.xpose.msra.mxu0 0.0
    %3270 = vmatprep.subr.mxu0 0.0
    %3271 = vmatpush1.xpose.msra.mxu0 0.0
    %3272 = vmatprep.subr.mxu0 0.0
    %3273 = vmatpush1.xpose.msra.mxu0 0.0
    %3274 = vmatprep.subr.mxu0 0.0
    %3275 = vmatpush1.xpose.msra.mxu0 0.0
    %3276 = vmatprep.subr.mxu0 0.0
    %3277 = vmatpush1.xpose.msra.mxu0 0.0
    %3278 = vmatprep.subr.mxu0 0.0
    %3279 = vmatpush1.xpose.msra.mxu0 0.0
    %3280 = vmatprep.subr.mxu0 0.0
    %3281 = vmatpush1.xpose.msra.mxu0 0.0
    %3282 = vmatprep.subr.mxu0 0.0
    %3283 = vmatpush1.xpose.msra.mxu0 0.0
    %3284 = vmatprep.subr.mxu0 0.0
    %3285 = vmatpush1.xpose.msra.mxu0 0.0
    %3286 = vmatprep.subr.mxu0 0.0
    %3287 = vmatpush1.xpose.msra.mxu0 0.0
    %3288 = vmatprep.subr.mxu0 0.0
    %3289 = vmatpush1.xpose.msra.mxu0 0.0
    %3290 = vmatprep.subr.mxu0 0.0
    %3291 = vmatpush1.xpose.msra.mxu0 0.0
    %3292 = vmatprep.subr.mxu0 0.0
    %3293 = vmatpush1.xpose.msra.mxu0 0.0
    %3294 = vmatprep.subr.mxu0 0.0
    %3295 = vmatpush1.xpose.msra.mxu0 0.0
    %3296 = vmatprep.subr.mxu0 0.0
    %3297 = vmatpush1.xpose.msra.mxu0 0.0
    %3298 = vmatprep.subr.mxu0 0.0
    %3299 = vmatpush1.xpose.msra.mxu0 0.0
    %3300 = vmatprep.subr.mxu0 0.0
    %3301 = vmatpush1.xpose.msra.mxu0 0.0
    %3302 = vmatprep.subr.mxu0 0.0
    %3303 = vmatpush1.xpose.msra.mxu0 0.0
    %3304 = vmatprep.subr.mxu0 0.0
    %3305 = vmatpush1.xpose.msra.mxu0 0.0
    %3306 = vmatprep.subr.mxu0 0.0
    %3307 = vmatpush1.xpose.msra.mxu0 0.0
    %3308 = vmatprep.subr.mxu0 0.0
    %3309 = vmatpush1.xpose.msra.mxu0 0.0
    %3310 = vmatprep.subr.mxu0 0.0
    %3311 = vmatpush1.xpose.msra.mxu0 0.0
    %3312 = vmatprep.subr.mxu0 0.0
    %3313 = vmatpush1.xpose.msra.mxu0 0.0
    %3314 = vmatprep.subr.mxu0 0.0
    %3315 = vmatpush1.xpose.msra.mxu0 0.0
    %3316 = vmatprep.subr.mxu0 0.0
    %3317 = vmatpush1.xpose.msra.mxu0 0.0
    %3318 = vmatprep.subr.mxu0 0.0
    %3319 = vmatpush1.xpose.msra.mxu0 0.0
    %3320 = vmatprep.subr.mxu0 0.0
    %3321 = vmatpush1.xpose.msra.mxu0 0.0
    %3322 = vmatprep.mubr.f32.mxu0 0.0
    %3323 = vmatmul.mubr.f32.gmra.mrb[0].mxu0 %v3254
    %v3324 = vpop.f32.mrb[0].mxu0
    %v3325 = vadd.f32 0.0, %v3324
    %v3326 = vpop.f32.mrb[0].mxu0
    %3327 = vdwg.mxu0
    %v3328 = vmul.f32 %v3325, 0.35355338
    %v3329 = vadd.f32 %v3328, %v1145
    %v3330 = vsel %vm378, %v3329, -inf
    %3331 = vmax.xlane.f32.xlu0 %v3330
    %v3332 = vpop.xlane.xlu0 %3331
    %v3333 = vsub.f32 %v3329, %v3332
    %v3334 = vmul.f32 %v3333, 1.442695
    %v3335 = vpow.pop %v3334
    %v3336 = vsel %vm378, %v3335, 0.0
    %3337 = vadd.xlane.f32.xlu0 %v3336
    %v3338 = vpop.xlane.xlu0 %3337
    %v3339 = vrcp.pop %v3338
    %v3340 = vmul.f32 %v3335, %v3339
    %3341 = vrot.lane.b32.xlu0 %v2232, 48
    %v3342 = vpop.permute.xlu0 %3341
    %v3345 = vsel %vm378, %v3340, 0
    %3347 = vmatprep.subr.mxu0 0.0
    %3348 = vmatpush1.msra.mxu0 %v3342
    %3349 = vmatprep.subr.mxu0 0.0
    %3350 = vmatpush1.msra.mxu0 0.0
    %3351 = vmatprep.subr.mxu0 0.0
    %3352 = vmatpush1.msra.mxu0 0.0
    %3353 = vmatprep.subr.mxu0 0.0
    %3354 = vmatpush1.msra.mxu0 0.0
    %3355 = vmatprep.subr.mxu0 0.0
    %3356 = vmatpush1.msra.mxu0 0.0
    %3357 = vmatprep.subr.mxu0 0.0
    %3358 = vmatpush1.msra.mxu0 0.0
    %3359 = vmatprep.subr.mxu0 0.0
    %3360 = vmatpush1.msra.mxu0 0.0
    %3361 = vmatprep.subr.mxu0 0.0
    %3362 = vmatpush1.msra.mxu0 0.0
    %3363 = vmatprep.subr.mxu0 0.0
    %3364 = vmatpush1.msra.mxu0 0.0
    %3365 = vmatprep.subr.mxu0 0.0
    %3366 = vmatpush1.msra.mxu0 0.0
    %3367 = vmatprep.subr.mxu0 0.0
    %3368 = vmatpush1.msra.mxu0 0.0
    %3369 = vmatprep.subr.mxu0 0.0
    %3370 = vmatpush1.msra.mxu0 0.0
    %3371 = vmatprep.subr.mxu0 0.0
    %3372 = vmatpush1.msra.mxu0 0.0
    %3373 = vmatprep.subr.mxu0 0.0
    %3374 = vmatpush1.msra.mxu0 0.0
    %3375 = vmatprep.subr.mxu0 0.0
    %3376 = vmatpush1.msra.mxu0 0.0
    %3377 = vmatprep.subr.mxu0 0.0
    %3378 = vmatpush1.msra.mxu0 0.0
    %3379 = vmatprep.subr.mxu0 0.0
    %3380 = vmatpush1.msra.mxu0 0.0
    %3381 = vmatprep.subr.mxu0 0.0
    %3382 = vmatpush1.msra.mxu0 0.0
    %3383 = vmatprep.subr.mxu0 0.0
    %3384 = vmatpush1.msra.mxu0 0.0
    %3385 = vmatprep.subr.mxu0 0.0
    %3386 = vmatpush1.msra.mxu0 0.0
    %3387 = vmatprep.subr.mxu0 0.0
    %3388 = vmatpush1.msra.mxu0 0.0
    %3389 = vmatprep.subr.mxu0 0.0
    %3390 = vmatpush1.msra.mxu0 0.0
    %3391 = vmatprep.subr.mxu0 0.0
    %3392 = vmatpush1.msra.mxu0 0.0
    %3393 = vmatprep.subr.mxu0 0.0
    %3394 = vmatpush1.msra.mxu0 0.0
    %3395 = vmatprep.subr.mxu0 0.0
    %3396 = vmatpush1.msra.mxu0 0.0
    %3397 = vmatprep.subr.mxu0 0.0
    %3398 = vmatpush1.msra.mxu0 0.0
    %3399 = vmatprep.subr.mxu0 0.0
    %3400 = vmatpush1.msra.mxu0 0.0
    %3401 = vmatprep.subr.mxu0 0.0
    %3402 = vmatpush1.msra.mxu0 0.0
    %3403 = vmatprep.subr.mxu0 0.0
    %3404 = vmatpush1.msra.mxu0 0.0
    %3405 = vmatprep.subr.mxu0 0.0
    %3406 = vmatpush1.msra.mxu0 0.0
    %3407 = vmatprep.subr.mxu0 0.0
    %3408 = vmatpush1.msra.mxu0 0.0
    %3409 = vmatprep.subr.mxu0 0.0
    %3410 = vmatpush1.msra.mxu0 0.0
    %3411 = vmatprep.mubr.f32.mxu0 0.0
    %3412 = vmatmul.mubr.f32.gmra.mrb[0].mxu0 %v3345
    %v3413 = vpop.f32.mrb[0].mxu0
    %v3414 = vadd.f32 0.0, %v3413
    %v3415 = vpop.f32.mrb[0].mxu0
    %3416 = vdwg.mxu0
    %3417 = vrot.lane.b32.xlu0 %v2232, 104
    %v3418 = vpop.permute.xlu0 %3417
    %3419 = vrot.lane.b32.xlu0 %v2232, 72
    %v3420 = vpop.permute.xlu0 %3419
    %v3421 = vsel %vm378, %v3418, 0
    %v3423 = vsel %vm378, %v3420, 0
    %3425 = vmatprep.subr.mxu0 0.0
    %3426 = vmatpush1.xpose.msra.mxu0 %v3423
    %3427 = vmatprep.subr.mxu0 0.0
    %3428 = vmatpush1.xpose.msra.mxu0 0.0
    %3429 = vmatprep.subr.mxu0 0.0
    %3430 = vmatpush1.xpose.msra.mxu0 0.0
    %3431 = vmatprep.subr.mxu0 0.0
    %3432 = vmatpush1.xpose.msra.mxu0 0.0
    %3433 = vmatprep.subr.mxu0 0.0
    %3434 = vmatpush1.xpose.msra.mxu0 0.0
    %3435 = vmatprep.subr.mxu0 0.0
    %3436 = vmatpush1.xpose.msra.mxu0 0.0
    %3437 = vmatprep.subr.mxu0 0.0
    %3438 = vmatpush1.xpose.msra.mxu0 0.0
    %3439 = vmatprep.subr.mxu0 0.0
    %3440 = vmatpush1.xpose.msra.mxu0 0.0
    %3441 = vmatprep.subr.mxu0 0.0
    %3442 = vmatpush1.xpose.msra.mxu0 0.0
    %3443 = vmatprep.subr.mxu0 0.0
    %3444 = vmatpush1.xpose.msra.mxu0 0.0
    %3445 = vmatprep.subr.mxu0 0.0
    %3446 = vmatpush1.xpose.msra.mxu0 0.0
    %3447 = vmatprep.subr.mxu0 0.0
    %3448 = vmatpush1.xpose.msra.mxu0 0.0
    %3449 = vmatprep.subr.mxu0 0.0
    %3450 = vmatpush1.xpose.msra.mxu0 0.0
    %3451 = vmatprep.subr.mxu0 0.0
    %3452 = vmatpush1.xpose.msra.mxu0 0.0
    %3453 = vmatprep.subr.mxu0 0.0
    %3454 = vmatpush1.xpose.msra.mxu0 0.0
    %3455 = vmatprep.subr.mxu0 0.0
    %3456 = vmatpush1.xpose.msra.mxu0 0.0
    %3457 = vmatprep.subr.mxu0 0.0
    %3458 = vmatpush1.xpose.msra.mxu0 0.0
    %3459 = vmatprep.subr.mxu0 0.0
    %3460 = vmatpush1.xpose.msra.mxu0 0.0
    %3461 = vmatprep.subr.mxu0 0.0
    %3462 = vmatpush1.xpose.msra.mxu0 0.0
    %3463 = vmatprep.subr.mxu0 0.0
    %3464 = vmatpush1.xpose.msra.mxu0 0.0
    %3465 = vmatprep.subr.mxu0 0.0
    %3466 = vmatpush1.xpose.msra.mxu0 0.0
    %3467 = vmatprep.subr.mxu0 0.0
    %3468 = vmatpush1.xpose.msra.mxu0 0.0
    %3469 = vmatprep.subr.mxu0 0.0
    %3470 = vmatpush1.xpose.msra.mxu0 0.0
    %3471 = vmatprep.subr.mxu0 0.0
    %3472 = vmatpush1.xpose.msra.mxu0 0.0
    %3473 = vmatprep.subr.mxu0 0.0
    %3474 = vmatpush1.xpose.msra.mxu0 0.0
    %3475 = vmatprep.subr.mxu0 0.0
    %3476 = vmatpush1.xpose.msra.mxu0 0.0
    %3477 = vmatprep.subr.mxu0 0.0
    %3478 = vmatpush1.xpose.msra.mxu0 0.0
    %3479 = vmatprep.subr.mxu0 0.0
    %3480 = vmatpush1.xpose.msra.mxu0 0.0
    %3481 = vmatprep.subr.mxu0 0.0
    %3482 = vmatpush1.xpose.msra.mxu0 0.0
    %3483 = vmatprep.subr.mxu0 0.0
    %3484 = vmatpush1.xpose.msra.mxu0 0.0
    %3485 = vmatprep.subr.mxu0 0.0
    %3486 = vmatpush1.xpose.msra.mxu0 0.0
    %3487 = vmatprep.subr.mxu0 0.0
    %3488 = vmatpush1.xpose.msra.mxu0 0.0
    %3489 = vmatprep.mubr.f32.mxu0 0.0
    %3490 = vmatmul.mubr.f32.gmra.mrb[0].mxu0 %v3421
    %v3491 = vpop.f32.mrb[0].mxu0
    %v3492 = vadd.f32 0.0, %v3491
    %v3493 = vpop.f32.mrb[0].mxu0
    %3494 = vdwg.mxu0
    %v3495 = vmul.f32 %v3492, 0.35355338
    %v3496 = vadd.f32 %v3495, %v1145
    %v3497 = vsel %vm378, %v3496, -inf
    %3498 = vmax.xlane.f32.xlu0 %v3497
    %v3499 = vpop.xlane.xlu0 %3498
    %v3500 = vsub.f32 %v3496, %v3499
    %v3501 = vmul.f32 %v3500, 1.442695
    %v3502 = vpow.pop %v3501
    %v3503 = vsel %vm378, %v3502, 0.0
    %3504 = vadd.xlane.f32.xlu0 %v3503
    %v3505 = vpop.xlane.xlu0 %3504
    %v3506 = vrcp.pop %v3505
    %v3507 = vmul.f32 %v3502, %v3506
    %3508 = vrot.lane.b32.xlu0 %v2232, 40
    %v3509 = vpop.permute.xlu0 %3508
    %v3512 = vsel %vm378, %v3507, 0
    %3514 = vmatprep.subr.mxu0 0.0
    %3515 = vmatpush1.msra.mxu0 %v3509
    %3516 = vmatprep.subr.mxu0 0.0
    %3517 = vmatpush1.msra.mxu0 0.0
    %3518 = vmatprep.subr.mxu0 0.0
    %3519 = vmatpush1.msra.mxu0 0.0
    %3520 = vmatprep.subr.mxu0 0.0
    %3521 = vmatpush1.msra.mxu0 0.0
    %3522 = vmatprep.subr.mxu0 0.0
    %3523 = vmatpush1.msra.mxu0 0.0
    %3524 = vmatprep.subr.mxu0 0.0
    %3525 = vmatpush1.msra.mxu0 0.0
    %3526 = vmatprep.subr.mxu0 0.0
    %3527 = vmatpush1.msra.mxu0 0.0
    %3528 = vmatprep.subr.mxu0 0.0
    %3529 = vmatpush1.msra.mxu0 0.0
    %3530 = vmatprep.subr.mxu0 0.0
    %3531 = vmatpush1.msra.mxu0 0.0
    %3532 = vmatprep.subr.mxu0 0.0
    %3533 = vmatpush1.msra.mxu0 0.0
    %3534 = vmatprep.subr.mxu0 0.0
    %3535 = vmatpush1.msra.mxu0 0.0
    %3536 = vmatprep.subr.mxu0 0.0
    %3537 = vmatpush1.msra.mxu0 0.0
    %3538 = vmatprep.subr.mxu0 0.0
    %3539 = vmatpush1.msra.mxu0 0.0
    %3540 = vmatprep.subr.mxu0 0.0
    %3541 = vmatpush1.msra.mxu0 0.0
    %3542 = vmatprep.subr.mxu0 0.0
    %3543 = vmatpush1.msra.mxu0 0.0
    %3544 = vmatprep.subr.mxu0 0.0
    %3545 = vmatpush1.msra.mxu0 0.0
    %3546 = vmatprep.subr.mxu0 0.0
    %3547 = vmatpush1.msra.mxu0 0.0
    %3548 = vmatprep.subr.mxu0 0.0
    %3549 = vmatpush1.msra.mxu0 0.0
    %3550 = vmatprep.subr.mxu0 0.0
    %3551 = vmatpush1.msra.mxu0 0.0
    %3552 = vmatprep.subr.mxu0 0.0
    %3553 = vmatpush1.msra.mxu0 0.0
    %3554 = vmatprep.subr.mxu0 0.0
    %3555 = vmatpush1.msra.mxu0 0.0
    %3556 = vmatprep.subr.mxu0 0.0
    %3557 = vmatpush1.msra.mxu0 0.0
    %3558 = vmatprep.subr.mxu0 0.0
    %3559 = vmatpush1.msra.mxu0 0.0
    %3560 = vmatprep.subr.mxu0 0.0
    %3561 = vmatpush1.msra.mxu0 0.0
    %3562 = vmatprep.subr.mxu0 0.0
    %3563 = vmatpush1.msra.mxu0 0.0
    %3564 = vmatprep.subr.mxu0 0.0
    %3565 = vmatpush1.msra.mxu0 0.0
    %3566 = vmatprep.subr.mxu0 0.0
    %3567 = vmatpush1.msra.mxu0 0.0
    %3568 = vmatprep.subr.mxu0 0.0
    %3569 = vmatpush1.msra.mxu0 0.0
    %3570 = vmatprep.subr.mxu0 0.0
    %3571 = vmatpush1.msra.mxu0 0.0
    %3572 = vmatprep.subr.mxu0 0.0
    %3573 = vmatpush1.msra.mxu0 0.0
    %3574 = vmatprep.subr.mxu0 0.0
    %3575 = vmatpush1.msra.mxu0 0.0
    %3576 = vmatprep.subr.mxu0 0.0
    %3577 = vmatpush1.msra.mxu0 0.0
    %3578 = vmatprep.mubr.f32.mxu0 0.0
    %3579 = vmatmul.mubr.f32.gmra.mrb[0].mxu0 %v3512
    %v3580 = vpop.f32.mrb[0].mxu0
    %v3581 = vadd.f32 0.0, %v3580
    %v3582 = vpop.f32.mrb[0].mxu0
    %3583 = vdwg.mxu0
    %3585 = vrot.lane.b32.xlu0 %v3247, 8
    %v3586 = vpop.permute.xlu0 %3585
    %3589 = vrot.lane.b32.xlu0 %v3414, 16
    %v3590 = vpop.permute.xlu0 %3589
    %3593 = vrot.lane.b32.xlu0 %v3581, 24
    %v3594 = vpop.permute.xlu0 %3593
    %v3596 = vsel %vm378, %v3080, %v3586
    %v3597 = vsel %vm1060, %v3596, %v3590
    %v3598 = vsel %vm1062, %v3597, %v3594
    %s3599 = scalar_lea.vmem %s6, 32
    %v3600 = vld [vmem:[%s3599] sm:$0xff]
    %v3601 = vld [vmem:[%s3599 + $0x8] sm:$0xff]
    %v3602 = vld [vmem:[%s3599 + $0x10] sm:$0xff]
    %v3603 = vld [vmem:[%s3599 + $0x18] sm:$0xff]
    %s3604 = scalar_lea.vmem [#allocation11], 1
    %v3605 = vld [vmem:[%s3604] sm:$0x1]
    %v3607 = vlaneseq
    %v3608 = vshrl.u32 %v3607, 7
    %v3609 = vsub.s32 0, %v3608
    %v3610 = vrot.slane %v3605, %v3609
    %v3613 = vsel %vm239, %v2916, 0
    %v3616 = vsel %vm239, %v3598, 0
    %3618 = vmatprep.subr.mxu0 0.0
    %3619 = vmatpush1.msra.mxu0 %v3600
    %3620 = vmatprep.subr.mxu0 0.0
    %3621 = vmatpush1.msra.mxu0 %v3601
    %3622 = vmatprep.subr.mxu0 0.0
    %3623 = vmatpush1.msra.mxu0 %v3602
    %3624 = vmatprep.subr.mxu0 0.0
    %3625 = vmatpush1.msra.mxu0 %v3603
    %3626 = vmatprep.subr.mxu0 0.0
    %3627 = vmatpush1.msra.mxu0 0.0
    %3628 = vmatprep.subr.mxu0 0.0
    %3629 = vmatpush1.msra.mxu0 0.0
    %3630 = vmatprep.subr.mxu0 0.0
    %3631 = vmatpush1.msra.mxu0 0.0
    %3632 = vmatprep.subr.mxu0 0.0
    %3633 = vmatpush1.msra.mxu0 0.0
    %3634 = vmatprep.subr.mxu0 0.0
    %3635 = vmatpush1.msra.mxu0 0.0
    %3636 = vmatprep.subr.mxu0 0.0
    %3637 = vmatpush1.msra.mxu0 0.0
    %3638 = vmatprep.subr.mxu0 0.0
    %3639 = vmatpush1.msra.mxu0 0.0
    %3640 = vmatprep.subr.mxu0 0.0
    %3641 = vmatpush1.msra.mxu0 0.0
    %3642 = vmatprep.subr.mxu0 0.0
    %3643 = vmatpush1.msra.mxu0 0.0
    %3644 = vmatprep.subr.mxu0 0.0
    %3645 = vmatpush1.msra.mxu0 0.0
    %3646 = vmatprep.subr.mxu0 0.0
    %3647 = vmatpush1.msra.mxu0 0.0
    %3648 = vmatprep.subr.mxu0 0.0
    %3649 = vmatpush1.msra.mxu0 0.0
    %3650 = vmatprep.subr.mxu0 0.0
    %3651 = vmatpush1.msra.mxu0 0.0
    %3652 = vmatprep.subr.mxu0 0.0
    %3653 = vmatpush1.msra.mxu0 0.0
    %3654 = vmatprep.subr.mxu0 0.0
    %3655 = vmatpush1.msra.mxu0 0.0
    %3656 = vmatprep.subr.mxu0 0.0
    %3657 = vmatpush1.msra.mxu0 0.0
    %3658 = vmatprep.subr.mxu0 0.0
    %3659 = vmatpush1.msra.mxu0 0.0
    %3660 = vmatprep.subr.mxu0 0.0
    %3661 = vmatpush1.msra.mxu0 0.0
    %3662 = vmatprep.subr.mxu0 0.0
    %3663 = vmatpush1.msra.mxu0 0.0
    %3664 = vmatprep.subr.mxu0 0.0
    %3665 = vmatpush1.msra.mxu0 0.0
    %3666 = vmatprep.subr.mxu0 0.0
    %3667 = vmatpush1.msra.mxu0 0.0
    %3668 = vmatprep.subr.mxu0 0.0
    %3669 = vmatpush1.msra.mxu0 0.0
    %3670 = vmatprep.subr.mxu0 0.0
    %3671 = vmatpush1.msra.mxu0 0.0
    %3672 = vmatprep.subr.mxu0 0.0
    %3673 = vmatpush1.msra.mxu0 0.0
    %3674 = vmatprep.subr.mxu0 0.0
    %3675 = vmatpush1.msra.mxu0 0.0
    %3676 = vmatprep.subr.mxu0 0.0
    %3677 = vmatpush1.msra.mxu0 0.0
    %3678 = vmatprep.subr.mxu0 0.0
    %3679 = vmatpush1.msra.mxu0 0.0
    %3680 = vmatprep.subr.mxu0 0.0
    %3681 = vmatpush1.msra.mxu0 0.0
    %3682 = vmatprep.mubr.f32.mxu0 0.0
    %3683 = vmatmul.mubr.f32.gmra.mrb[0].mxu0 %v3613
    %v3684 = vpop.f32.mrb[0].mxu0
    %v3685 = vadd.f32 %v3610, %v3684
    %v3686 = vpop.f32.mrb[0].mxu0
    %3687 = vmatprep.mubr.f32.mxu0 0.0
    %3688 = vmatmul.mubr.f32.gmra.mrb[0].mxu0 %v3616
    %v3689 = vpop.f32.mrb[0].mxu0
    %v3690 = vadd.f32 %v3610, %v3689
    %v3691 = vpop.f32.mrb[0].mxu0
    %3692 = vdwg.mxu0
    %v3693 = vadd.f32 %v2139, %v3685
    %v3694 = vadd.f32 %v2140, %v3690
    %s3695 = scalar_lea.vmem [#allocation13], 1
    %v3696 = vld [vmem:[%s3695] sm:$0x1]
    %s3697 = scalar_lea.vmem [#allocation14], 1
    %v3698 = vld [vmem:[%s3697] sm:$0x1]
    %v3699 = vsel %vm239, %v3693, 0.0
    %3700 = vadd.xlane.f32.xlu0 %v3699
    %v3701 = vpop.xlane.xlu0 %3700
    %v3702 = vsel %vm239, %v3694, 0.0
    %3703 = vadd.xlane.f32.xlu0 %v3702
    %v3704 = vpop.xlane.xlu0 %3703
    %v3705 = vmul.f32 %v3701, %v246
    %v3706 = vmul.f32 %v3704, %v246
    %v3707 = vsub.f32 %v3693, %v3705
    %v3708 = vsub.f32 %v3694, %v3706
    %v3709 = vmul.f32 %v3707, %v3707
    %v3710 = vmul.f32 %v3708, %v3708
    %v3711 = vsel %vm239, %v3709, 0.0
    %3712 = vadd.xlane.f32.xlu0 %v3711
    %v3713 = vpop.xlane.xlu0 %3712
    %v3714 = vsel %vm239, %v3710, 0.0
    %3715 = vadd.xlane.f32.xlu0 %v3714
    %v3716 = vpop.xlane.xlu0 %3715
    %v3717 = vmul.f32 %v3713, %v246
    %v3718 = vmul.f32 %v3716, %v246
    %v3719 = vadd.f32 %v3717, 1e-12
    %v3720 = vadd.f32 %v3718, 1e-12
    %v3721 = vrsqrt.pop %v3719
    %v3722 = vrsqrt.pop %v3720
    %v3723 = vmul.f32 %v3707, %v3721
    %v3724 = vmul.f32 %v3708, %v3722
    %v3726 = vlaneseq
    %v3727 = vshrl.u32 %v3726, 7
    %v3728 = vsub.s32 0, %v3727
    %v3729 = vrot.slane %v3696, %v3728
    %v3731 = vmul.f32 %v3723, %v3729
    %v3732 = vmul.f32 %v3724, %v3729
    %v3734 = vlaneseq
    %v3735 = vshrl.u32 %v3734, 7
    %v3736 = vsub.s32 0, %v3735
    %v3737 = vrot.slane %v3698, %v3736
    %v3739 = vadd.f32 %v3731, %v3737
    %v3740 = vadd.f32 %v3732, %v3737
    %s3741 = scalar_lea.vmem %s10, 32
    %v3742 = vld [vmem:[%s3741] sm:$0xff]
    %v3743 = vld [vmem:[%s3741 + $0x8] sm:$0xff]
    %v3744 = vld [vmem:[%s3741 + $0x10] sm:$0xff]
    %v3745 = vld [vmem:[%s3741 + $0x18] sm:$0xff]
    %s3746 = scalar_lea.vmem [#allocation16], 1
    %v3747 = vld [vmem:[%s3746] sm:$0x1]
    %v3749 = vlaneseq
    %v3750 = vshrl.u32 %v3749, 7
    %v3751 = vsub.s32 0, %v3750
    %v3752 = vrot.slane %v3747, %v3751
    %v3755 = vsel %vm239, %v3739, 0
    %v3758 = vsel %vm239, %v3740, 0
    %3760 = vmatprep.subr.mxu0 0.0
    %3761 = vmatpush1.msra.mxu0 %v3742
    %3762 = vmatprep.subr.mxu0 0.0
    %3763 = vmatpush1.msra.mxu0 %v3743
    %3764 = vmatprep.subr.mxu0 0.0
    %3765 = vmatpush1.msra.mxu0 %v3744
    %3766 = vmatprep.subr.mxu0 0.0
    %3767 = vmatpush1.msra.mxu0 %v3745
    %3768 = vmatprep.subr.mxu0 0.0
    %3769 = vmatpush1.msra.mxu0 0.0
    %3770 = vmatprep.subr.mxu0 0.0
    %3771 = vmatpush1.msra.mxu0 0.0
    %3772 = vmatprep.subr.mxu0 0.0
    %3773 = vmatpush1.msra.mxu0 0.0
    %3774 = vmatprep.subr.mxu0 0.0
    %3775 = vmatpush1.msra.mxu0 0.0
    %3776 = vmatprep.subr.mxu0 0.0
    %3777 = vmatpush1.msra.mxu0 0.0
    %3778 = vmatprep.subr.mxu0 0.0
    %3779 = vmatpush1.msra.mxu0 0.0
    %3780 = vmatprep.subr.mxu0 0.0
    %3781 = vmatpush1.msra.mxu0 0.0
    %3782 = vmatprep.subr.mxu0 0.0
    %3783 = vmatpush1.msra.mxu0 0.0
    %3784 = vmatprep.subr.mxu0 0.0
    %3785 = vmatpush1.msra.mxu0 0.0
    %3786 = vmatprep.subr.mxu0 0.0
    %3787 = vmatpush1.msra.mxu0 0.0
    %3788 = vmatprep.subr.mxu0 0.0
    %3789 = vmatpush1.msra.mxu0 0.0
    %3790 = vmatprep.subr.mxu0 0.0
    %3791 = vmatpush1.msra.mxu0 0.0
    %3792 = vmatprep.subr.mxu0 0.0
    %3793 = vmatpush1.msra.mxu0 0.0
    %3794 = vmatprep.subr.mxu0 0.0
    %3795 = vmatpush1.msra.mxu0 0.0
    %3796 = vmatprep.subr.mxu0 0.0
    %3797 = vmatpush1.msra.mxu0 0.0
    %3798 = vmatprep.subr.mxu0 0.0
    %3799 = vmatpush1.msra.mxu0 0.0
    %3800 = vmatprep.subr.mxu0 0.0
    %3801 = vmatpush1.msra.mxu0 0.0
    %3802 = vmatprep.subr.mxu0 0.0
    %3803 = vmatpush1.msra.mxu0 0.0
    %3804 = vmatprep.subr.mxu0 0.0
    %3805 = vmatpush1.msra.mxu0 0.0
    %3806 = vmatprep.subr.mxu0 0.0
    %3807 = vmatpush1.msra.mxu0 0.0
    %3808 = vmatprep.subr.mxu0 0.0
    %3809 = vmatpush1.msra.mxu0 0.0
    %3810 = vmatprep.subr.mxu0 0.0
    %3811 = vmatpush1.msra.mxu0 0.0
    %3812 = vmatprep.subr.mxu0 0.0
    %3813 = vmatpush1.msra.mxu0 0.0
    %3814 = vmatprep.subr.mxu0 0.0
    %3815 = vmatpush1.msra.mxu0 0.0
    %3816 = vmatprep.subr.mxu0 0.0
    %3817 = vmatpush1.msra.mxu0 0.0
    %3818 = vmatprep.subr.mxu0 0.0
    %3819 = vmatpush1.msra.mxu0 0.0
    %3820 = vmatprep.subr.mxu0 0.0
    %3821 = vmatpush1.msra.mxu0 0.0
    %3822 = vmatprep.subr.mxu0 0.0
    %3823 = vmatpush1.msra.mxu0 0.0
    %3824 = vmatprep.mubr.f32.mxu0 0.0
    %3825 = vmatmul.mubr.f32.gmra.mrb[0].mxu0 %v3755
    %v3826 = vpop.f32.mrb[0].mxu0
    %v3827 = vadd.f32 %v3752, %v3826
    %v3828 = vpop.f32.mrb[0].mxu0
    %3829 = vmatprep.mubr.f32.mxu0 0.0
    %3830 = vmatmul.mubr.f32.gmra.mrb[0].mxu0 %v3758
    %v3831 = vpop.f32.mrb[0].mxu0
    %v3832 = vadd.f32 %v3752, %v3831
    %v3833 = vpop.f32.mrb[0].mxu0
    %3834 = vdwg.mxu0
    %v3835 = vmul.f32 %v3827, %v3827
    %v3836 = vmul.f32 %v3832, %v3832
    %v3837 = vmul.f32 %v3827, %v3835
    %v3838 = vmul.f32 %v3832, %v3836
    %v3839 = vmul.f32 %v3837, 0.044715
    %v3840 = vmul.f32 %v3838, 0.044715
    %v3841 = vadd.f32 %v3827, %v3839
    %v3842 = vadd.f32 %v3832, %v3840
    %v3843 = vmul.f32 %v3841, 0.7978846
    %v3844 = vmul.f32 %v3842, 0.7978846
    %v3845 = vtanh.pop %v3843
    %v3846 = vtanh.pop %v3844
    %v3847 = vadd.f32 %v3845, 1.0
    %v3848 = vadd.f32 %v3846, 1.0
    %v3849 = vmul.f32 %v3847, 0.5
    %v3850 = vmul.f32 %v3848, 0.5
    %v3851 = vmul.f32 %v3827, %v3849
    %v3852 = vmul.f32 %v3832, %v3850
    %s3853 = scalar_lea.vmem %s12, 64
    %v3854 = vld [vmem:[%s3853] sm:$0xff]
    %v3855 = vld [vmem:[%s3853 + $0x8] sm:$0xff]
    %v3856 = vld [vmem:[%s3853 + $0x10] sm:$0xff]
    %v3857 = vld [vmem:[%s3853 + $0x18] sm:$0xff]
    %v3858 = vld [vmem:[%s3853 + $0x20] sm:$0xff]
    %v3859 = vld [vmem:[%s3853 + $0x28] sm:$0xff]
    %v3860 = vld [vmem:[%s3853 + $0x30] sm:$0xff]
    %v3861 = vld [vmem:[%s3853 + $0x38] sm:$0xff]
    %s3862 = scalar_lea.vmem [#allocation17], 1
    %v3863 = vld [vmem:[%s3862] sm:$0x1]
    %v3865 = vlaneseq
    %v3866 = vshrl.u32 %v3865, 7
    %v3867 = vsub.s32 0, %v3866
    %v3868 = vrot.slane %v3863, %v3867
    %v3871 = vsel %vm2013, %v3851, 0
    %v3874 = vsel %vm2013, %v3852, 0
    %3876 = vmatprep.subr.mxu0 0.0
    %3877 = vmatpush1.msra.mxu0 %v3854
    %3878 = vmatprep.subr.mxu0 0.0
    %3879 = vmatpush1.msra.mxu0 %v3855
    %3880 = vmatprep.subr.mxu0 0.0
    %3881 = vmatpush1.msra.mxu0 %v3856
    %3882 = vmatprep.subr.mxu0 0.0
    %3883 = vmatpush1.msra.mxu0 %v3857
    %3884 = vmatprep.subr.mxu0 0.0
    %3885 = vmatpush1.msra.mxu0 %v3858
    %3886 = vmatprep.subr.mxu0 0.0
    %3887 = vmatpush1.msra.mxu0 %v3859
    %3888 = vmatprep.subr.mxu0 0.0
    %3889 = vmatpush1.msra.mxu0 %v3860
    %3890 = vmatprep.subr.mxu0 0.0
    %3891 = vmatpush1.msra.mxu0 %v3861
    %3892 = vmatprep.subr.mxu0 0.0
    %3893 = vmatpush1.msra.mxu0 0.0
    %3894 = vmatprep.subr.mxu0 0.0
    %3895 = vmatpush1.msra.mxu0 0.0
    %3896 = vmatprep.subr.mxu0 0.0
    %3897 = vmatpush1.msra.mxu0 0.0
    %3898 = vmatprep.subr.mxu0 0.0
    %3899 = vmatpush1.msra.mxu0 0.0
    %3900 = vmatprep.subr.mxu0 0.0
    %3901 = vmatpush1.msra.mxu0 0.0
    %3902 = vmatprep.subr.mxu0 0.0
    %3903 = vmatpush1.msra.mxu0 0.0
    %3904 = vmatprep.subr.mxu0 0.0
    %3905 = vmatpush1.msra.mxu0 0.0
    %3906 = vmatprep.subr.mxu0 0.0
    %3907 = vmatpush1.msra.mxu0 0.0
    %3908 = vmatprep.subr.mxu0 0.0
    %3909 = vmatpush1.msra.mxu0 0.0
    %3910 = vmatprep.subr.mxu0 0.0
    %3911 = vmatpush1.msra.mxu0 0.0
    %3912 = vmatprep.subr.mxu0 0.0
    %3913 = vmatpush1.msra.mxu0 0.0
    %3914 = vmatprep.subr.mxu0 0.0
    %3915 = vmatpush1.msra.mxu0 0.0
    %3916 = vmatprep.subr.mxu0 0.0
    %3917 = vmatpush1.msra.mxu0 0.0
    %3918 = vmatprep.subr.mxu0 0.0
    %3919 = vmatpush1.msra.mxu0 0.0
    %3920 = vmatprep.subr.mxu0 0.0
    %3921 = vmatpush1.msra.mxu0 0.0
    %3922 = vmatprep.subr.mxu0 0.0
    %3923 = vmatpush1.msra.mxu0 0.0
    %3924 = vmatprep.subr.mxu0 0.0
    %3925 = vmatpush1.msra.mxu0 0.0
    %3926 = vmatprep.subr.mxu0 0.0
    %3927 = vmatpush1.msra.mxu0 0.0
    %3928 = vmatprep.subr.mxu0 0.0
    %3929 = vmatpush1.msra.mxu0 0.0
    %3930 = vmatprep.subr.mxu0 0.0
    %3931 = vmatpush1.msra.mxu0 0.0
    %3932 = vmatprep.subr.mxu0 0.0
    %3933 = vmatpush1.msra.mxu0 0.0
    %3934 = vmatprep.subr.mxu0 0.0
    %3935 = vmatpush1.msra.mxu0 0.0
    %3936 = vmatprep.subr.mxu0 0.0
    %3937 = vmatpush1.msra.mxu0 0.0
    %3938 = vmatprep.subr.mxu0 0.0
    %3939 = vmatpush1.msra.mxu0 0.0
    %3940 = vmatprep.mubr.f32.mxu0 0.0
    %3941 = vmatmul.mubr.f32.gmra.mrb[0].mxu0 %v3871
    %v3942 = vpop.f32.mrb[0].mxu0
    %v3943 = vadd.f32 %v3868, %v3942
    %v3944 = vpop.f32.mrb[0].mxu0
    %3945 = vmatprep.mubr.f32.mxu0 0.0
    %3946 = vmatmul.mubr.f32.gmra.mrb[0].mxu0 %v3874
    %v3947 = vpop.f32.mrb[0].mxu0
    %v3948 = vadd.f32 %v3868, %v3947
    %v3949 = vpop.f32.mrb[0].mxu0
    %3950 = vdwg.mxu0
    %v3951 = vadd.f32 %v3739, %v3943
    %v3952 = vadd.f32 %v3740, %v3948
    %s3953 = scalar_lea.vmem [#allocation19], 1
    %v3954 = vld [vmem:[%s3953] sm:$0x1]
    %s3955 = scalar_lea.vmem [#allocation20], 1
    %v3956 = vld [vmem:[%s3955] sm:$0x1]
    %v3957 = vsel %vm239, %v3951, 0.0
    %3958 = vadd.xlane.f32.xlu0 %v3957
    %v3959 = vpop.xlane.xlu0 %3958
    %v3960 = vsel %vm239, %v3952, 0.0
    %3961 = vadd.xlane.f32.xlu0 %v3960
    %v3962 = vpop.xlane.xlu0 %3961
    %v3963 = vmul.f32 %v3959, %v246
    %v3964 = vmul.f32 %v3962, %v246
    %v3965 = vsub.f32 %v3951, %v3963
    %v3966 = vsub.f32 %v3952, %v3964
    %v3967 = vmul.f32 %v3965, %v3965
    %v3968 = vmul.f32 %v3966, %v3966
    %v3969 = vsel %vm239, %v3967, 0.0
    %3970 = vadd.xlane.f32.xlu0 %v3969
    %v3971 = vpop.xlane.xlu0 %3970
    %v3972 = vsel %vm239, %v3968, 0.0
    %3973 = vadd.xlane.f32.xlu0 %v3972
    %v3974 = vpop.xlane.xlu0 %3973
    %v3975 = vmul.f32 %v3971, %v246
    %v3976 = vmul.f32 %v3974, %v246
    %v3977 = vadd.f32 %v3975, 1e-12
    %v3978 = vadd.f32 %v3976, 1e-12
    %v3979 = vrsqrt.pop %v3977
    %v3980 = vrsqrt.pop %v3978
    %v3981 = vmul.f32 %v3965, %v3979
    %v3982 = vmul.f32 %v3966, %v3980
    %v3984 = vlaneseq
    %v3985 = vshrl.u32 %v3984, 7
    %v3986 = vsub.s32 0, %v3985
    %v3987 = vrot.slane %v3954, %v3986
    %v3989 = vmul.f32 %v3981, %v3987
    %v3990 = vmul.f32 %v3982, %v3987
    %v3992 = vlaneseq
    %v3993 = vshrl.u32 %v3992, 7
    %v3994 = vsub.s32 0, %v3993
    %v3995 = vrot.slane %v3956, %v3994
    %v3997 = vadd.f32 %v3989, %v3995
    %v3998 = vadd.f32 %v3990, %v3995
    %v3999 = vld [vmem:[%s16] sm:$0xff]
    %v4000 = vld [vmem:[%s16 + $0x8] sm:$0xff]
    %v4001 = vld [vmem:[%s16 + $0x10] sm:$0xff]
    %v4002 = vld [vmem:[%s16 + $0x18] sm:$0xff]
    %v4003 = vld [vmem:[#allocation22] sm:$0x1]
    %v4005 = vlaneseq
    %v4006 = vshrl.u32 %v4005, 7
    %v4007 = vsub.s32 0, %v4006
    %v4008 = vrot.slane %v4003, %v4007
    %v4011 = vsel %vm239, %v3997, 0
    %v4014 = vsel %vm239, %v3998, 0
    %4016 = vmatprep.subr.mxu0 0.0
    %4017 = vmatpush1.msra.mxu0 %v3999
    %4018 = vmatprep.subr.mxu0 0.0
    %4019 = vmatpush1.msra.mxu0 %v4000
    %4020 = vmatprep.subr.mxu0 0.0
    %4021 = vmatpush1.msra.mxu0 %v4001
    %4022 = vmatprep.subr.mxu0 0.0
    %4023 = vmatpush1.msra.mxu0 %v4002
    %4024 = vmatprep.subr.mxu0 0.0
    %4025 = vmatpush1.msra.mxu0 0.0
    %4026 = vmatprep.subr.mxu0 0.0
    %4027 = vmatpush1.msra.mxu0 0.0
    %4028 = vmatprep.subr.mxu0 0.0
    %4029 = vmatpush1.msra.mxu0 0.0
    %4030 = vmatprep.subr.mxu0 0.0
    %4031 = vmatpush1.msra.mxu0 0.0
    %4032 = vmatprep.subr.mxu0 0.0
    %4033 = vmatpush1.msra.mxu0 0.0
    %4034 = vmatprep.subr.mxu0 0.0
    %4035 = vmatpush1.msra.mxu0 0.0
    %4036 = vmatprep.subr.mxu0 0.0
    %4037 = vmatpush1.msra.mxu0 0.0
    %4038 = vmatprep.subr.mxu0 0.0
    %4039 = vmatpush1.msra.mxu0 0.0
    %4040 = vmatprep.subr.mxu0 0.0
    %4041 = vmatpush1.msra.mxu0 0.0
    %4042 = vmatprep.subr.mxu0 0.0
    %4043 = vmatpush1.msra.mxu0 0.0
    %4044 = vmatprep.subr.mxu0 0.0
    %4045 = vmatpush1.msra.mxu0 0.0
    %4046 = vmatprep.subr.mxu0 0.0
    %4047 = vmatpush1.msra.mxu0 0.0
    %4048 = vmatprep.subr.mxu0 0.0
    %4049 = vmatpush1.msra.mxu0 0.0
    %4050 = vmatprep.subr.mxu0 0.0
    %4051 = vmatpush1.msra.mxu0 0.0
    %4052 = vmatprep.subr.mxu0 0.0
    %4053 = vmatpush1.msra.mxu0 0.0
    %4054 = vmatprep.subr.mxu0 0.0
    %4055 = vmatpush1.msra.mxu0 0.0
    %4056 = vmatprep.subr.mxu0 0.0
    %4057 = vmatpush1.msra.mxu0 0.0
    %4058 = vmatprep.subr.mxu0 0.0
    %4059 = vmatpush1.msra.mxu0 0.0
    %4060 = vmatprep.subr.mxu0 0.0
    %4061 = vmatpush1.msra.mxu0 0.0
    %4062 = vmatprep.subr.mxu0 0.0
    %4063 = vmatpush1.msra.mxu0 0.0
    %4064 = vmatprep.subr.mxu0 0.0
    %4065 = vmatpush1.msra.mxu0 0.0
    %4066 = vmatprep.subr.mxu0 0.0
    %4067 = vmatpush1.msra.mxu0 0.0
    %4068 = vmatprep.subr.mxu0 0.0
    %4069 = vmatpush1.msra.mxu0 0.0
    %4070 = vmatprep.subr.mxu0 0.0
    %4071 = vmatpush1.msra.mxu0 0.0
    %4072 = vmatprep.subr.mxu0 0.0
    %4073 = vmatpush1.msra.mxu0 0.0
    %4074 = vmatprep.subr.mxu0 0.0
    %4075 = vmatpush1.msra.mxu0 0.0
    %4076 = vmatprep.subr.mxu0 0.0
    %4077 = vmatpush1.msra.mxu0 0.0
    %4078 = vmatprep.subr.mxu0 0.0
    %4079 = vmatpush1.msra.mxu0 0.0
    %4080 = vmatprep.mubr.f32.mxu0 0.0
    %4081 = vmatmul.mubr.f32.gmra.mrb[0].mxu0 %v4011
    %v4082 = vpop.f32.mrb[0].mxu0
    %v4083 = vadd.f32 %v4008, %v4082
    %v4084 = vpop.f32.mrb[0].mxu0
    %4085 = vmatprep.mubr.f32.mxu0 0.0
    %4086 = vmatmul.mubr.f32.gmra.mrb[0].mxu0 %v4014
    %v4087 = vpop.f32.mrb[0].mxu0
    %v4088 = vadd.f32 %v4008, %v4087
    %v4089 = vpop.f32.mrb[0].mxu0
    %4090 = vdwg.mxu0
    %v4091 = vtanh.pop %v4083
    %v4092 = vtanh.pop %v4088
    %v4093 = vld [vmem:[%s18] sm:$0xff]
    %v4094 = vld [vmem:[%s18 + $0x8] sm:$0xff]
    %v4095 = vld [vmem:[%s18 + $0x10] sm:$0xff]
    %v4096 = vld [vmem:[%s18 + $0x18] sm:$0xff]
    %v4097 = vld [vmem:[%s19] sm:$0x1]
    %v4099 = vlaneseq
    %v4100 = vshrl.u32 %v4099, 7
    %v4101 = vsub.s32 0, %v4100
    %v4102 = vrot.slane %v4097, %v4101
    %v4105 = vsel %vm239, %v4091, 0
    %v4108 = vsel %vm239, %v4092, 0
    %4110 = vmatprep.subr.mxu0 0.0
    %4111 = vmatpush1.msra.mxu0 %v4093
    %4112 = vmatprep.subr.mxu0 0.0
    %4113 = vmatpush1.msra.mxu0 %v4094
    %4114 = vmatprep.subr.mxu0 0.0
    %4115 = vmatpush1.msra.mxu0 %v4095
    %4116 = vmatprep.subr.mxu0 0.0
    %4117 = vmatpush1.msra.mxu0 %v4096
    %4118 = vmatprep.subr.mxu0 0.0
    %4119 = vmatpush1.msra.mxu0 0.0
    %4120 = vmatprep.subr.mxu0 0.0
    %4121 = vmatpush1.msra.mxu0 0.0
    %4122 = vmatprep.subr.mxu0 0.0
    %4123 = vmatpush1.msra.mxu0 0.0
    %4124 = vmatprep.subr.mxu0 0.0
    %4125 = vmatpush1.msra.mxu0 0.0
    %4126 = vmatprep.subr.mxu0 0.0
    %4127 = vmatpush1.msra.mxu0 0.0
    %4128 = vmatprep.subr.mxu0 0.0
    %4129 = vmatpush1.msra.mxu0 0.0
    %4130 = vmatprep.subr.mxu0 0.0
    %4131 = vmatpush1.msra.mxu0 0.0
    %4132 = vmatprep.subr.mxu0 0.0
    %4133 = vmatpush1.msra.mxu0 0.0
    %4134 = vmatprep.subr.mxu0 0.0
    %4135 = vmatpush1.msra.mxu0 0.0
    %4136 = vmatprep.subr.mxu0 0.0
    %4137 = vmatpush1.msra.mxu0 0.0
    %4138 = vmatprep.subr.mxu0 0.0
    %4139 = vmatpush1.msra.mxu0 0.0
    %4140 = vmatprep.subr.mxu0 0.0
    %4141 = vmatpush1.msra.mxu0 0.0
    %4142 = vmatprep.subr.mxu0 0.0
    %4143 = vmatpush1.msra.mxu0 0.0
    %4144 = vmatprep.subr.mxu0 0.0
    %4145 = vmatpush1.msra.mxu0 0.0
    %4146 = vmatprep.subr.mxu0 0.0
    %4147 = vmatpush1.msra.mxu0 0.0
    %4148 = vmatprep.subr.mxu0 0.0
    %4149 = vmatpush1.msra.mxu0 0.0
    %4150 = vmatprep.subr.mxu0 0.0
    %4151 = vmatpush1.msra.mxu0 0.0
    %4152 = vmatprep.subr.mxu0 0.0
    %4153 = vmatpush1.msra.mxu0 0.0
    %4154 = vmatprep.subr.mxu0 0.0
    %4155 = vmatpush1.msra.mxu0 0.0
    %4156 = vmatprep.subr.mxu0 0.0
    %4157 = vmatpush1.msra.mxu0 0.0
    %4158 = vmatprep.subr.mxu0 0.0
    %4159 = vmatpush1.msra.mxu0 0.0
    %4160 = vmatprep.subr.mxu0 0.0
    %4161 = vmatpush1.msra.mxu0 0.0
    %4162 = vmatprep.subr.mxu0 0.0
    %4163 = vmatpush1.msra.mxu0 0.0
    %4164 = vmatprep.subr.mxu0 0.0
    %4165 = vmatpush1.msra.mxu0 0.0
    %4166 = vmatprep.subr.mxu0 0.0
    %4167 = vmatpush1.msra.mxu0 0.0
    %4168 = vmatprep.subr.mxu0 0.0
    %4169 = vmatpush1.msra.mxu0 0.0
    %4170 = vmatprep.subr.mxu0 0.0
    %4171 = vmatpush1.msra.mxu0 0.0
    %4172 = vmatprep.subr.mxu0 0.0
    %4173 = vmatpush1.msra.mxu0 0.0
    %4174 = vmatprep.mubr.f32.mxu0 0.0
    %4175 = vmatmul.mubr.f32.gmra.mrb[0].mxu0 %v4105
    %v4176 = vpop.f32.mrb[0].mxu0
    %v4177 = vadd.f32 %v4102, %v4176
    %v4178 = vpop.f32.mrb[0].mxu0
    %4179 = vmatprep.mubr.f32.mxu0 0.0
    %4180 = vmatmul.mubr.f32.gmra.mrb[0].mxu0 %v4108
    %v4181 = vpop.f32.mrb[0].mxu0
    %v4182 = vadd.f32 %v4102, %v4181
    %v4183 = vpop.f32.mrb[0].mxu0
    %4184 = vdwg.mxu0
    %4185 = vst [vmem:[#allocation23] sm:$0xff] %v4177
    %4186 = vst [vmem:[#allocation23 + $0x8] sm:$0xff] %v4182
    // Predicated region
    $region134: #{tpu_custom_call.1} parent=1 // pred_check
      _
    $region135: #{tpu_custom_call.1} parent=1 // pred_check_branch
      %4188 = sbr.rel (0) target = $region137
    $region136: #{tpu_custom_call.1} parent=1 // pred_region
      %s4190 = ssub.s32 256, 256
      %4191 = vsyncadd [#allocation4], %s4190
      %s4192 = sshll.u32 [#allocation23], 4
      %s4193 = int_to_ptr.vmem [resolvable:$true] %s4192
      %4198 = dma.vmem_to_hbm [thread:$0]  %s4193, 256, %s20, [#allocation4], 128, 128, 8
    $region137: #{tpu_custom_call.1} parent=1 // pred_fallthru
      _
    // Predicated region
    $region138: #{tpu_custom_call.1} parent=1 // pred_check
      _
    $region139: #{tpu_custom_call.1} parent=1 // pred_check_branch
      %4200 = sbr.rel (0) target = $region141
    $region140: #{tpu_custom_call.1} parent=1 // pred_region
      %4201 = dma.done [#allocation4], 256
    $region141: #{tpu_custom_call.1} parent=1 // pred_fallthru
      _
    %4202 = vsyncpa [#allocation3], 1
    %4203 = vsyncpa [#allocation6], 1
    %4204 = vsyncpa [#allocation9], 1
    %4205 = vsyncpa [#allocation12], 1
    %4206 = vsyncpa [#allocation15], 1
    %4207 = vsyncpa [#allocation18], 1
    %4208 = vsyncpa [#allocation21], 1
    %4209 = vsyncpa [#allocation4], 1

</llo_original>
